<compile_context>
chip_gen: v5e
topology: v5e:2x2
jax: 0.10.0
libtpu: 0.0.40
codegen_flags: <defaults>
</compile_context>

<pallas_src>
import functools

import numpy as np

import jax
import jax.numpy as jnp
from jax.experimental import pallas as pl
from jax.experimental.pallas import tpu as pltpu

LATENT = 16
K = 3  # all convs are 3x3


# ---------------------------------------------------------------------------
# Constant gather matrices (compile-time constants, numpy).
# G[p_in, t*P_out + p_out] = 1 iff input pixel p_in feeds tap t of output
# pixel p_out.  Zero-padding (conv) and zero-stuffing + output_padding
# (transposed conv) are folded in as all-zero columns/rows.
# ---------------------------------------------------------------------------
@functools.lru_cache(maxsize=None)
def _conv_gather(h, w, k, stride, pad):
    ho = (h + 2 * pad - k) // stride + 1
    wo = (w + 2 * pad - k) // stride + 1
    g = np.zeros((h * w, k * k * ho * wo), np.float32)
    for kh in range(k):
        for kw in range(k):
            t = kh * k + kw
            for oh in range(ho):
                for ow in range(wo):
                    ih = oh * stride + kh - pad
                    iw = ow * stride + kw - pad
                    if 0 <= ih < h and 0 <= iw < w:
                        g[ih * w + iw, (t * ho + oh) * wo + ow] = 1.0
    return g


@functools.lru_cache(maxsize=None)
def _deconv_gather(h, w, k, stride, pad, out_pad):
    # PyTorch ConvTranspose2d: out[i] += x[hin] * w[kh]  at  i = hin*stride - pad + kh
    ho = (h - 1) * stride - 2 * pad + k + out_pad
    wo = (w - 1) * stride - 2 * pad + k + out_pad
    g = np.zeros((h * w, k * k * ho * wo), np.float32)
    for kh in range(k):
        for kw in range(k):
            t = kh * k + kw
            for oh in range(ho):
                for ow in range(wo):
                    ih, rh = divmod(oh + pad - kh, stride)
                    iw, rw = divmod(ow + pad - kw, stride)
                    if rh == 0 and rw == 0 and 0 <= ih < h and 0 <= iw < w:
                        g[ih * w + iw, (t * ho + oh) * wo + ow] = 1.0
    return g


def _fold(g, wt):
    """Fold tap weights into the gather matrix -> one dense matmul per layer.

    g  : [Pin, 9*Pout]  constant 0/1 gather matrix (numpy)
    wt : [9, O, Cin]    per-tap weight stack (jax)
    returns F: [Cin*Pin, O*Pout] bf16 with
      F[c*Pin+pin, o*Pout+pout] = sum_t wt[t,o,c] * g[pin, t*Pout+pout]
    """
    t, o, c = wt.shape
    pin = g.shape[0]
    pout = g.shape[1] // t
    g3 = jnp.asarray(g).reshape(pin, t, pout)
    f = jnp.einsum("ptq,toc->cpoq", g3, wt).reshape(c * pin, o * pout)
    return f.astype(jnp.bfloat16)


def _bias_flat(b, pout):
    """Per-channel bias -> lane-dense flat bias [1, O*Pout] (f32)."""
    o = b.shape[0]
    return jnp.broadcast_to(b.reshape(o, 1), (o, pout)).reshape(1, o * pout).astype(jnp.float32)


# ---------------------------------------------------------------------------
# The fused kernel: whole CVAE forward; activations never leave VMEM.
# Layout: activations are lane-dense [N, C*P] throughout.
# ---------------------------------------------------------------------------
def _cvae_fused_kernel(x_ref, eps_ref,
                       f1_ref, b1_ref, f2_ref, b2_ref,
                       wml_ref, bml_ref, wfc_ref, bfc_ref,
                       f3_ref, b3_ref, f4_hbm, b4_ref,
                       recon_ref, ml_ref,
                       f4_vmem, f4_sem):
    # Prefetch the largest constant (deconv2 folded weights, used last) so its
    # HBM->VMEM DMA overlaps the encoder / latent / decoder-FC compute.
    f4_copy = pltpu.make_async_copy(f4_hbm, f4_vmem, f4_sem)
    f4_copy.start()

    def dense(h_f32, w_ref, b_ref):
        # bf16 MXU matmul, f32 accumulation, f32 bias add.
        return jnp.dot(h_f32.astype(jnp.bfloat16), w_ref[...],
                       preferred_element_type=jnp.float32) + b_ref[...]

    x = x_ref[...]                                             # [N, 1024] f32

    # Encoder
    h1 = jnp.maximum(dense(x, f1_ref, b1_ref), 0.0)            # [N, 512]
    h2 = jnp.maximum(dense(h1, f2_ref, b2_ref), 0.0)           # [N, 256]

    # fc_mu + fc_logvar (merged) and reparameterize (f32 EUP math)
    ml = dense(h2, wml_ref, bml_ref)                           # [N, 32]
    ml_ref[...] = ml
    mu = ml[:, :LATENT]
    logvar = ml[:, LATENT:]
    z = mu + jnp.exp(0.5 * logvar) * eps_ref[...]              # [N, 16]

    # Decoder
    hd = jnp.maximum(dense(z, wfc_ref, bfc_ref), 0.0)          # [N, 256]
    d1 = jnp.maximum(dense(hd, f3_ref, b3_ref), 0.0)           # [N, 512]

    f4_copy.wait()
    d2 = dense(d1, f4_vmem, b4_ref)                            # [N, 1024]
    # sigmoid: exp on EUP, reciprocal on EUP (approx) - no VALU divide chain
    recon_ref[...] = pl.reciprocal(1.0 + jnp.exp(-d2), approx=True)


# ---------------------------------------------------------------------------
# Wrapper: weight folding / layout plumbing + one grid-less pallas_call.
# ---------------------------------------------------------------------------
def cvae_forward(params, x, eps):
    n = x.shape[0]

    # constant gather matrices
    g1 = _conv_gather(16, 16, K, 2, 1)          # [256, 9*64]
    g2 = _conv_gather(8, 8, K, 2, 1)            # [64, 9*16]
    g3 = _deconv_gather(4, 4, K, 2, 1, 1)       # [16, 9*64]
    g4 = _deconv_gather(8, 8, K, 2, 1, 1)       # [64, 9*256]

    # per-tap weight stacks wt[t, o, c]
    w1t = jnp.transpose(params["enc_conv1_w"], (2, 3, 0, 1)).reshape(K * K, 8, 4)
    w2t = jnp.transpose(params["enc_conv2_w"], (2, 3, 0, 1)).reshape(K * K, 16, 8)
    # ConvTranspose weights are [Cin, Cout, kh, kw] -> [t, o=Cout, c=Cin]
    w3t = jnp.transpose(params["dec_deconv1_w"], (2, 3, 1, 0)).reshape(K * K, 8, 16)
    w4t = jnp.transpose(params["dec_deconv2_w"], (2, 3, 1, 0)).reshape(K * K, 4, 8)

    # folded dense layer matrices (bf16)
    f1 = _fold(g1, w1t)                         # [1024, 512]
    f2 = _fold(g2, w2t)                         # [512, 256]
    f3 = _fold(g3, w3t)                         # [256, 512]
    f4 = _fold(g4, w4t)                         # [512, 1024]  (prefetched in-kernel)

    b1 = _bias_flat(params["enc_conv1_b"], 64)
    b2 = _bias_flat(params["enc_conv2_b"], 16)
    b3 = _bias_flat(params["dec_deconv1_b"], 64)
    b4 = _bias_flat(params["dec_deconv2_b"], 256)

    # fc_mu & fc_logvar merged: [256, 32]; encoder flatten is c-major = our layout
    wml = jnp.concatenate([params["fc_mu_w"], params["fc_logvar_w"]], axis=0).T.astype(jnp.bfloat16)
    bml = jnp.concatenate([params["fc_mu_b"], params["fc_logvar_b"]]).reshape(1, 2 * LATENT)
    bml = bml.astype(jnp.float32)
    # decoder fc: [16, 256]; PyTorch reshape(16,4,4) is c-major = our layout
    wfc = params["dec_fc_w"].T.astype(jnp.bfloat16)
    bfc = params["dec_fc_b"].reshape(1, 256).astype(jnp.float32)

    x2 = x.reshape(n, 4 * 256)                  # lane-dense [N, C*P]

    vmem = pl.BlockSpec(memory_space=pltpu.MemorySpace.VMEM)
    anyspec = pl.BlockSpec(memory_space=pl.ANY)

    # grid-less call: everything VMEM-resident (~2.7 MiB total), single invocation.
    # TODO(synk): on v7x (2 TensorCores) add grid=(N,) with
    # dimension_semantics=("parallel",) over the batch axis for 2x at batch>=2.
    recon_flat, ml = pl.pallas_call(
        _cvae_fused_kernel,
        out_shape=(
            jax.ShapeDtypeStruct((n, 4 * 256), jnp.float32),
            jax.ShapeDtypeStruct((n, 2 * LATENT), jnp.float32),
        ),
        in_specs=[vmem, vmem,            # x, eps
                  vmem, vmem,            # f1, b1
                  vmem, vmem,            # f2, b2
                  vmem, vmem,            # wml, bml
                  vmem, vmem,            # wfc, bfc
                  vmem, vmem,            # f3, b3
                  anyspec, vmem],        # f4 (HBM -> prefetched), b4
        out_specs=(vmem, vmem),
        scratch_shapes=[pltpu.VMEM((8 * 64, 4 * 256), jnp.bfloat16),
                        pltpu.SemaphoreType.DMA],
    )(x2, eps, f1, b1, f2, b2, wml, bml, wfc, bfc, f3, b3, f4, b4)

    mu = ml[:, :LATENT]
    logvar = ml[:, LATENT:]
    return recon_flat.reshape(n, 4, 16, 16), mu, logvar


# ---------------------------------------------------------------------------
# Parameters (deterministic synthetic init, PyTorch layouts)
# ---------------------------------------------------------------------------
def init_params(key):
    ks = jax.random.split(key, 8)
    s = 0.05
    return {
        "enc_conv1_w": s * jax.random.normal(ks[0], (8, 4, 3, 3), jnp.float32),
        "enc_conv1_b": jnp.zeros((8,), jnp.float32),
        "enc_conv2_w": s * jax.random.normal(ks[1], (16, 8, 3, 3), jnp.float32),
        "enc_conv2_b": jnp.zeros((16,), jnp.float32),
        "fc_mu_w": s * jax.random.normal(ks[2], (LATENT, 256), jnp.float32),
        "fc_mu_b": jnp.zeros((LATENT,), jnp.float32),
        "fc_logvar_w": s * jax.random.normal(ks[3], (LATENT, 256), jnp.float32),
        "fc_logvar_b": jnp.zeros((LATENT,), jnp.float32),
        "dec_fc_w": s * jax.random.normal(ks[4], (256, LATENT), jnp.float32),
        "dec_fc_b": jnp.zeros((256,), jnp.float32),
        "dec_deconv1_w": s * jax.random.normal(ks[5], (16, 8, 3, 3), jnp.float32),
        "dec_deconv1_b": jnp.zeros((8,), jnp.float32),
        "dec_deconv2_w": s * jax.random.normal(ks[6], (8, 4, 3, 3), jnp.float32),
        "dec_deconv2_b": jnp.zeros((4,), jnp.float32),
    }


# ---------------------------------------------------------------------------
# Pure-JAX reference (XLA convs) for a correctness cross-check
# ---------------------------------------------------------------------------
def _reference_forward(params, x, eps):
    def conv(h, w, b, stride, pad):
        y = jax.lax.conv_general_dilated(
            h, w, window_strides=(stride, stride),
            padding=((pad, pad), (pad, pad)),
            dimension_numbers=("NCHW", "OIHW", "NCHW"))
        return y + b.reshape(1, -1, 1, 1)

    def convT(h, w, b, stride, pad, out_pad):
        k = w.shape[2]
        w_eq = jnp.flip(w, (2, 3)).transpose(1, 0, 2, 3)
        lo, hi = k - 1 - pad, k - 1 - pad + out_pad
        y = jax.lax.conv_general_dilated(
            h, w_eq, window_strides=(1, 1),
            padding=((lo, hi), (lo, hi)),
            lhs_dilation=(stride, stride),
            dimension_numbers=("NCHW", "OIHW", "NCHW"))
        return y + b.reshape(1, -1, 1, 1)

    n = x.shape[0]
    h = jax.nn.relu(conv(x, params["enc_conv1_w"], params["enc_conv1_b"], 2, 1))
    h = jax.nn.relu(conv(h, params["enc_conv2_w"], params["enc_conv2_b"], 2, 1))
    flat = h.reshape(n, -1)
    mu = flat @ params["fc_mu_w"].T + params["fc_mu_b"]
    logvar = flat @ params["fc_logvar_w"].T + params["fc_logvar_b"]
    z = mu + jnp.exp(0.5 * logvar) * eps
    hd = jax.nn.relu(z @ params["dec_fc_w"].T + params["dec_fc_b"]).reshape(n, 16, 4, 4)
    hd = jax.nn.relu(convT(hd, params["dec_deconv1_w"], params["dec_deconv1_b"], 2, 1, 1))
    recon = jax.nn.sigmoid(convT(hd, params["dec_deconv2_w"], params["dec_deconv2_b"], 2, 1, 1))
    return recon, mu, logvar


# ---------------------------------------------------------------------------
if __name__ == "__main__":
    key = jax.random.PRNGKey(0)
    k_x, k_eps, k_p = jax.random.split(key, 3)

    x = jax.random.uniform(k_x, (2, 4, 16, 16), jnp.float32)     # NCHW
    eps = jax.random.normal(k_eps, (2, LATENT), jnp.float32)     # deterministic noise
    params = init_params(k_p)

    recon_x, mu, logvar = jax.jit(cvae_forward)(params, x, eps)
    jax.block_until_ready((recon_x, mu, logvar))

    assert recon_x.shape == (2, 4, 16, 16)
    assert mu.shape == (2, LATENT)
    assert logvar.shape == (2, LATENT)

    # cross-check against a plain-XLA reference (bf16 matmuls -> 1e-2 tolerance)
    r_ref, mu_r, lv_r = _reference_forward(params, x, eps)
    np.testing.assert_allclose(np.asarray(recon_x), np.asarray(r_ref), rtol=1e-2, atol=1e-2)
    np.testing.assert_allclose(np.asarray(mu), np.asarray(mu_r), rtol=1e-2, atol=1e-2)
    np.testing.assert_allclose(np.asarray(logvar), np.asarray(lv_r), rtol=1e-2, atol=1e-2)

    print("KERNEL_OK")
</pallas_src>

<mosaic_0001>
module attributes {stable_mosaic.version = 11 : i64} {
  func.func @_cvae_fused_kernel(%arg0: memref<2x1024xf32, #tpu.memory_space<vmem>>, %arg1: memref<2x16xf32, #tpu.memory_space<vmem>>, %arg2: memref<1024x512xbf16, #tpu.memory_space<vmem>>, %arg3: memref<1x512xf32, #tpu.memory_space<vmem>>, %arg4: memref<512x256xbf16, #tpu.memory_space<vmem>>, %arg5: memref<1x256xf32, #tpu.memory_space<vmem>>, %arg6: memref<256x32xbf16, #tpu.memory_space<vmem>>, %arg7: memref<1x32xf32, #tpu.memory_space<vmem>>, %arg8: memref<16x256xbf16, #tpu.memory_space<vmem>>, %arg9: memref<1x256xf32, #tpu.memory_space<vmem>>, %arg10: memref<256x512xbf16, #tpu.memory_space<vmem>>, %arg11: memref<1x512xf32, #tpu.memory_space<vmem>>, %arg12: memref<512x1024xbf16, #tpu.memory_space<any>>, %arg13: memref<1x1024xf32, #tpu.memory_space<vmem>>, %arg14: memref<2x1024xf32, #tpu.memory_space<vmem>>, %arg15: memref<2x32xf32, #tpu.memory_space<vmem>>, %arg16: memref<512x1024xbf16, #tpu.memory_space<vmem>>, %arg17: memref<!tpu.dma_semaphore, #tpu.memory_space<semaphore_mem>>) attributes {dimension_semantics = [], scalar_prefetch = 0 : i64, scratch_operands = 2 : i64, tpu.core_type = #tpu.core_type<tc>} {
    tpu.enqueue_dma source(%arg12 : memref<512x1024xbf16, #tpu.memory_space<any>>) target(%arg16 : memref<512x1024xbf16, #tpu.memory_space<vmem>>) target_semaphore(%arg17 : memref<!tpu.dma_semaphore, #tpu.memory_space<semaphore_mem>>)
    %c0 = arith.constant 0 : index
    %c0_0 = arith.constant 0 : index
    %0 = vector.load %arg0[%c0, %c0_0] : memref<2x1024xf32, #tpu.memory_space<vmem>>, vector<2x1024xf32>
    %1 = arith.truncf %0 : vector<2x1024xf32> to vector<2x1024xbf16>
    %c0_1 = arith.constant 0 : index
    %c0_2 = arith.constant 0 : index
    %2 = vector.load %arg2[%c0_1, %c0_2] : memref<1024x512xbf16, #tpu.memory_space<vmem>>, vector<1024x512xbf16>
    %cst = arith.constant dense<0.000000e+00> : vector<2x512xf32>
    %3 = tpu.matmul %1, %2, %cst {dimension_numbers = #tpu.dot_dimension_numbers<[1], [0], [0], [1], [0, 0, 1, 1], [], []>} : vector<2x1024xbf16>, vector<1024x512xbf16>, vector<2x512xf32> -> vector<2x512xf32>
    %c0_3 = arith.constant 0 : index
    %c0_4 = arith.constant 0 : index
    %4 = vector.load %arg3[%c0_3, %c0_4] : memref<1x512xf32, #tpu.memory_space<vmem>>, vector<1x512xf32>
    %5 = vector.broadcast %4 : vector<1x512xf32> to vector<2x512xf32>
    %6 = arith.addf %3, %5 : vector<2x512xf32>
    %cst_5 = arith.constant 0.000000e+00 : f32
    %7 = vector.broadcast %cst_5 : f32 to vector<2x512xf32>
    %8 = arith.maximumf %6, %7 : vector<2x512xf32>
    %9 = arith.truncf %8 : vector<2x512xf32> to vector<2x512xbf16>
    %c0_6 = arith.constant 0 : index
    %c0_7 = arith.constant 0 : index
    %10 = vector.load %arg4[%c0_6, %c0_7] : memref<512x256xbf16, #tpu.memory_space<vmem>>, vector<512x256xbf16>
    %cst_8 = arith.constant dense<0.000000e+00> : vector<2x256xf32>
    %11 = tpu.matmul %9, %10, %cst_8 {dimension_numbers = #tpu.dot_dimension_numbers<[1], [0], [0], [1], [0, 0, 1, 1], [], []>} : vector<2x512xbf16>, vector<512x256xbf16>, vector<2x256xf32> -> vector<2x256xf32>
    %c0_9 = arith.constant 0 : index
    %c0_10 = arith.constant 0 : index
    %12 = vector.load %arg5[%c0_9, %c0_10] : memref<1x256xf32, #tpu.memory_space<vmem>>, vector<1x256xf32>
    %13 = vector.broadcast %12 : vector<1x256xf32> to vector<2x256xf32>
    %14 = arith.addf %11, %13 : vector<2x256xf32>
    %cst_11 = arith.constant 0.000000e+00 : f32
    %15 = vector.broadcast %cst_11 : f32 to vector<2x256xf32>
    %16 = arith.maximumf %14, %15 : vector<2x256xf32>
    %17 = arith.truncf %16 : vector<2x256xf32> to vector<2x256xbf16>
    %c0_12 = arith.constant 0 : index
    %c0_13 = arith.constant 0 : index
    %18 = vector.load %arg6[%c0_12, %c0_13] : memref<256x32xbf16, #tpu.memory_space<vmem>>, vector<256x32xbf16>
    %cst_14 = arith.constant dense<0.000000e+00> : vector<2x32xf32>
    %19 = tpu.matmul %17, %18, %cst_14 {dimension_numbers = #tpu.dot_dimension_numbers<[1], [0], [0], [1], [0, 0, 1, 1], [], []>} : vector<2x256xbf16>, vector<256x32xbf16>, vector<2x32xf32> -> vector<2x32xf32>
    %c0_15 = arith.constant 0 : index
    %c0_16 = arith.constant 0 : index
    %20 = vector.load %arg7[%c0_15, %c0_16] : memref<1x32xf32, #tpu.memory_space<vmem>>, vector<1x32xf32>
    %21 = vector.broadcast %20 : vector<1x32xf32> to vector<2x32xf32>
    %22 = arith.addf %19, %21 : vector<2x32xf32>
    %c0_17 = arith.constant 0 : index
    %c0_18 = arith.constant 0 : index
    %23 = vector.load %arg15[%c0_17, %c0_18] : memref<2x32xf32, #tpu.memory_space<vmem>>, vector<2x32xf32>
    tpu.vector_store %arg15[%c0_17, %c0_18], %22 {strides = array<i32>} : memref<2x32xf32, #tpu.memory_space<vmem>>, vector<2x32xf32>,
    %24 = vector.extract_strided_slice %22 {offsets = [0, 0], sizes = [2, 16], strides = [1, 1]} : vector<2x32xf32> to vector<2x16xf32>
    %25 = vector.extract_strided_slice %22 {offsets = [0, 16], sizes = [2, 16], strides = [1, 1]} : vector<2x32xf32> to vector<2x16xf32>
    %cst_19 = arith.constant 5.000000e-01 : f32
    %26 = vector.broadcast %cst_19 : f32 to vector<2x16xf32>
    %27 = arith.mulf %26, %25 : vector<2x16xf32>
    %28 = math.exp %27 : vector<2x16xf32>
    %c0_20 = arith.constant 0 : index
    %c0_21 = arith.constant 0 : index
    %29 = vector.load %arg1[%c0_20, %c0_21] : memref<2x16xf32, #tpu.memory_space<vmem>>, vector<2x16xf32>
    %30 = arith.mulf %28, %29 : vector<2x16xf32>
    %31 = arith.addf %24, %30 : vector<2x16xf32>
    %32 = arith.truncf %31 : vector<2x16xf32> to vector<2x16xbf16>
    %c0_22 = arith.constant 0 : index
    %c0_23 = arith.constant 0 : index
    %33 = vector.load %arg8[%c0_22, %c0_23] : memref<16x256xbf16, #tpu.memory_space<vmem>>, vector<16x256xbf16>
    %cst_24 = arith.constant dense<0.000000e+00> : vector<2x256xf32>
    %34 = tpu.matmul %32, %33, %cst_24 {dimension_numbers = #tpu.dot_dimension_numbers<[1], [0], [0], [1], [0, 0, 1, 1], [], []>} : vector<2x16xbf16>, vector<16x256xbf16>, vector<2x256xf32> -> vector<2x256xf32>
    %c0_25 = arith.constant 0 : index
    %c0_26 = arith.constant 0 : index
    %35 = vector.load %arg9[%c0_25, %c0_26] : memref<1x256xf32, #tpu.memory_space<vmem>>, vector<1x256xf32>
    %36 = vector.broadcast %35 : vector<1x256xf32> to vector<2x256xf32>
    %37 = arith.addf %34, %36 : vector<2x256xf32>
    %cst_27 = arith.constant 0.000000e+00 : f32
    %38 = vector.broadcast %cst_27 : f32 to vector<2x256xf32>
    %39 = arith.maximumf %37, %38 : vector<2x256xf32>
    %40 = arith.truncf %39 : vector<2x256xf32> to vector<2x256xbf16>
    %c0_28 = arith.constant 0 : index
    %c0_29 = arith.constant 0 : index
    %41 = vector.load %arg10[%c0_28, %c0_29] : memref<256x512xbf16, #tpu.memory_space<vmem>>, vector<256x512xbf16>
    %cst_30 = arith.constant dense<0.000000e+00> : vector<2x512xf32>
    %42 = tpu.matmul %40, %41, %cst_30 {dimension_numbers = #tpu.dot_dimension_numbers<[1], [0], [0], [1], [0, 0, 1, 1], [], []>} : vector<2x256xbf16>, vector<256x512xbf16>, vector<2x512xf32> -> vector<2x512xf32>
    %c0_31 = arith.constant 0 : index
    %c0_32 = arith.constant 0 : index
    %43 = vector.load %arg11[%c0_31, %c0_32] : memref<1x512xf32, #tpu.memory_space<vmem>>, vector<1x512xf32>
    %44 = vector.broadcast %43 : vector<1x512xf32> to vector<2x512xf32>
    %45 = arith.addf %42, %44 : vector<2x512xf32>
    %cst_33 = arith.constant 0.000000e+00 : f32
    %46 = vector.broadcast %cst_33 : f32 to vector<2x512xf32>
    %47 = arith.maximumf %45, %46 : vector<2x512xf32>
    tpu.wait_dma2 semaphore(%arg17 : memref<!tpu.dma_semaphore, #tpu.memory_space<semaphore_mem>>) src(%arg12 : memref<512x1024xbf16, #tpu.memory_space<any>>) dst(%arg16 : memref<512x1024xbf16, #tpu.memory_space<vmem>>)
    %48 = arith.truncf %47 : vector<2x512xf32> to vector<2x512xbf16>
    %c0_34 = arith.constant 0 : index
    %c0_35 = arith.constant 0 : index
    %49 = vector.load %arg16[%c0_34, %c0_35] : memref<512x1024xbf16, #tpu.memory_space<vmem>>, vector<512x1024xbf16>
    %cst_36 = arith.constant dense<0.000000e+00> : vector<2x1024xf32>
    %50 = tpu.matmul %48, %49, %cst_36 {dimension_numbers = #tpu.dot_dimension_numbers<[1], [0], [0], [1], [0, 0, 1, 1], [], []>} : vector<2x512xbf16>, vector<512x1024xbf16>, vector<2x1024xf32> -> vector<2x1024xf32>
    %c0_37 = arith.constant 0 : index
    %c0_38 = arith.constant 0 : index
    %51 = vector.load %arg13[%c0_37, %c0_38] : memref<1x1024xf32, #tpu.memory_space<vmem>>, vector<1x1024xf32>
    %52 = vector.broadcast %51 : vector<1x1024xf32> to vector<2x1024xf32>
    %53 = arith.addf %50, %52 : vector<2x1024xf32>
    %cst_39 = arith.constant 0.000000e+00 : f32
    %54 = vector.broadcast %cst_39 : f32 to vector<2x1024xf32>
    %55 = arith.subf %54, %53 : vector<2x1024xf32>
    %56 = math.exp %55 : vector<2x1024xf32>
    %cst_40 = arith.constant 1.000000e+00 : f32
    %57 = vector.broadcast %cst_40 : f32 to vector<2x1024xf32>
    %58 = arith.addf %57, %56 : vector<2x1024xf32>
    %59 = tpu.reciprocal %58 {approx = true} : vector<2x1024xf32> -> vector<2x1024xf32>
    %c0_41 = arith.constant 0 : index
    %c0_42 = arith.constant 0 : index
    %60 = vector.load %arg14[%c0_41, %c0_42] : memref<2x1024xf32, #tpu.memory_space<vmem>>, vector<2x1024xf32>
    tpu.vector_store %arg14[%c0_41, %c0_42], %59 {strides = array<i32>} : memref<2x1024xf32, #tpu.memory_space<vmem>>, vector<2x1024xf32>,
    return
  }
}

</mosaic_0001>

<llo_original>
// kernel: cvae_forward.1
$region0: #{cvae_forward.1}
  #allocation0 [shape = 'u32[]', space=smem, size = 0x4, offset = 0x4, fixed_abs, tag = 'smem constant byte address 0x4 - core index']
  #allocation1 [shape = 'u32[72,128]{1,0:T(1,128)}', space=vmem, size = 0x9000, scoped, tag = 'internal scratch']
  #allocation2 [shape = 'bf16[512,1024]{1,0:T(8,128)(2,1)}', space=vmem, size = 0x100000, scoped, tag = 'scratch operand']
  #allocation3 [shape = 's32[1]{0}', space=sflag, size = 0x4, scoped, tag = 'scratch operand']
  #allocation4 [shape = 's32[]', space=sflag, size = 0x4, offset = 0, fixed_abs, tag = 'sflag constant byte address 0x0 - dummy sync flag']
  %s0 = inlined_call_operand.vmem [shape: f32[2,1024], index: 0, kind: input, shape index: {}]
  %s1 = inlined_call_operand.vmem [shape: f32[2,16], index: 1, kind: input, shape index: {}]
  %s2 = inlined_call_operand.vmem [shape: bf16[1024,512], index: 2, kind: input, shape index: {}]
  %s3 = inlined_call_operand.vmem [shape: f32[1,512], index: 3, kind: input, shape index: {}]
  %s4 = inlined_call_operand.vmem [shape: bf16[512,256], index: 4, kind: input, shape index: {}]
  %s5 = inlined_call_operand.vmem [shape: f32[1,256], index: 5, kind: input, shape index: {}]
  %s6 = inlined_call_operand.vmem [shape: bf16[256,32], index: 6, kind: input, shape index: {}]
  %s7 = inlined_call_operand.vmem [shape: f32[1,32], index: 7, kind: input, shape index: {}]
  %s8 = inlined_call_operand.vmem [shape: bf16[16,256], index: 8, kind: input, shape index: {}]
  %s9 = inlined_call_operand.vmem [shape: f32[1,256], index: 9, kind: input, shape index: {}]
  %s10 = inlined_call_operand.vmem [shape: bf16[256,512], index: 10, kind: input, shape index: {}]
  %s11 = inlined_call_operand.vmem [shape: f32[1,512], index: 11, kind: input, shape index: {}]
  %s12 = inlined_call_operand.vmem [shape: bf16[512,1024], index: 12, kind: input, shape index: {}]
  %s13 = inlined_call_operand.vmem [shape: f32[1,1024], index: 13, kind: input, shape index: {}]
  %s14 = inlined_call_operand.vmem [shape: f32[2,1024], index: 14, kind: output, shape index: {0}]
  %s15 = inlined_call_operand.vmem [shape: f32[2,32], index: 15, kind: output, shape index: {1}]
  %16 = xla_tuple %s14, %s15
  %s17 = sld [smem:[#allocation0]]
  $region89: #{cvae_forward.1} parent=0
    _
  %s19 = ssub.s32 1, %s17
  %s20 = scalar_select 0, %s19, %s17
  // Predicated region
  $region2: #{cvae_forward.1} parent=0 // pred_check
    _
  $region3: #{cvae_forward.1} parent=0 // pred_check_branch
    %22 = sbr.rel (0) target = $region5
  $region4: #{cvae_forward.1} parent=0 // pred_region
    _
  $region5: #{cvae_forward.1} parent=0 // pred_fallthru
    _
  // Predicated region
  $region6: #{cvae_forward.1} parent=0 // pred_check
    _
  $region7: #{cvae_forward.1} parent=0 // pred_check_branch
    %24 = sbr.rel (0) target = $region9
  $region8: #{cvae_forward.1} parent=0 // pred_region
    _
  $region9: #{cvae_forward.1} parent=0 // pred_fallthru
    _
  // Predicated region
  $region10: #{cvae_forward.1} parent=0 // pred_check
    _
  $region11: #{cvae_forward.1} parent=0 // pred_check_branch
    %26 = sbr.rel (0) target = $region13
  $region12: #{cvae_forward.1} parent=0 // pred_region
    _
  $region13: #{cvae_forward.1} parent=0 // pred_fallthru
    _
  // Predicated region
  $region14: #{cvae_forward.1} parent=0 // pred_check
    _
  $region15: #{cvae_forward.1} parent=0 // pred_check_branch
    %28 = sbr.rel (0) target = $region17
  $region16: #{cvae_forward.1} parent=0 // pred_region
    _
  $region17: #{cvae_forward.1} parent=0 // pred_fallthru
    _
  // Predicated region
  $region18: #{cvae_forward.1} parent=0 // pred_check
    _
  $region19: #{cvae_forward.1} parent=0 // pred_check_branch
    %30 = sbr.rel (0) target = $region21
  $region20: #{cvae_forward.1} parent=0 // pred_region
    _
  $region21: #{cvae_forward.1} parent=0 // pred_fallthru
    _
  // Predicated region
  $region22: #{cvae_forward.1} parent=0 // pred_check
    _
  $region23: #{cvae_forward.1} parent=0 // pred_check_branch
    %32 = sbr.rel (0) target = $region25
  $region24: #{cvae_forward.1} parent=0 // pred_region
    _
  $region25: #{cvae_forward.1} parent=0 // pred_fallthru
    _
  // Predicated region
  $region26: #{cvae_forward.1} parent=0 // pred_check
    _
  $region27: #{cvae_forward.1} parent=0 // pred_check_branch
    %34 = sbr.rel (0) target = $region29
  $region28: #{cvae_forward.1} parent=0 // pred_region
    _
  $region29: #{cvae_forward.1} parent=0 // pred_fallthru
    _
  // Predicated region
  $region30: #{cvae_forward.1} parent=0 // pred_check
    _
  $region31: #{cvae_forward.1} parent=0 // pred_check_branch
    %36 = sbr.rel (0) target = $region33
  $region32: #{cvae_forward.1} parent=0 // pred_region
    _
  $region33: #{cvae_forward.1} parent=0 // pred_fallthru
    _
  // Predicated region
  $region34: #{cvae_forward.1} parent=0 // pred_check
    _
  $region35: #{cvae_forward.1} parent=0 // pred_check_branch
    %38 = sbr.rel (0) target = $region37
  $region36: #{cvae_forward.1} parent=0 // pred_region
    _
  $region37: #{cvae_forward.1} parent=0 // pred_fallthru
    _
  // Predicated region
  $region38: #{cvae_forward.1} parent=0 // pred_check
    _
  $region39: #{cvae_forward.1} parent=0 // pred_check_branch
    %40 = sbr.rel (0) target = $region41
  $region40: #{cvae_forward.1} parent=0 // pred_region
    _
  $region41: #{cvae_forward.1} parent=0 // pred_fallthru
    _
  // Predicated region
  $region42: #{cvae_forward.1} parent=0 // pred_check
    _
  $region43: #{cvae_forward.1} parent=0 // pred_check_branch
    %42 = sbr.rel (0) target = $region45
  $region44: #{cvae_forward.1} parent=0 // pred_region
    _
  $region45: #{cvae_forward.1} parent=0 // pred_fallthru
    _
  // Predicated region
  $region46: #{cvae_forward.1} parent=0 // pred_check
    _
  $region47: #{cvae_forward.1} parent=0 // pred_check_branch
    %44 = sbr.rel (0) target = $region49
  $region48: #{cvae_forward.1} parent=0 // pred_region
    _
  $region49: #{cvae_forward.1} parent=0 // pred_fallthru
    _
  // Predicated region
  $region50: #{cvae_forward.1} parent=0 // pred_check
    _
  $region51: #{cvae_forward.1} parent=0 // pred_check_branch
    %46 = sbr.rel (0) target = $region53
  $region52: #{cvae_forward.1} parent=0 // pred_region
    _
  $region53: #{cvae_forward.1} parent=0 // pred_fallthru
    _
  // Predicated region
  $region54: #{cvae_forward.1} parent=0 // pred_check
    _
  $region55: #{cvae_forward.1} parent=0 // pred_check_branch
    %49 = sbr.rel (0) target = $region57
  $region56: #{cvae_forward.1} parent=0 // pred_region
    loop: start=0, step=1, limit=1
    $region58: #{cvae_forward.1} parent=56 // loop_pre_header
      _
    $region59: #{cvae_forward.1} parent=56 // loop_header
      %s51 = sphi 0, %s55
      %p52 = scmp.ge.s32.totalorder %s51, 1
      %s56 = sphi %s12, %s12
      %s57 = sphi [#allocation2], [#allocation2]
    $region60: #{cvae_forward.1} parent=56 // loop_header_branch
      %54 = sbr.rel (%p52) target = $region64
    $region61: #{cvae_forward.1} parent=56 // loop_body
      %v58 = vld [vmem:[%s56] sm:$0xff]
      %59 = vst [vmem:[%s57] sm:$0xff] %v58
      %v60 = vld [vmem:[%s56 + $0x8] sm:$0xff]
      %61 = vst [vmem:[%s57 + $0x8] sm:$0xff] %v60
      %v62 = vld [vmem:[%s56 + $0x10] sm:$0xff]
      %63 = vst [vmem:[%s57 + $0x10] sm:$0xff] %v62
      %v64 = vld [vmem:[%s56 + $0x18] sm:$0xff]
      %65 = vst [vmem:[%s57 + $0x18] sm:$0xff] %v64
      %v66 = vld [vmem:[%s56 + $0x20] sm:$0xff]
      %67 = vst [vmem:[%s57 + $0x20] sm:$0xff] %v66
      %v68 = vld [vmem:[%s56 + $0x28] sm:$0xff]
      %69 = vst [vmem:[%s57 + $0x28] sm:$0xff] %v68
      %v70 = vld [vmem:[%s56 + $0x30] sm:$0xff]
      %71 = vst [vmem:[%s57 + $0x30] sm:$0xff] %v70
      %v72 = vld [vmem:[%s56 + $0x38] sm:$0xff]
      %73 = vst [vmem:[%s57 + $0x38] sm:$0xff] %v72
      %v74 = vld [vmem:[%s56 + $0x40] sm:$0xff]
      %75 = vst [vmem:[%s57 + $0x40] sm:$0xff] %v74
      %v76 = vld [vmem:[%s56 + $0x48] sm:$0xff]
      %77 = vst [vmem:[%s57 + $0x48] sm:$0xff] %v76
      %v78 = vld [vmem:[%s56 + $0x50] sm:$0xff]
      %79 = vst [vmem:[%s57 + $0x50] sm:$0xff] %v78
      %v80 = vld [vmem:[%s56 + $0x58] sm:$0xff]
      %81 = vst [vmem:[%s57 + $0x58] sm:$0xff] %v80
      %v82 = vld [vmem:[%s56 + $0x60] sm:$0xff]
      %83 = vst [vmem:[%s57 + $0x60] sm:$0xff] %v82
      %v84 = vld [vmem:[%s56 + $0x68] sm:$0xff]
      %85 = vst [vmem:[%s57 + $0x68] sm:$0xff] %v84
      %v86 = vld [vmem:[%s56 + $0x70] sm:$0xff]
      %87 = vst [vmem:[%s57 + $0x70] sm:$0xff] %v86
      %v88 = vld [vmem:[%s56 + $0x78] sm:$0xff]
      %89 = vst [vmem:[%s57 + $0x78] sm:$0xff] %v88
      %v90 = vld [vmem:[%s56 + $0x80] sm:$0xff]
      %91 = vst [vmem:[%s57 + $0x80] sm:$0xff] %v90
      %v92 = vld [vmem:[%s56 + $0x88] sm:$0xff]
      %93 = vst [vmem:[%s57 + $0x88] sm:$0xff] %v92
      %v94 = vld [vmem:[%s56 + $0x90] sm:$0xff]
      %95 = vst [vmem:[%s57 + $0x90] sm:$0xff] %v94
      %v96 = vld [vmem:[%s56 + $0x98] sm:$0xff]
      %97 = vst [vmem:[%s57 + $0x98] sm:$0xff] %v96
      %v98 = vld [vmem:[%s56 + $0xa0] sm:$0xff]
      %99 = vst [vmem:[%s57 + $0xa0] sm:$0xff] %v98
      %v100 = vld [vmem:[%s56 + $0xa8] sm:$0xff]
      %101 = vst [vmem:[%s57 + $0xa8] sm:$0xff] %v100
      %v102 = vld [vmem:[%s56 + $0xb0] sm:$0xff]
      %103 = vst [vmem:[%s57 + $0xb0] sm:$0xff] %v102
      %v104 = vld [vmem:[%s56 + $0xb8] sm:$0xff]
      %105 = vst [vmem:[%s57 + $0xb8] sm:$0xff] %v104
      %v106 = vld [vmem:[%s56 + $0xc0] sm:$0xff]
      %107 = vst [vmem:[%s57 + $0xc0] sm:$0xff] %v106
      %v108 = vld [vmem:[%s56 + $0xc8] sm:$0xff]
      %109 = vst [vmem:[%s57 + $0xc8] sm:$0xff] %v108
      %v110 = vld [vmem:[%s56 + $0xd0] sm:$0xff]
      %111 = vst [vmem:[%s57 + $0xd0] sm:$0xff] %v110
      %v112 = vld [vmem:[%s56 + $0xd8] sm:$0xff]
      %113 = vst [vmem:[%s57 + $0xd8] sm:$0xff] %v112
      %v114 = vld [vmem:[%s56 + $0xe0] sm:$0xff]
      %115 = vst [vmem:[%s57 + $0xe0] sm:$0xff] %v114
      %v116 = vld [vmem:[%s56 + $0xe8] sm:$0xff]
      %117 = vst [vmem:[%s57 + $0xe8] sm:$0xff] %v116
      %v118 = vld [vmem:[%s56 + $0xf0] sm:$0xff]
      %119 = vst [vmem:[%s57 + $0xf0] sm:$0xff] %v118
      %v120 = vld [vmem:[%s56 + $0xf8] sm:$0xff]
      %121 = vst [vmem:[%s57 + $0xf8] sm:$0xff] %v120
      %v122 = vld [vmem:[%s56 + $0x100] sm:$0xff]
      %123 = vst [vmem:[%s57 + $0x100] sm:$0xff] %v122
      %v124 = vld [vmem:[%s56 + $0x108] sm:$0xff]
      %125 = vst [vmem:[%s57 + $0x108] sm:$0xff] %v124
      %v126 = vld [vmem:[%s56 + $0x110] sm:$0xff]
      %127 = vst [vmem:[%s57 + $0x110] sm:$0xff] %v126
      %v128 = vld [vmem:[%s56 + $0x118] sm:$0xff]
      %129 = vst [vmem:[%s57 + $0x118] sm:$0xff] %v128
      %v130 = vld [vmem:[%s56 + $0x120] sm:$0xff]
      %131 = vst [vmem:[%s57 + $0x120] sm:$0xff] %v130
      %v132 = vld [vmem:[%s56 + $0x128] sm:$0xff]
      %133 = vst [vmem:[%s57 + $0x128] sm:$0xff] %v132
      %v134 = vld [vmem:[%s56 + $0x130] sm:$0xff]
      %135 = vst [vmem:[%s57 + $0x130] sm:$0xff] %v134
      %v136 = vld [vmem:[%s56 + $0x138] sm:$0xff]
      %137 = vst [vmem:[%s57 + $0x138] sm:$0xff] %v136
      %v138 = vld [vmem:[%s56 + $0x140] sm:$0xff]
      %139 = vst [vmem:[%s57 + $0x140] sm:$0xff] %v138
      %v140 = vld [vmem:[%s56 + $0x148] sm:$0xff]
      %141 = vst [vmem:[%s57 + $0x148] sm:$0xff] %v140
      %v142 = vld [vmem:[%s56 + $0x150] sm:$0xff]
      %143 = vst [vmem:[%s57 + $0x150] sm:$0xff] %v142
      %v144 = vld [vmem:[%s56 + $0x158] sm:$0xff]
      %145 = vst [vmem:[%s57 + $0x158] sm:$0xff] %v144
      %v146 = vld [vmem:[%s56 + $0x160] sm:$0xff]
      %147 = vst [vmem:[%s57 + $0x160] sm:$0xff] %v146
      %v148 = vld [vmem:[%s56 + $0x168] sm:$0xff]
      %149 = vst [vmem:[%s57 + $0x168] sm:$0xff] %v148
      %v150 = vld [vmem:[%s56 + $0x170] sm:$0xff]
      %151 = vst [vmem:[%s57 + $0x170] sm:$0xff] %v150
      %v152 = vld [vmem:[%s56 + $0x178] sm:$0xff]
      %153 = vst [vmem:[%s57 + $0x178] sm:$0xff] %v152
      %v154 = vld [vmem:[%s56 + $0x180] sm:$0xff]
      %155 = vst [vmem:[%s57 + $0x180] sm:$0xff] %v154
      %v156 = vld [vmem:[%s56 + $0x188] sm:$0xff]
      %157 = vst [vmem:[%s57 + $0x188] sm:$0xff] %v156
      %v158 = vld [vmem:[%s56 + $0x190] sm:$0xff]
      %159 = vst [vmem:[%s57 + $0x190] sm:$0xff] %v158
      %v160 = vld [vmem:[%s56 + $0x198] sm:$0xff]
      %161 = vst [vmem:[%s57 + $0x198] sm:$0xff] %v160
      %v162 = vld [vmem:[%s56 + $0x1a0] sm:$0xff]
      %163 = vst [vmem:[%s57 + $0x1a0] sm:$0xff] %v162
      %v164 = vld [vmem:[%s56 + $0x1a8] sm:$0xff]
      %165 = vst [vmem:[%s57 + $0x1a8] sm:$0xff] %v164
      %v166 = vld [vmem:[%s56 + $0x1b0] sm:$0xff]
      %167 = vst [vmem:[%s57 + $0x1b0] sm:$0xff] %v166
      %v168 = vld [vmem:[%s56 + $0x1b8] sm:$0xff]
      %169 = vst [vmem:[%s57 + $0x1b8] sm:$0xff] %v168
      %v170 = vld [vmem:[%s56 + $0x1c0] sm:$0xff]
      %171 = vst [vmem:[%s57 + $0x1c0] sm:$0xff] %v170
      %v172 = vld [vmem:[%s56 + $0x1c8] sm:$0xff]
      %173 = vst [vmem:[%s57 + $0x1c8] sm:$0xff] %v172
      %v174 = vld [vmem:[%s56 + $0x1d0] sm:$0xff]
      %175 = vst [vmem:[%s57 + $0x1d0] sm:$0xff] %v174
      %v176 = vld [vmem:[%s56 + $0x1d8] sm:$0xff]
      %177 = vst [vmem:[%s57 + $0x1d8] sm:$0xff] %v176
      %v178 = vld [vmem:[%s56 + $0x1e0] sm:$0xff]
      %179 = vst [vmem:[%s57 + $0x1e0] sm:$0xff] %v178
      %v180 = vld [vmem:[%s56 + $0x1e8] sm:$0xff]
      %181 = vst [vmem:[%s57 + $0x1e8] sm:$0xff] %v180
      %v182 = vld [vmem:[%s56 + $0x1f0] sm:$0xff]
      %183 = vst [vmem:[%s57 + $0x1f0] sm:$0xff] %v182
      %v184 = vld [vmem:[%s56 + $0x1f8] sm:$0xff]
      %185 = vst [vmem:[%s57 + $0x1f8] sm:$0xff] %v184
      %v186 = vld [vmem:[%s56 + $0x200] sm:$0xff]
      %187 = vst [vmem:[%s57 + $0x200] sm:$0xff] %v186
      %v188 = vld [vmem:[%s56 + $0x208] sm:$0xff]
      %189 = vst [vmem:[%s57 + $0x208] sm:$0xff] %v188
      %v190 = vld [vmem:[%s56 + $0x210] sm:$0xff]
      %191 = vst [vmem:[%s57 + $0x210] sm:$0xff] %v190
      %v192 = vld [vmem:[%s56 + $0x218] sm:$0xff]
      %193 = vst [vmem:[%s57 + $0x218] sm:$0xff] %v192
      %v194 = vld [vmem:[%s56 + $0x220] sm:$0xff]
      %195 = vst [vmem:[%s57 + $0x220] sm:$0xff] %v194
      %v196 = vld [vmem:[%s56 + $0x228] sm:$0xff]
      %197 = vst [vmem:[%s57 + $0x228] sm:$0xff] %v196
      %v198 = vld [vmem:[%s56 + $0x230] sm:$0xff]
      %199 = vst [vmem:[%s57 + $0x230] sm:$0xff] %v198
      %v200 = vld [vmem:[%s56 + $0x238] sm:$0xff]
      %201 = vst [vmem:[%s57 + $0x238] sm:$0xff] %v200
      %v202 = vld [vmem:[%s56 + $0x240] sm:$0xff]
      %203 = vst [vmem:[%s57 + $0x240] sm:$0xff] %v202
      %v204 = vld [vmem:[%s56 + $0x248] sm:$0xff]
      %205 = vst [vmem:[%s57 + $0x248] sm:$0xff] %v204
      %v206 = vld [vmem:[%s56 + $0x250] sm:$0xff]
      %207 = vst [vmem:[%s57 + $0x250] sm:$0xff] %v206
      %v208 = vld [vmem:[%s56 + $0x258] sm:$0xff]
      %209 = vst [vmem:[%s57 + $0x258] sm:$0xff] %v208
      %v210 = vld [vmem:[%s56 + $0x260] sm:$0xff]
      %211 = vst [vmem:[%s57 + $0x260] sm:$0xff] %v210
      %v212 = vld [vmem:[%s56 + $0x268] sm:$0xff]
      %213 = vst [vmem:[%s57 + $0x268] sm:$0xff] %v212
      %v214 = vld [vmem:[%s56 + $0x270] sm:$0xff]
      %215 = vst [vmem:[%s57 + $0x270] sm:$0xff] %v214
      %v216 = vld [vmem:[%s56 + $0x278] sm:$0xff]
      %217 = vst [vmem:[%s57 + $0x278] sm:$0xff] %v216
      %v218 = vld [vmem:[%s56 + $0x280] sm:$0xff]
      %219 = vst [vmem:[%s57 + $0x280] sm:$0xff] %v218
      %v220 = vld [vmem:[%s56 + $0x288] sm:$0xff]
      %221 = vst [vmem:[%s57 + $0x288] sm:$0xff] %v220
      %v222 = vld [vmem:[%s56 + $0x290] sm:$0xff]
      %223 = vst [vmem:[%s57 + $0x290] sm:$0xff] %v222
      %v224 = vld [vmem:[%s56 + $0x298] sm:$0xff]
      %225 = vst [vmem:[%s57 + $0x298] sm:$0xff] %v224
      %v226 = vld [vmem:[%s56 + $0x2a0] sm:$0xff]
      %227 = vst [vmem:[%s57 + $0x2a0] sm:$0xff] %v226
      %v228 = vld [vmem:[%s56 + $0x2a8] sm:$0xff]
      %229 = vst [vmem:[%s57 + $0x2a8] sm:$0xff] %v228
      %v230 = vld [vmem:[%s56 + $0x2b0] sm:$0xff]
      %231 = vst [vmem:[%s57 + $0x2b0] sm:$0xff] %v230
      %v232 = vld [vmem:[%s56 + $0x2b8] sm:$0xff]
      %233 = vst [vmem:[%s57 + $0x2b8] sm:$0xff] %v232
      %v234 = vld [vmem:[%s56 + $0x2c0] sm:$0xff]
      %235 = vst [vmem:[%s57 + $0x2c0] sm:$0xff] %v234
      %v236 = vld [vmem:[%s56 + $0x2c8] sm:$0xff]
      %237 = vst [vmem:[%s57 + $0x2c8] sm:$0xff] %v236
      %v238 = vld [vmem:[%s56 + $0x2d0] sm:$0xff]
      %239 = vst [vmem:[%s57 + $0x2d0] sm:$0xff] %v238
      %v240 = vld [vmem:[%s56 + $0x2d8] sm:$0xff]
      %241 = vst [vmem:[%s57 + $0x2d8] sm:$0xff] %v240
      %v242 = vld [vmem:[%s56 + $0x2e0] sm:$0xff]
      %243 = vst [vmem:[%s57 + $0x2e0] sm:$0xff] %v242
      %v244 = vld [vmem:[%s56 + $0x2e8] sm:$0xff]
      %245 = vst [vmem:[%s57 + $0x2e8] sm:$0xff] %v244
      %v246 = vld [vmem:[%s56 + $0x2f0] sm:$0xff]
      %247 = vst [vmem:[%s57 + $0x2f0] sm:$0xff] %v246
      %v248 = vld [vmem:[%s56 + $0x2f8] sm:$0xff]
      %249 = vst [vmem:[%s57 + $0x2f8] sm:$0xff] %v248
      %v250 = vld [vmem:[%s56 + $0x300] sm:$0xff]
      %251 = vst [vmem:[%s57 + $0x300] sm:$0xff] %v250
      %v252 = vld [vmem:[%s56 + $0x308] sm:$0xff]
      %253 = vst [vmem:[%s57 + $0x308] sm:$0xff] %v252
      %v254 = vld [vmem:[%s56 + $0x310] sm:$0xff]
      %255 = vst [vmem:[%s57 + $0x310] sm:$0xff] %v254
      %v256 = vld [vmem:[%s56 + $0x318] sm:$0xff]
      %257 = vst [vmem:[%s57 + $0x318] sm:$0xff] %v256
      %v258 = vld [vmem:[%s56 + $0x320] sm:$0xff]
      %259 = vst [vmem:[%s57 + $0x320] sm:$0xff] %v258
      %v260 = vld [vmem:[%s56 + $0x328] sm:$0xff]
      %261 = vst [vmem:[%s57 + $0x328] sm:$0xff] %v260
      %v262 = vld [vmem:[%s56 + $0x330] sm:$0xff]
      %263 = vst [vmem:[%s57 + $0x330] sm:$0xff] %v262
      %v264 = vld [vmem:[%s56 + $0x338] sm:$0xff]
      %265 = vst [vmem:[%s57 + $0x338] sm:$0xff] %v264
      %v266 = vld [vmem:[%s56 + $0x340] sm:$0xff]
      %267 = vst [vmem:[%s57 + $0x340] sm:$0xff] %v266
      %v268 = vld [vmem:[%s56 + $0x348] sm:$0xff]
      %269 = vst [vmem:[%s57 + $0x348] sm:$0xff] %v268
      %v270 = vld [vmem:[%s56 + $0x350] sm:$0xff]
      %271 = vst [vmem:[%s57 + $0x350] sm:$0xff] %v270
      %v272 = vld [vmem:[%s56 + $0x358] sm:$0xff]
      %273 = vst [vmem:[%s57 + $0x358] sm:$0xff] %v272
      %v274 = vld [vmem:[%s56 + $0x360] sm:$0xff]
      %275 = vst [vmem:[%s57 + $0x360] sm:$0xff] %v274
      %v276 = vld [vmem:[%s56 + $0x368] sm:$0xff]
      %277 = vst [vmem:[%s57 + $0x368] sm:$0xff] %v276
      %v278 = vld [vmem:[%s56 + $0x370] sm:$0xff]
      %279 = vst [vmem:[%s57 + $0x370] sm:$0xff] %v278
      %v280 = vld [vmem:[%s56 + $0x378] sm:$0xff]
      %281 = vst [vmem:[%s57 + $0x378] sm:$0xff] %v280
      %v282 = vld [vmem:[%s56 + $0x380] sm:$0xff]
      %283 = vst [vmem:[%s57 + $0x380] sm:$0xff] %v282
      %v284 = vld [vmem:[%s56 + $0x388] sm:$0xff]
      %285 = vst [vmem:[%s57 + $0x388] sm:$0xff] %v284
      %v286 = vld [vmem:[%s56 + $0x390] sm:$0xff]
      %287 = vst [vmem:[%s57 + $0x390] sm:$0xff] %v286
      %v288 = vld [vmem:[%s56 + $0x398] sm:$0xff]
      %289 = vst [vmem:[%s57 + $0x398] sm:$0xff] %v288
      %v290 = vld [vmem:[%s56 + $0x3a0] sm:$0xff]
      %291 = vst [vmem:[%s57 + $0x3a0] sm:$0xff] %v290
      %v292 = vld [vmem:[%s56 + $0x3a8] sm:$0xff]
      %293 = vst [vmem:[%s57 + $0x3a8] sm:$0xff] %v292
      %v294 = vld [vmem:[%s56 + $0x3b0] sm:$0xff]
      %295 = vst [vmem:[%s57 + $0x3b0] sm:$0xff] %v294
      %v296 = vld [vmem:[%s56 + $0x3b8] sm:$0xff]
      %297 = vst [vmem:[%s57 + $0x3b8] sm:$0xff] %v296
      %v298 = vld [vmem:[%s56 + $0x3c0] sm:$0xff]
      %299 = vst [vmem:[%s57 + $0x3c0] sm:$0xff] %v298
      %v300 = vld [vmem:[%s56 + $0x3c8] sm:$0xff]
      %301 = vst [vmem:[%s57 + $0x3c8] sm:$0xff] %v300
      %v302 = vld [vmem:[%s56 + $0x3d0] sm:$0xff]
      %303 = vst [vmem:[%s57 + $0x3d0] sm:$0xff] %v302
      %v304 = vld [vmem:[%s56 + $0x3d8] sm:$0xff]
      %305 = vst [vmem:[%s57 + $0x3d8] sm:$0xff] %v304
      %v306 = vld [vmem:[%s56 + $0x3e0] sm:$0xff]
      %307 = vst [vmem:[%s57 + $0x3e0] sm:$0xff] %v306
      %v308 = vld [vmem:[%s56 + $0x3e8] sm:$0xff]
      %309 = vst [vmem:[%s57 + $0x3e8] sm:$0xff] %v308
      %v310 = vld [vmem:[%s56 + $0x3f0] sm:$0xff]
      %311 = vst [vmem:[%s57 + $0x3f0] sm:$0xff] %v310
      %v312 = vld [vmem:[%s56 + $0x3f8] sm:$0xff]
      %313 = vst [vmem:[%s57 + $0x3f8] sm:$0xff] %v312
      %v314 = vld [vmem:[%s56 + $0x400] sm:$0xff]
      %315 = vst [vmem:[%s57 + $0x400] sm:$0xff] %v314
      %v316 = vld [vmem:[%s56 + $0x408] sm:$0xff]
      %317 = vst [vmem:[%s57 + $0x408] sm:$0xff] %v316
      %v318 = vld [vmem:[%s56 + $0x410] sm:$0xff]
      %319 = vst [vmem:[%s57 + $0x410] sm:$0xff] %v318
      %v320 = vld [vmem:[%s56 + $0x418] sm:$0xff]
      %321 = vst [vmem:[%s57 + $0x418] sm:$0xff] %v320
      %v322 = vld [vmem:[%s56 + $0x420] sm:$0xff]
      %323 = vst [vmem:[%s57 + $0x420] sm:$0xff] %v322
      %v324 = vld [vmem:[%s56 + $0x428] sm:$0xff]
      %325 = vst [vmem:[%s57 + $0x428] sm:$0xff] %v324
      %v326 = vld [vmem:[%s56 + $0x430] sm:$0xff]
      %327 = vst [vmem:[%s57 + $0x430] sm:$0xff] %v326
      %v328 = vld [vmem:[%s56 + $0x438] sm:$0xff]
      %329 = vst [vmem:[%s57 + $0x438] sm:$0xff] %v328
      %v330 = vld [vmem:[%s56 + $0x440] sm:$0xff]
      %331 = vst [vmem:[%s57 + $0x440] sm:$0xff] %v330
      %v332 = vld [vmem:[%s56 + $0x448] sm:$0xff]
      %333 = vst [vmem:[%s57 + $0x448] sm:$0xff] %v332
      %v334 = vld [vmem:[%s56 + $0x450] sm:$0xff]
      %335 = vst [vmem:[%s57 + $0x450] sm:$0xff] %v334
      %v336 = vld [vmem:[%s56 + $0x458] sm:$0xff]
      %337 = vst [vmem:[%s57 + $0x458] sm:$0xff] %v336
      %v338 = vld [vmem:[%s56 + $0x460] sm:$0xff]
      %339 = vst [vmem:[%s57 + $0x460] sm:$0xff] %v338
      %v340 = vld [vmem:[%s56 + $0x468] sm:$0xff]
      %341 = vst [vmem:[%s57 + $0x468] sm:$0xff] %v340
      %v342 = vld [vmem:[%s56 + $0x470] sm:$0xff]
      %343 = vst [vmem:[%s57 + $0x470] sm:$0xff] %v342
      %v344 = vld [vmem:[%s56 + $0x478] sm:$0xff]
      %345 = vst [vmem:[%s57 + $0x478] sm:$0xff] %v344
      %v346 = vld [vmem:[%s56 + $0x480] sm:$0xff]
      %347 = vst [vmem:[%s57 + $0x480] sm:$0xff] %v346
      %v348 = vld [vmem:[%s56 + $0x488] sm:$0xff]
      %349 = vst [vmem:[%s57 + $0x488] sm:$0xff] %v348
      %v350 = vld [vmem:[%s56 + $0x490] sm:$0xff]
      %351 = vst [vmem:[%s57 + $0x490] sm:$0xff] %v350
      %v352 = vld [vmem:[%s56 + $0x498] sm:$0xff]
      %353 = vst [vmem:[%s57 + $0x498] sm:$0xff] %v352
      %v354 = vld [vmem:[%s56 + $0x4a0] sm:$0xff]
      %355 = vst [vmem:[%s57 + $0x4a0] sm:$0xff] %v354
      %v356 = vld [vmem:[%s56 + $0x4a8] sm:$0xff]
      %357 = vst [vmem:[%s57 + $0x4a8] sm:$0xff] %v356
      %v358 = vld [vmem:[%s56 + $0x4b0] sm:$0xff]
      %359 = vst [vmem:[%s57 + $0x4b0] sm:$0xff] %v358
      %v360 = vld [vmem:[%s56 + $0x4b8] sm:$0xff]
      %361 = vst [vmem:[%s57 + $0x4b8] sm:$0xff] %v360
      %v362 = vld [vmem:[%s56 + $0x4c0] sm:$0xff]
      %363 = vst [vmem:[%s57 + $0x4c0] sm:$0xff] %v362
      %v364 = vld [vmem:[%s56 + $0x4c8] sm:$0xff]
      %365 = vst [vmem:[%s57 + $0x4c8] sm:$0xff] %v364
      %v366 = vld [vmem:[%s56 + $0x4d0] sm:$0xff]
      %367 = vst [vmem:[%s57 + $0x4d0] sm:$0xff] %v366
      %v368 = vld [vmem:[%s56 + $0x4d8] sm:$0xff]
      %369 = vst [vmem:[%s57 + $0x4d8] sm:$0xff] %v368
      %v370 = vld [vmem:[%s56 + $0x4e0] sm:$0xff]
      %371 = vst [vmem:[%s57 + $0x4e0] sm:$0xff] %v370
      %v372 = vld [vmem:[%s56 + $0x4e8] sm:$0xff]
      %373 = vst [vmem:[%s57 + $0x4e8] sm:$0xff] %v372
      %v374 = vld [vmem:[%s56 + $0x4f0] sm:$0xff]
      %375 = vst [vmem:[%s57 + $0x4f0] sm:$0xff] %v374
      %v376 = vld [vmem:[%s56 + $0x4f8] sm:$0xff]
      %377 = vst [vmem:[%s57 + $0x4f8] sm:$0xff] %v376
      %v378 = vld [vmem:[%s56 + $0x500] sm:$0xff]
      %379 = vst [vmem:[%s57 + $0x500] sm:$0xff] %v378
      %v380 = vld [vmem:[%s56 + $0x508] sm:$0xff]
      %381 = vst [vmem:[%s57 + $0x508] sm:$0xff] %v380
      %v382 = vld [vmem:[%s56 + $0x510] sm:$0xff]
      %383 = vst [vmem:[%s57 + $0x510] sm:$0xff] %v382
      %v384 = vld [vmem:[%s56 + $0x518] sm:$0xff]
      %385 = vst [vmem:[%s57 + $0x518] sm:$0xff] %v384
      %v386 = vld [vmem:[%s56 + $0x520] sm:$0xff]
      %387 = vst [vmem:[%s57 + $0x520] sm:$0xff] %v386
      %v388 = vld [vmem:[%s56 + $0x528] sm:$0xff]
      %389 = vst [vmem:[%s57 + $0x528] sm:$0xff] %v388
      %v390 = vld [vmem:[%s56 + $0x530] sm:$0xff]
      %391 = vst [vmem:[%s57 + $0x530] sm:$0xff] %v390
      %v392 = vld [vmem:[%s56 + $0x538] sm:$0xff]
      %393 = vst [vmem:[%s57 + $0x538] sm:$0xff] %v392
      %v394 = vld [vmem:[%s56 + $0x540] sm:$0xff]
      %395 = vst [vmem:[%s57 + $0x540] sm:$0xff] %v394
      %v396 = vld [vmem:[%s56 + $0x548] sm:$0xff]
      %397 = vst [vmem:[%s57 + $0x548] sm:$0xff] %v396
      %v398 = vld [vmem:[%s56 + $0x550] sm:$0xff]
      %399 = vst [vmem:[%s57 + $0x550] sm:$0xff] %v398
      %v400 = vld [vmem:[%s56 + $0x558] sm:$0xff]
      %401 = vst [vmem:[%s57 + $0x558] sm:$0xff] %v400
      %v402 = vld [vmem:[%s56 + $0x560] sm:$0xff]
      %403 = vst [vmem:[%s57 + $0x560] sm:$0xff] %v402
      %v404 = vld [vmem:[%s56 + $0x568] sm:$0xff]
      %405 = vst [vmem:[%s57 + $0x568] sm:$0xff] %v404
      %v406 = vld [vmem:[%s56 + $0x570] sm:$0xff]
      %407 = vst [vmem:[%s57 + $0x570] sm:$0xff] %v406
      %v408 = vld [vmem:[%s56 + $0x578] sm:$0xff]
      %409 = vst [vmem:[%s57 + $0x578] sm:$0xff] %v408
      %v410 = vld [vmem:[%s56 + $0x580] sm:$0xff]
      %411 = vst [vmem:[%s57 + $0x580] sm:$0xff] %v410
      %v412 = vld [vmem:[%s56 + $0x588] sm:$0xff]
      %413 = vst [vmem:[%s57 + $0x588] sm:$0xff] %v412
      %v414 = vld [vmem:[%s56 + $0x590] sm:$0xff]
      %415 = vst [vmem:[%s57 + $0x590] sm:$0xff] %v414
      %v416 = vld [vmem:[%s56 + $0x598] sm:$0xff]
      %417 = vst [vmem:[%s57 + $0x598] sm:$0xff] %v416
      %v418 = vld [vmem:[%s56 + $0x5a0] sm:$0xff]
      %419 = vst [vmem:[%s57 + $0x5a0] sm:$0xff] %v418
      %v420 = vld [vmem:[%s56 + $0x5a8] sm:$0xff]
      %421 = vst [vmem:[%s57 + $0x5a8] sm:$0xff] %v420
      %v422 = vld [vmem:[%s56 + $0x5b0] sm:$0xff]
      %423 = vst [vmem:[%s57 + $0x5b0] sm:$0xff] %v422
      %v424 = vld [vmem:[%s56 + $0x5b8] sm:$0xff]
      %425 = vst [vmem:[%s57 + $0x5b8] sm:$0xff] %v424
      %v426 = vld [vmem:[%s56 + $0x5c0] sm:$0xff]
      %427 = vst [vmem:[%s57 + $0x5c0] sm:$0xff] %v426
      %v428 = vld [vmem:[%s56 + $0x5c8] sm:$0xff]
      %429 = vst [vmem:[%s57 + $0x5c8] sm:$0xff] %v428
      %v430 = vld [vmem:[%s56 + $0x5d0] sm:$0xff]
      %431 = vst [vmem:[%s57 + $0x5d0] sm:$0xff] %v430
      %v432 = vld [vmem:[%s56 + $0x5d8] sm:$0xff]
      %433 = vst [vmem:[%s57 + $0x5d8] sm:$0xff] %v432
      %v434 = vld [vmem:[%s56 + $0x5e0] sm:$0xff]
      %435 = vst [vmem:[%s57 + $0x5e0] sm:$0xff] %v434
      %v436 = vld [vmem:[%s56 + $0x5e8] sm:$0xff]
      %437 = vst [vmem:[%s57 + $0x5e8] sm:$0xff] %v436
      %v438 = vld [vmem:[%s56 + $0x5f0] sm:$0xff]
      %439 = vst [vmem:[%s57 + $0x5f0] sm:$0xff] %v438
      %v440 = vld [vmem:[%s56 + $0x5f8] sm:$0xff]
      %441 = vst [vmem:[%s57 + $0x5f8] sm:$0xff] %v440
      %v442 = vld [vmem:[%s56 + $0x600] sm:$0xff]
      %443 = vst [vmem:[%s57 + $0x600] sm:$0xff] %v442
      %v444 = vld [vmem:[%s56 + $0x608] sm:$0xff]
      %445 = vst [vmem:[%s57 + $0x608] sm:$0xff] %v444
      %v446 = vld [vmem:[%s56 + $0x610] sm:$0xff]
      %447 = vst [vmem:[%s57 + $0x610] sm:$0xff] %v446
      %v448 = vld [vmem:[%s56 + $0x618] sm:$0xff]
      %449 = vst [vmem:[%s57 + $0x618] sm:$0xff] %v448
      %v450 = vld [vmem:[%s56 + $0x620] sm:$0xff]
      %451 = vst [vmem:[%s57 + $0x620] sm:$0xff] %v450
      %v452 = vld [vmem:[%s56 + $0x628] sm:$0xff]
      %453 = vst [vmem:[%s57 + $0x628] sm:$0xff] %v452
      %v454 = vld [vmem:[%s56 + $0x630] sm:$0xff]
      %455 = vst [vmem:[%s57 + $0x630] sm:$0xff] %v454
      %v456 = vld [vmem:[%s56 + $0x638] sm:$0xff]
      %457 = vst [vmem:[%s57 + $0x638] sm:$0xff] %v456
      %v458 = vld [vmem:[%s56 + $0x640] sm:$0xff]
      %459 = vst [vmem:[%s57 + $0x640] sm:$0xff] %v458
      %v460 = vld [vmem:[%s56 + $0x648] sm:$0xff]
      %461 = vst [vmem:[%s57 + $0x648] sm:$0xff] %v460
      %v462 = vld [vmem:[%s56 + $0x650] sm:$0xff]
      %463 = vst [vmem:[%s57 + $0x650] sm:$0xff] %v462
      %v464 = vld [vmem:[%s56 + $0x658] sm:$0xff]
      %465 = vst [vmem:[%s57 + $0x658] sm:$0xff] %v464
      %v466 = vld [vmem:[%s56 + $0x660] sm:$0xff]
      %467 = vst [vmem:[%s57 + $0x660] sm:$0xff] %v466
      %v468 = vld [vmem:[%s56 + $0x668] sm:$0xff]
      %469 = vst [vmem:[%s57 + $0x668] sm:$0xff] %v468
      %v470 = vld [vmem:[%s56 + $0x670] sm:$0xff]
      %471 = vst [vmem:[%s57 + $0x670] sm:$0xff] %v470
      %v472 = vld [vmem:[%s56 + $0x678] sm:$0xff]
      %473 = vst [vmem:[%s57 + $0x678] sm:$0xff] %v472
      %v474 = vld [vmem:[%s56 + $0x680] sm:$0xff]
      %475 = vst [vmem:[%s57 + $0x680] sm:$0xff] %v474
      %v476 = vld [vmem:[%s56 + $0x688] sm:$0xff]
      %477 = vst [vmem:[%s57 + $0x688] sm:$0xff] %v476
      %v478 = vld [vmem:[%s56 + $0x690] sm:$0xff]
      %479 = vst [vmem:[%s57 + $0x690] sm:$0xff] %v478
      %v480 = vld [vmem:[%s56 + $0x698] sm:$0xff]
      %481 = vst [vmem:[%s57 + $0x698] sm:$0xff] %v480
      %v482 = vld [vmem:[%s56 + $0x6a0] sm:$0xff]
      %483 = vst [vmem:[%s57 + $0x6a0] sm:$0xff] %v482
      %v484 = vld [vmem:[%s56 + $0x6a8] sm:$0xff]
      %485 = vst [vmem:[%s57 + $0x6a8] sm:$0xff] %v484
      %v486 = vld [vmem:[%s56 + $0x6b0] sm:$0xff]
      %487 = vst [vmem:[%s57 + $0x6b0] sm:$0xff] %v486
      %v488 = vld [vmem:[%s56 + $0x6b8] sm:$0xff]
      %489 = vst [vmem:[%s57 + $0x6b8] sm:$0xff] %v488
      %v490 = vld [vmem:[%s56 + $0x6c0] sm:$0xff]
      %491 = vst [vmem:[%s57 + $0x6c0] sm:$0xff] %v490
      %v492 = vld [vmem:[%s56 + $0x6c8] sm:$0xff]
      %493 = vst [vmem:[%s57 + $0x6c8] sm:$0xff] %v492
      %v494 = vld [vmem:[%s56 + $0x6d0] sm:$0xff]
      %495 = vst [vmem:[%s57 + $0x6d0] sm:$0xff] %v494
      %v496 = vld [vmem:[%s56 + $0x6d8] sm:$0xff]
      %497 = vst [vmem:[%s57 + $0x6d8] sm:$0xff] %v496
      %v498 = vld [vmem:[%s56 + $0x6e0] sm:$0xff]
      %499 = vst [vmem:[%s57 + $0x6e0] sm:$0xff] %v498
      %v500 = vld [vmem:[%s56 + $0x6e8] sm:$0xff]
      %501 = vst [vmem:[%s57 + $0x6e8] sm:$0xff] %v500
      %v502 = vld [vmem:[%s56 + $0x6f0] sm:$0xff]
      %503 = vst [vmem:[%s57 + $0x6f0] sm:$0xff] %v502
      %v504 = vld [vmem:[%s56 + $0x6f8] sm:$0xff]
      %505 = vst [vmem:[%s57 + $0x6f8] sm:$0xff] %v504
      %v506 = vld [vmem:[%s56 + $0x700] sm:$0xff]
      %507 = vst [vmem:[%s57 + $0x700] sm:$0xff] %v506
      %v508 = vld [vmem:[%s56 + $0x708] sm:$0xff]
      %509 = vst [vmem:[%s57 + $0x708] sm:$0xff] %v508
      %v510 = vld [vmem:[%s56 + $0x710] sm:$0xff]
      %511 = vst [vmem:[%s57 + $0x710] sm:$0xff] %v510
      %v512 = vld [vmem:[%s56 + $0x718] sm:$0xff]
      %513 = vst [vmem:[%s57 + $0x718] sm:$0xff] %v512
      %v514 = vld [vmem:[%s56 + $0x720] sm:$0xff]
      %515 = vst [vmem:[%s57 + $0x720] sm:$0xff] %v514
      %v516 = vld [vmem:[%s56 + $0x728] sm:$0xff]
      %517 = vst [vmem:[%s57 + $0x728] sm:$0xff] %v516
      %v518 = vld [vmem:[%s56 + $0x730] sm:$0xff]
      %519 = vst [vmem:[%s57 + $0x730] sm:$0xff] %v518
      %v520 = vld [vmem:[%s56 + $0x738] sm:$0xff]
      %521 = vst [vmem:[%s57 + $0x738] sm:$0xff] %v520
      %v522 = vld [vmem:[%s56 + $0x740] sm:$0xff]
      %523 = vst [vmem:[%s57 + $0x740] sm:$0xff] %v522
      %v524 = vld [vmem:[%s56 + $0x748] sm:$0xff]
      %525 = vst [vmem:[%s57 + $0x748] sm:$0xff] %v524
      %v526 = vld [vmem:[%s56 + $0x750] sm:$0xff]
      %527 = vst [vmem:[%s57 + $0x750] sm:$0xff] %v526
      %v528 = vld [vmem:[%s56 + $0x758] sm:$0xff]
      %529 = vst [vmem:[%s57 + $0x758] sm:$0xff] %v528
      %v530 = vld [vmem:[%s56 + $0x760] sm:$0xff]
      %531 = vst [vmem:[%s57 + $0x760] sm:$0xff] %v530
      %v532 = vld [vmem:[%s56 + $0x768] sm:$0xff]
      %533 = vst [vmem:[%s57 + $0x768] sm:$0xff] %v532
      %v534 = vld [vmem:[%s56 + $0x770] sm:$0xff]
      %535 = vst [vmem:[%s57 + $0x770] sm:$0xff] %v534
      %v536 = vld [vmem:[%s56 + $0x778] sm:$0xff]
      %537 = vst [vmem:[%s57 + $0x778] sm:$0xff] %v536
      %v538 = vld [vmem:[%s56 + $0x780] sm:$0xff]
      %539 = vst [vmem:[%s57 + $0x780] sm:$0xff] %v538
      %v540 = vld [vmem:[%s56 + $0x788] sm:$0xff]
      %541 = vst [vmem:[%s57 + $0x788] sm:$0xff] %v540
      %v542 = vld [vmem:[%s56 + $0x790] sm:$0xff]
      %543 = vst [vmem:[%s57 + $0x790] sm:$0xff] %v542
      %v544 = vld [vmem:[%s56 + $0x798] sm:$0xff]
      %545 = vst [vmem:[%s57 + $0x798] sm:$0xff] %v544
      %v546 = vld [vmem:[%s56 + $0x7a0] sm:$0xff]
      %547 = vst [vmem:[%s57 + $0x7a0] sm:$0xff] %v546
      %v548 = vld [vmem:[%s56 + $0x7a8] sm:$0xff]
      %549 = vst [vmem:[%s57 + $0x7a8] sm:$0xff] %v548
      %v550 = vld [vmem:[%s56 + $0x7b0] sm:$0xff]
      %551 = vst [vmem:[%s57 + $0x7b0] sm:$0xff] %v550
      %v552 = vld [vmem:[%s56 + $0x7b8] sm:$0xff]
      %553 = vst [vmem:[%s57 + $0x7b8] sm:$0xff] %v552
      %v554 = vld [vmem:[%s56 + $0x7c0] sm:$0xff]
      %555 = vst [vmem:[%s57 + $0x7c0] sm:$0xff] %v554
      %v556 = vld [vmem:[%s56 + $0x7c8] sm:$0xff]
      %557 = vst [vmem:[%s57 + $0x7c8] sm:$0xff] %v556
      %v558 = vld [vmem:[%s56 + $0x7d0] sm:$0xff]
      %559 = vst [vmem:[%s57 + $0x7d0] sm:$0xff] %v558
      %v560 = vld [vmem:[%s56 + $0x7d8] sm:$0xff]
      %561 = vst [vmem:[%s57 + $0x7d8] sm:$0xff] %v560
      %v562 = vld [vmem:[%s56 + $0x7e0] sm:$0xff]
      %563 = vst [vmem:[%s57 + $0x7e0] sm:$0xff] %v562
      %v564 = vld [vmem:[%s56 + $0x7e8] sm:$0xff]
      %565 = vst [vmem:[%s57 + $0x7e8] sm:$0xff] %v564
      %v566 = vld [vmem:[%s56 + $0x7f0] sm:$0xff]
      %567 = vst [vmem:[%s57 + $0x7f0] sm:$0xff] %v566
      %v568 = vld [vmem:[%s56 + $0x7f8] sm:$0xff]
      %569 = vst [vmem:[%s57 + $0x7f8] sm:$0xff] %v568
    $region62: #{cvae_forward.1} parent=56 // loop_footer
      %s55 = sadd.s32 1, %s51
    $region63: #{cvae_forward.1} parent=56 // loop_footer_branch
      %50 = sbr.rel target = $region59
    $region64: #{cvae_forward.1} parent=56 // loop_exit
      _
  $region57: #{cvae_forward.1} parent=0 // pred_fallthru
    _
  // Predicated region
  $region65: #{cvae_forward.1} parent=0 // pred_check
    _
  $region66: #{cvae_forward.1} parent=0 // pred_check_branch
    %571 = sbr.rel target = $region68
  $region67: #{cvae_forward.1} parent=0 // pred_region
    _
  $region68: #{cvae_forward.1} parent=0 // pred_fallthru
    _
  // Predicated region
  $region69: #{cvae_forward.1} parent=0 // pred_check
    _
  $region70: #{cvae_forward.1} parent=0 // pred_check_branch
    %574 = sbr.rel (0) target = $region72
  $region71: #{cvae_forward.1} parent=0 // pred_region
    %575 = vsyncadd [#allocation3], 32768
  $region72: #{cvae_forward.1} parent=0 // pred_fallthru
    _
  %v576 = vld [vmem:[%s0] sm:$0xff]
  %v577 = vld [vmem:[%s0 + $0x8] sm:$0xff]
  %580 = vst [vmem:[#allocation1] ss:$4 sm:$0xff] %v576
  %s581 = scalar_lea.vmem [#allocation1], 32
  %582 = vst [vmem:[%s581] ss:$4 sm:$0xff] %v577
  %v583 = vld.sshfl [vmem:[#allocation1] sm:$0xff pattern:$0x73625140]
  %v584 = vld.sshfl [vmem:[#allocation1 + $0x8] sm:$0xff pattern:$0x73625140]
  %v585 = vld.sshfl [vmem:[#allocation1 + $0x10] sm:$0xff pattern:$0x73625140]
  %v586 = vld.sshfl [vmem:[#allocation1 + $0x18] sm:$0xff pattern:$0x73625140]
  %v587 = vld.sshfl [vmem:[#allocation1 + $0x20] sm:$0xff pattern:$0x73625140]
  %v588 = vld.sshfl [vmem:[#allocation1 + $0x28] sm:$0xff pattern:$0x73625140]
  %v589 = vld.sshfl [vmem:[#allocation1 + $0x30] sm:$0xff pattern:$0x73625140]
  %v590 = vld.sshfl [vmem:[#allocation1 + $0x38] sm:$0xff pattern:$0x73625140]
  %v599 = vpack.c.bf16 %v583, %v583
  %v600 = vpack.c.bf16 %v584, %v584
  %v601 = vpack.c.bf16 %v585, %v585
  %v602 = vpack.c.bf16 %v586, %v586
  %v603 = vpack.c.bf16 %v587, %v587
  %v604 = vpack.c.bf16 %v588, %v588
  %v605 = vpack.c.bf16 %v589, %v589
  %v606 = vpack.c.bf16 %v590, %v590
  %v607 = vld [vmem:[%s2] sm:$0xff]
  %v608 = vld [vmem:[%s2 + $0x8] sm:$0xff]
  %v609 = vld [vmem:[%s2 + $0x10] sm:$0xff]
  %v610 = vld [vmem:[%s2 + $0x18] sm:$0xff]
  %v611 = vld [vmem:[%s2 + $0x20] sm:$0xff]
  %v612 = vld [vmem:[%s2 + $0x28] sm:$0xff]
  %v613 = vld [vmem:[%s2 + $0x30] sm:$0xff]
  %v614 = vld [vmem:[%s2 + $0x38] sm:$0xff]
  %v615 = vld [vmem:[%s2 + $0x40] sm:$0xff]
  %v616 = vld [vmem:[%s2 + $0x48] sm:$0xff]
  %v617 = vld [vmem:[%s2 + $0x50] sm:$0xff]
  %v618 = vld [vmem:[%s2 + $0x58] sm:$0xff]
  %v619 = vld [vmem:[%s2 + $0x60] sm:$0xff]
  %v620 = vld [vmem:[%s2 + $0x68] sm:$0xff]
  %v621 = vld [vmem:[%s2 + $0x70] sm:$0xff]
  %v622 = vld [vmem:[%s2 + $0x78] sm:$0xff]
  %v623 = vld [vmem:[%s2 + $0x80] sm:$0xff]
  %v624 = vld [vmem:[%s2 + $0x88] sm:$0xff]
  %v625 = vld [vmem:[%s2 + $0x90] sm:$0xff]
  %v626 = vld [vmem:[%s2 + $0x98] sm:$0xff]
  %v627 = vld [vmem:[%s2 + $0xa0] sm:$0xff]
  %v628 = vld [vmem:[%s2 + $0xa8] sm:$0xff]
  %v629 = vld [vmem:[%s2 + $0xb0] sm:$0xff]
  %v630 = vld [vmem:[%s2 + $0xb8] sm:$0xff]
  %v631 = vld [vmem:[%s2 + $0xc0] sm:$0xff]
  %v632 = vld [vmem:[%s2 + $0xc8] sm:$0xff]
  %v633 = vld [vmem:[%s2 + $0xd0] sm:$0xff]
  %v634 = vld [vmem:[%s2 + $0xd8] sm:$0xff]
  %v635 = vld [vmem:[%s2 + $0xe0] sm:$0xff]
  %v636 = vld [vmem:[%s2 + $0xe8] sm:$0xff]
  %v637 = vld [vmem:[%s2 + $0xf0] sm:$0xff]
  %v638 = vld [vmem:[%s2 + $0xf8] sm:$0xff]
  %v639 = vld [vmem:[%s2 + $0x100] sm:$0xff]
  %v640 = vld [vmem:[%s2 + $0x108] sm:$0xff]
  %v641 = vld [vmem:[%s2 + $0x110] sm:$0xff]
  %v642 = vld [vmem:[%s2 + $0x118] sm:$0xff]
  %v643 = vld [vmem:[%s2 + $0x120] sm:$0xff]
  %v644 = vld [vmem:[%s2 + $0x128] sm:$0xff]
  %v645 = vld [vmem:[%s2 + $0x130] sm:$0xff]
  %v646 = vld [vmem:[%s2 + $0x138] sm:$0xff]
  %v647 = vld [vmem:[%s2 + $0x140] sm:$0xff]
  %v648 = vld [vmem:[%s2 + $0x148] sm:$0xff]
  %v649 = vld [vmem:[%s2 + $0x150] sm:$0xff]
  %v650 = vld [vmem:[%s2 + $0x158] sm:$0xff]
  %v651 = vld [vmem:[%s2 + $0x160] sm:$0xff]
  %v652 = vld [vmem:[%s2 + $0x168] sm:$0xff]
  %v653 = vld [vmem:[%s2 + $0x170] sm:$0xff]
  %v654 = vld [vmem:[%s2 + $0x178] sm:$0xff]
  %v655 = vld [vmem:[%s2 + $0x180] sm:$0xff]
  %v656 = vld [vmem:[%s2 + $0x188] sm:$0xff]
  %v657 = vld [vmem:[%s2 + $0x190] sm:$0xff]
  %v658 = vld [vmem:[%s2 + $0x198] sm:$0xff]
  %v659 = vld [vmem:[%s2 + $0x1a0] sm:$0xff]
  %v660 = vld [vmem:[%s2 + $0x1a8] sm:$0xff]
  %v661 = vld [vmem:[%s2 + $0x1b0] sm:$0xff]
  %v662 = vld [vmem:[%s2 + $0x1b8] sm:$0xff]
  %v663 = vld [vmem:[%s2 + $0x1c0] sm:$0xff]
  %v664 = vld [vmem:[%s2 + $0x1c8] sm:$0xff]
  %v665 = vld [vmem:[%s2 + $0x1d0] sm:$0xff]
  %v666 = vld [vmem:[%s2 + $0x1d8] sm:$0xff]
  %v667 = vld [vmem:[%s2 + $0x1e0] sm:$0xff]
  %v668 = vld [vmem:[%s2 + $0x1e8] sm:$0xff]
  %v669 = vld [vmem:[%s2 + $0x1f0] sm:$0xff]
  %v670 = vld [vmem:[%s2 + $0x1f8] sm:$0xff]
  %v671 = vld [vmem:[%s2 + $0x200] sm:$0xff]
  %v672 = vld [vmem:[%s2 + $0x208] sm:$0xff]
  %v673 = vld [vmem:[%s2 + $0x210] sm:$0xff]
  %v674 = vld [vmem:[%s2 + $0x218] sm:$0xff]
  %v675 = vld [vmem:[%s2 + $0x220] sm:$0xff]
  %v676 = vld [vmem:[%s2 + $0x228] sm:$0xff]
  %v677 = vld [vmem:[%s2 + $0x230] sm:$0xff]
  %v678 = vld [vmem:[%s2 + $0x238] sm:$0xff]
  %v679 = vld [vmem:[%s2 + $0x240] sm:$0xff]
  %v680 = vld [vmem:[%s2 + $0x248] sm:$0xff]
  %v681 = vld [vmem:[%s2 + $0x250] sm:$0xff]
  %v682 = vld [vmem:[%s2 + $0x258] sm:$0xff]
  %v683 = vld [vmem:[%s2 + $0x260] sm:$0xff]
  %v684 = vld [vmem:[%s2 + $0x268] sm:$0xff]
  %v685 = vld [vmem:[%s2 + $0x270] sm:$0xff]
  %v686 = vld [vmem:[%s2 + $0x278] sm:$0xff]
  %v687 = vld [vmem:[%s2 + $0x280] sm:$0xff]
  %v688 = vld [vmem:[%s2 + $0x288] sm:$0xff]
  %v689 = vld [vmem:[%s2 + $0x290] sm:$0xff]
  %v690 = vld [vmem:[%s2 + $0x298] sm:$0xff]
  %v691 = vld [vmem:[%s2 + $0x2a0] sm:$0xff]
  %v692 = vld [vmem:[%s2 + $0x2a8] sm:$0xff]
  %v693 = vld [vmem:[%s2 + $0x2b0] sm:$0xff]
  %v694 = vld [vmem:[%s2 + $0x2b8] sm:$0xff]
  %v695 = vld [vmem:[%s2 + $0x2c0] sm:$0xff]
  %v696 = vld [vmem:[%s2 + $0x2c8] sm:$0xff]
  %v697 = vld [vmem:[%s2 + $0x2d0] sm:$0xff]
  %v698 = vld [vmem:[%s2 + $0x2d8] sm:$0xff]
  %v699 = vld [vmem:[%s2 + $0x2e0] sm:$0xff]
  %v700 = vld [vmem:[%s2 + $0x2e8] sm:$0xff]
  %v701 = vld [vmem:[%s2 + $0x2f0] sm:$0xff]
  %v702 = vld [vmem:[%s2 + $0x2f8] sm:$0xff]
  %v703 = vld [vmem:[%s2 + $0x300] sm:$0xff]
  %v704 = vld [vmem:[%s2 + $0x308] sm:$0xff]
  %v705 = vld [vmem:[%s2 + $0x310] sm:$0xff]
  %v706 = vld [vmem:[%s2 + $0x318] sm:$0xff]
  %v707 = vld [vmem:[%s2 + $0x320] sm:$0xff]
  %v708 = vld [vmem:[%s2 + $0x328] sm:$0xff]
  %v709 = vld [vmem:[%s2 + $0x330] sm:$0xff]
  %v710 = vld [vmem:[%s2 + $0x338] sm:$0xff]
  %v711 = vld [vmem:[%s2 + $0x340] sm:$0xff]
  %v712 = vld [vmem:[%s2 + $0x348] sm:$0xff]
  %v713 = vld [vmem:[%s2 + $0x350] sm:$0xff]
  %v714 = vld [vmem:[%s2 + $0x358] sm:$0xff]
  %v715 = vld [vmem:[%s2 + $0x360] sm:$0xff]
  %v716 = vld [vmem:[%s2 + $0x368] sm:$0xff]
  %v717 = vld [vmem:[%s2 + $0x370] sm:$0xff]
  %v718 = vld [vmem:[%s2 + $0x378] sm:$0xff]
  %v719 = vld [vmem:[%s2 + $0x380] sm:$0xff]
  %v720 = vld [vmem:[%s2 + $0x388] sm:$0xff]
  %v721 = vld [vmem:[%s2 + $0x390] sm:$0xff]
  %v722 = vld [vmem:[%s2 + $0x398] sm:$0xff]
  %v723 = vld [vmem:[%s2 + $0x3a0] sm:$0xff]
  %v724 = vld [vmem:[%s2 + $0x3a8] sm:$0xff]
  %v725 = vld [vmem:[%s2 + $0x3b0] sm:$0xff]
  %v726 = vld [vmem:[%s2 + $0x3b8] sm:$0xff]
  %v727 = vld [vmem:[%s2 + $0x3c0] sm:$0xff]
  %v728 = vld [vmem:[%s2 + $0x3c8] sm:$0xff]
  %v729 = vld [vmem:[%s2 + $0x3d0] sm:$0xff]
  %v730 = vld [vmem:[%s2 + $0x3d8] sm:$0xff]
  %v731 = vld [vmem:[%s2 + $0x3e0] sm:$0xff]
  %v732 = vld [vmem:[%s2 + $0x3e8] sm:$0xff]
  %v733 = vld [vmem:[%s2 + $0x3f0] sm:$0xff]
  %v734 = vld [vmem:[%s2 + $0x3f8] sm:$0xff]
  %v735 = vld [vmem:[%s2 + $0x400] sm:$0xff]
  %v736 = vld [vmem:[%s2 + $0x408] sm:$0xff]
  %v737 = vld [vmem:[%s2 + $0x410] sm:$0xff]
  %v738 = vld [vmem:[%s2 + $0x418] sm:$0xff]
  %v739 = vld [vmem:[%s2 + $0x420] sm:$0xff]
  %v740 = vld [vmem:[%s2 + $0x428] sm:$0xff]
  %v741 = vld [vmem:[%s2 + $0x430] sm:$0xff]
  %v742 = vld [vmem:[%s2 + $0x438] sm:$0xff]
  %v743 = vld [vmem:[%s2 + $0x440] sm:$0xff]
  %v744 = vld [vmem:[%s2 + $0x448] sm:$0xff]
  %v745 = vld [vmem:[%s2 + $0x450] sm:$0xff]
  %v746 = vld [vmem:[%s2 + $0x458] sm:$0xff]
  %v747 = vld [vmem:[%s2 + $0x460] sm:$0xff]
  %v748 = vld [vmem:[%s2 + $0x468] sm:$0xff]
  %v749 = vld [vmem:[%s2 + $0x470] sm:$0xff]
  %v750 = vld [vmem:[%s2 + $0x478] sm:$0xff]
  %v751 = vld [vmem:[%s2 + $0x480] sm:$0xff]
  %v752 = vld [vmem:[%s2 + $0x488] sm:$0xff]
  %v753 = vld [vmem:[%s2 + $0x490] sm:$0xff]
  %v754 = vld [vmem:[%s2 + $0x498] sm:$0xff]
  %v755 = vld [vmem:[%s2 + $0x4a0] sm:$0xff]
  %v756 = vld [vmem:[%s2 + $0x4a8] sm:$0xff]
  %v757 = vld [vmem:[%s2 + $0x4b0] sm:$0xff]
  %v758 = vld [vmem:[%s2 + $0x4b8] sm:$0xff]
  %v759 = vld [vmem:[%s2 + $0x4c0] sm:$0xff]
  %v760 = vld [vmem:[%s2 + $0x4c8] sm:$0xff]
  %v761 = vld [vmem:[%s2 + $0x4d0] sm:$0xff]
  %v762 = vld [vmem:[%s2 + $0x4d8] sm:$0xff]
  %v763 = vld [vmem:[%s2 + $0x4e0] sm:$0xff]
  %v764 = vld [vmem:[%s2 + $0x4e8] sm:$0xff]
  %v765 = vld [vmem:[%s2 + $0x4f0] sm:$0xff]
  %v766 = vld [vmem:[%s2 + $0x4f8] sm:$0xff]
  %v767 = vld [vmem:[%s2 + $0x500] sm:$0xff]
  %v768 = vld [vmem:[%s2 + $0x508] sm:$0xff]
  %v769 = vld [vmem:[%s2 + $0x510] sm:$0xff]
  %v770 = vld [vmem:[%s2 + $0x518] sm:$0xff]
  %v771 = vld [vmem:[%s2 + $0x520] sm:$0xff]
  %v772 = vld [vmem:[%s2 + $0x528] sm:$0xff]
  %v773 = vld [vmem:[%s2 + $0x530] sm:$0xff]
  %v774 = vld [vmem:[%s2 + $0x538] sm:$0xff]
  %v775 = vld [vmem:[%s2 + $0x540] sm:$0xff]
  %v776 = vld [vmem:[%s2 + $0x548] sm:$0xff]
  %v777 = vld [vmem:[%s2 + $0x550] sm:$0xff]
  %v778 = vld [vmem:[%s2 + $0x558] sm:$0xff]
  %v779 = vld [vmem:[%s2 + $0x560] sm:$0xff]
  %v780 = vld [vmem:[%s2 + $0x568] sm:$0xff]
  %v781 = vld [vmem:[%s2 + $0x570] sm:$0xff]
  %v782 = vld [vmem:[%s2 + $0x578] sm:$0xff]
  %v783 = vld [vmem:[%s2 + $0x580] sm:$0xff]
  %v784 = vld [vmem:[%s2 + $0x588] sm:$0xff]
  %v785 = vld [vmem:[%s2 + $0x590] sm:$0xff]
  %v786 = vld [vmem:[%s2 + $0x598] sm:$0xff]
  %v787 = vld [vmem:[%s2 + $0x5a0] sm:$0xff]
  %v788 = vld [vmem:[%s2 + $0x5a8] sm:$0xff]
  %v789 = vld [vmem:[%s2 + $0x5b0] sm:$0xff]
  %v790 = vld [vmem:[%s2 + $0x5b8] sm:$0xff]
  %v791 = vld [vmem:[%s2 + $0x5c0] sm:$0xff]
  %v792 = vld [vmem:[%s2 + $0x5c8] sm:$0xff]
  %v793 = vld [vmem:[%s2 + $0x5d0] sm:$0xff]
  %v794 = vld [vmem:[%s2 + $0x5d8] sm:$0xff]
  %v795 = vld [vmem:[%s2 + $0x5e0] sm:$0xff]
  %v796 = vld [vmem:[%s2 + $0x5e8] sm:$0xff]
  %v797 = vld [vmem:[%s2 + $0x5f0] sm:$0xff]
  %v798 = vld [vmem:[%s2 + $0x5f8] sm:$0xff]
  %v799 = vld [vmem:[%s2 + $0x600] sm:$0xff]
  %v800 = vld [vmem:[%s2 + $0x608] sm:$0xff]
  %v801 = vld [vmem:[%s2 + $0x610] sm:$0xff]
  %v802 = vld [vmem:[%s2 + $0x618] sm:$0xff]
  %v803 = vld [vmem:[%s2 + $0x620] sm:$0xff]
  %v804 = vld [vmem:[%s2 + $0x628] sm:$0xff]
  %v805 = vld [vmem:[%s2 + $0x630] sm:$0xff]
  %v806 = vld [vmem:[%s2 + $0x638] sm:$0xff]
  %v807 = vld [vmem:[%s2 + $0x640] sm:$0xff]
  %v808 = vld [vmem:[%s2 + $0x648] sm:$0xff]
  %v809 = vld [vmem:[%s2 + $0x650] sm:$0xff]
  %v810 = vld [vmem:[%s2 + $0x658] sm:$0xff]
  %v811 = vld [vmem:[%s2 + $0x660] sm:$0xff]
  %v812 = vld [vmem:[%s2 + $0x668] sm:$0xff]
  %v813 = vld [vmem:[%s2 + $0x670] sm:$0xff]
  %v814 = vld [vmem:[%s2 + $0x678] sm:$0xff]
  %v815 = vld [vmem:[%s2 + $0x680] sm:$0xff]
  %v816 = vld [vmem:[%s2 + $0x688] sm:$0xff]
  %v817 = vld [vmem:[%s2 + $0x690] sm:$0xff]
  %v818 = vld [vmem:[%s2 + $0x698] sm:$0xff]
  %v819 = vld [vmem:[%s2 + $0x6a0] sm:$0xff]
  %v820 = vld [vmem:[%s2 + $0x6a8] sm:$0xff]
  %v821 = vld [vmem:[%s2 + $0x6b0] sm:$0xff]
  %v822 = vld [vmem:[%s2 + $0x6b8] sm:$0xff]
  %v823 = vld [vmem:[%s2 + $0x6c0] sm:$0xff]
  %v824 = vld [vmem:[%s2 + $0x6c8] sm:$0xff]
  %v825 = vld [vmem:[%s2 + $0x6d0] sm:$0xff]
  %v826 = vld [vmem:[%s2 + $0x6d8] sm:$0xff]
  %v827 = vld [vmem:[%s2 + $0x6e0] sm:$0xff]
  %v828 = vld [vmem:[%s2 + $0x6e8] sm:$0xff]
  %v829 = vld [vmem:[%s2 + $0x6f0] sm:$0xff]
  %v830 = vld [vmem:[%s2 + $0x6f8] sm:$0xff]
  %v831 = vld [vmem:[%s2 + $0x700] sm:$0xff]
  %v832 = vld [vmem:[%s2 + $0x708] sm:$0xff]
  %v833 = vld [vmem:[%s2 + $0x710] sm:$0xff]
  %v834 = vld [vmem:[%s2 + $0x718] sm:$0xff]
  %v835 = vld [vmem:[%s2 + $0x720] sm:$0xff]
  %v836 = vld [vmem:[%s2 + $0x728] sm:$0xff]
  %v837 = vld [vmem:[%s2 + $0x730] sm:$0xff]
  %v838 = vld [vmem:[%s2 + $0x738] sm:$0xff]
  %v839 = vld [vmem:[%s2 + $0x740] sm:$0xff]
  %v840 = vld [vmem:[%s2 + $0x748] sm:$0xff]
  %v841 = vld [vmem:[%s2 + $0x750] sm:$0xff]
  %v842 = vld [vmem:[%s2 + $0x758] sm:$0xff]
  %v843 = vld [vmem:[%s2 + $0x760] sm:$0xff]
  %v844 = vld [vmem:[%s2 + $0x768] sm:$0xff]
  %v845 = vld [vmem:[%s2 + $0x770] sm:$0xff]
  %v846 = vld [vmem:[%s2 + $0x778] sm:$0xff]
  %v847 = vld [vmem:[%s2 + $0x780] sm:$0xff]
  %v848 = vld [vmem:[%s2 + $0x788] sm:$0xff]
  %v849 = vld [vmem:[%s2 + $0x790] sm:$0xff]
  %v850 = vld [vmem:[%s2 + $0x798] sm:$0xff]
  %v851 = vld [vmem:[%s2 + $0x7a0] sm:$0xff]
  %v852 = vld [vmem:[%s2 + $0x7a8] sm:$0xff]
  %v853 = vld [vmem:[%s2 + $0x7b0] sm:$0xff]
  %v854 = vld [vmem:[%s2 + $0x7b8] sm:$0xff]
  %v855 = vld [vmem:[%s2 + $0x7c0] sm:$0xff]
  %v856 = vld [vmem:[%s2 + $0x7c8] sm:$0xff]
  %v857 = vld [vmem:[%s2 + $0x7d0] sm:$0xff]
  %v858 = vld [vmem:[%s2 + $0x7d8] sm:$0xff]
  %v859 = vld [vmem:[%s2 + $0x7e0] sm:$0xff]
  %v860 = vld [vmem:[%s2 + $0x7e8] sm:$0xff]
  %v861 = vld [vmem:[%s2 + $0x7f0] sm:$0xff]
  %v862 = vld [vmem:[%s2 + $0x7f8] sm:$0xff]
  %v863 = vld [vmem:[%s3] sm:$0xf]
  %v865 = vperm.slane %v863, 0
  %v866 = vperm.slane %v863, 1
  %v867 = vperm.slane %v863, 2
  %v868 = vperm.slane %v863, 3
  %v1129 = vunpack.c.l.b16 %v607
  %v1130 = vunpack.c.h.b16 %v607
  %v1131 = vunpack.c.l.b16 %v608
  %v1132 = vunpack.c.h.b16 %v608
  %v1133 = vunpack.c.l.b16 %v609
  %v1134 = vunpack.c.h.b16 %v609
  %v1135 = vunpack.c.l.b16 %v610
  %v1136 = vunpack.c.h.b16 %v610
  %v1137 = vunpack.c.l.b16 %v611
  %v1138 = vunpack.c.h.b16 %v611
  %v1139 = vunpack.c.l.b16 %v612
  %v1140 = vunpack.c.h.b16 %v612
  %v1141 = vunpack.c.l.b16 %v613
  %v1142 = vunpack.c.h.b16 %v613
  %v1143 = vunpack.c.l.b16 %v614
  %v1144 = vunpack.c.h.b16 %v614
  %v1145 = vunpack.c.l.b16 %v615
  %v1146 = vunpack.c.h.b16 %v615
  %v1147 = vunpack.c.l.b16 %v616
  %v1148 = vunpack.c.h.b16 %v616
  %v1149 = vunpack.c.l.b16 %v617
  %v1150 = vunpack.c.h.b16 %v617
  %v1151 = vunpack.c.l.b16 %v618
  %v1152 = vunpack.c.h.b16 %v618
  %v1153 = vunpack.c.l.b16 %v619
  %v1154 = vunpack.c.h.b16 %v619
  %v1155 = vunpack.c.l.b16 %v620
  %v1156 = vunpack.c.h.b16 %v620
  %v1157 = vunpack.c.l.b16 %v621
  %v1158 = vunpack.c.h.b16 %v621
  %v1159 = vunpack.c.l.b16 %v622
  %v1160 = vunpack.c.h.b16 %v622
  %v1161 = vunpack.c.l.b16 %v623
  %v1162 = vunpack.c.h.b16 %v623
  %v1163 = vunpack.c.l.b16 %v624
  %v1164 = vunpack.c.h.b16 %v624
  %v1165 = vunpack.c.l.b16 %v625
  %v1166 = vunpack.c.h.b16 %v625
  %v1167 = vunpack.c.l.b16 %v626
  %v1168 = vunpack.c.h.b16 %v626
  %v1169 = vunpack.c.l.b16 %v627
  %v1170 = vunpack.c.h.b16 %v627
  %v1171 = vunpack.c.l.b16 %v628
  %v1172 = vunpack.c.h.b16 %v628
  %v1173 = vunpack.c.l.b16 %v629
  %v1174 = vunpack.c.h.b16 %v629
  %v1175 = vunpack.c.l.b16 %v630
  %v1176 = vunpack.c.h.b16 %v630
  %v1177 = vunpack.c.l.b16 %v631
  %v1178 = vunpack.c.h.b16 %v631
  %v1179 = vunpack.c.l.b16 %v632
  %v1180 = vunpack.c.h.b16 %v632
  %v1181 = vunpack.c.l.b16 %v633
  %v1182 = vunpack.c.h.b16 %v633
  %v1183 = vunpack.c.l.b16 %v634
  %v1184 = vunpack.c.h.b16 %v634
  %v1185 = vunpack.c.l.b16 %v635
  %v1186 = vunpack.c.h.b16 %v635
  %v1187 = vunpack.c.l.b16 %v636
  %v1188 = vunpack.c.h.b16 %v636
  %v1189 = vunpack.c.l.b16 %v637
  %v1190 = vunpack.c.h.b16 %v637
  %v1191 = vunpack.c.l.b16 %v638
  %v1192 = vunpack.c.h.b16 %v638
  %v1193 = vunpack.c.l.b16 %v639
  %v1194 = vunpack.c.h.b16 %v639
  %v1195 = vunpack.c.l.b16 %v640
  %v1196 = vunpack.c.h.b16 %v640
  %v1197 = vunpack.c.l.b16 %v641
  %v1198 = vunpack.c.h.b16 %v641
  %v1199 = vunpack.c.l.b16 %v642
  %v1200 = vunpack.c.h.b16 %v642
  %v1201 = vunpack.c.l.b16 %v643
  %v1202 = vunpack.c.h.b16 %v643
  %v1203 = vunpack.c.l.b16 %v644
  %v1204 = vunpack.c.h.b16 %v644
  %v1205 = vunpack.c.l.b16 %v645
  %v1206 = vunpack.c.h.b16 %v645
  %v1207 = vunpack.c.l.b16 %v646
  %v1208 = vunpack.c.h.b16 %v646
  %v1209 = vunpack.c.l.b16 %v647
  %v1210 = vunpack.c.h.b16 %v647
  %v1211 = vunpack.c.l.b16 %v648
  %v1212 = vunpack.c.h.b16 %v648
  %v1213 = vunpack.c.l.b16 %v649
  %v1214 = vunpack.c.h.b16 %v649
  %v1215 = vunpack.c.l.b16 %v650
  %v1216 = vunpack.c.h.b16 %v650
  %v1217 = vunpack.c.l.b16 %v651
  %v1218 = vunpack.c.h.b16 %v651
  %v1219 = vunpack.c.l.b16 %v652
  %v1220 = vunpack.c.h.b16 %v652
  %v1221 = vunpack.c.l.b16 %v653
  %v1222 = vunpack.c.h.b16 %v653
  %v1223 = vunpack.c.l.b16 %v654
  %v1224 = vunpack.c.h.b16 %v654
  %v1225 = vunpack.c.l.b16 %v655
  %v1226 = vunpack.c.h.b16 %v655
  %v1227 = vunpack.c.l.b16 %v656
  %v1228 = vunpack.c.h.b16 %v656
  %v1229 = vunpack.c.l.b16 %v657
  %v1230 = vunpack.c.h.b16 %v657
  %v1231 = vunpack.c.l.b16 %v658
  %v1232 = vunpack.c.h.b16 %v658
  %v1233 = vunpack.c.l.b16 %v659
  %v1234 = vunpack.c.h.b16 %v659
  %v1235 = vunpack.c.l.b16 %v660
  %v1236 = vunpack.c.h.b16 %v660
  %v1237 = vunpack.c.l.b16 %v661
  %v1238 = vunpack.c.h.b16 %v661
  %v1239 = vunpack.c.l.b16 %v662
  %v1240 = vunpack.c.h.b16 %v662
  %v1241 = vunpack.c.l.b16 %v663
  %v1242 = vunpack.c.h.b16 %v663
  %v1243 = vunpack.c.l.b16 %v664
  %v1244 = vunpack.c.h.b16 %v664
  %v1245 = vunpack.c.l.b16 %v665
  %v1246 = vunpack.c.h.b16 %v665
  %v1247 = vunpack.c.l.b16 %v666
  %v1248 = vunpack.c.h.b16 %v666
  %v1249 = vunpack.c.l.b16 %v667
  %v1250 = vunpack.c.h.b16 %v667
  %v1251 = vunpack.c.l.b16 %v668
  %v1252 = vunpack.c.h.b16 %v668
  %v1253 = vunpack.c.l.b16 %v669
  %v1254 = vunpack.c.h.b16 %v669
  %v1255 = vunpack.c.l.b16 %v670
  %v1256 = vunpack.c.h.b16 %v670
  %v1257 = vunpack.c.l.b16 %v671
  %v1258 = vunpack.c.h.b16 %v671
  %v1259 = vunpack.c.l.b16 %v672
  %v1260 = vunpack.c.h.b16 %v672
  %v1261 = vunpack.c.l.b16 %v673
  %v1262 = vunpack.c.h.b16 %v673
  %v1263 = vunpack.c.l.b16 %v674
  %v1264 = vunpack.c.h.b16 %v674
  %v1265 = vunpack.c.l.b16 %v675
  %v1266 = vunpack.c.h.b16 %v675
  %v1267 = vunpack.c.l.b16 %v676
  %v1268 = vunpack.c.h.b16 %v676
  %v1269 = vunpack.c.l.b16 %v677
  %v1270 = vunpack.c.h.b16 %v677
  %v1271 = vunpack.c.l.b16 %v678
  %v1272 = vunpack.c.h.b16 %v678
  %v1273 = vunpack.c.l.b16 %v679
  %v1274 = vunpack.c.h.b16 %v679
  %v1275 = vunpack.c.l.b16 %v680
  %v1276 = vunpack.c.h.b16 %v680
  %v1277 = vunpack.c.l.b16 %v681
  %v1278 = vunpack.c.h.b16 %v681
  %v1279 = vunpack.c.l.b16 %v682
  %v1280 = vunpack.c.h.b16 %v682
  %v1281 = vunpack.c.l.b16 %v683
  %v1282 = vunpack.c.h.b16 %v683
  %v1283 = vunpack.c.l.b16 %v684
  %v1284 = vunpack.c.h.b16 %v684
  %v1285 = vunpack.c.l.b16 %v685
  %v1286 = vunpack.c.h.b16 %v685
  %v1287 = vunpack.c.l.b16 %v686
  %v1288 = vunpack.c.h.b16 %v686
  %v1289 = vunpack.c.l.b16 %v687
  %v1290 = vunpack.c.h.b16 %v687
  %v1291 = vunpack.c.l.b16 %v688
  %v1292 = vunpack.c.h.b16 %v688
  %v1293 = vunpack.c.l.b16 %v689
  %v1294 = vunpack.c.h.b16 %v689
  %v1295 = vunpack.c.l.b16 %v690
  %v1296 = vunpack.c.h.b16 %v690
  %v1297 = vunpack.c.l.b16 %v691
  %v1298 = vunpack.c.h.b16 %v691
  %v1299 = vunpack.c.l.b16 %v692
  %v1300 = vunpack.c.h.b16 %v692
  %v1301 = vunpack.c.l.b16 %v693
  %v1302 = vunpack.c.h.b16 %v693
  %v1303 = vunpack.c.l.b16 %v694
  %v1304 = vunpack.c.h.b16 %v694
  %v1305 = vunpack.c.l.b16 %v695
  %v1306 = vunpack.c.h.b16 %v695
  %v1307 = vunpack.c.l.b16 %v696
  %v1308 = vunpack.c.h.b16 %v696
  %v1309 = vunpack.c.l.b16 %v697
  %v1310 = vunpack.c.h.b16 %v697
  %v1311 = vunpack.c.l.b16 %v698
  %v1312 = vunpack.c.h.b16 %v698
  %v1313 = vunpack.c.l.b16 %v699
  %v1314 = vunpack.c.h.b16 %v699
  %v1315 = vunpack.c.l.b16 %v700
  %v1316 = vunpack.c.h.b16 %v700
  %v1317 = vunpack.c.l.b16 %v701
  %v1318 = vunpack.c.h.b16 %v701
  %v1319 = vunpack.c.l.b16 %v702
  %v1320 = vunpack.c.h.b16 %v702
  %v1321 = vunpack.c.l.b16 %v703
  %v1322 = vunpack.c.h.b16 %v703
  %v1323 = vunpack.c.l.b16 %v704
  %v1324 = vunpack.c.h.b16 %v704
  %v1325 = vunpack.c.l.b16 %v705
  %v1326 = vunpack.c.h.b16 %v705
  %v1327 = vunpack.c.l.b16 %v706
  %v1328 = vunpack.c.h.b16 %v706
  %v1329 = vunpack.c.l.b16 %v707
  %v1330 = vunpack.c.h.b16 %v707
  %v1331 = vunpack.c.l.b16 %v708
  %v1332 = vunpack.c.h.b16 %v708
  %v1333 = vunpack.c.l.b16 %v709
  %v1334 = vunpack.c.h.b16 %v709
  %v1335 = vunpack.c.l.b16 %v710
  %v1336 = vunpack.c.h.b16 %v710
  %v1337 = vunpack.c.l.b16 %v711
  %v1338 = vunpack.c.h.b16 %v711
  %v1339 = vunpack.c.l.b16 %v712
  %v1340 = vunpack.c.h.b16 %v712
  %v1341 = vunpack.c.l.b16 %v713
  %v1342 = vunpack.c.h.b16 %v713
  %v1343 = vunpack.c.l.b16 %v714
  %v1344 = vunpack.c.h.b16 %v714
  %v1345 = vunpack.c.l.b16 %v715
  %v1346 = vunpack.c.h.b16 %v715
  %v1347 = vunpack.c.l.b16 %v716
  %v1348 = vunpack.c.h.b16 %v716
  %v1349 = vunpack.c.l.b16 %v717
  %v1350 = vunpack.c.h.b16 %v717
  %v1351 = vunpack.c.l.b16 %v718
  %v1352 = vunpack.c.h.b16 %v718
  %v1353 = vunpack.c.l.b16 %v719
  %v1354 = vunpack.c.h.b16 %v719
  %v1355 = vunpack.c.l.b16 %v720
  %v1356 = vunpack.c.h.b16 %v720
  %v1357 = vunpack.c.l.b16 %v721
  %v1358 = vunpack.c.h.b16 %v721
  %v1359 = vunpack.c.l.b16 %v722
  %v1360 = vunpack.c.h.b16 %v722
  %v1361 = vunpack.c.l.b16 %v723
  %v1362 = vunpack.c.h.b16 %v723
  %v1363 = vunpack.c.l.b16 %v724
  %v1364 = vunpack.c.h.b16 %v724
  %v1365 = vunpack.c.l.b16 %v725
  %v1366 = vunpack.c.h.b16 %v725
  %v1367 = vunpack.c.l.b16 %v726
  %v1368 = vunpack.c.h.b16 %v726
  %v1369 = vunpack.c.l.b16 %v727
  %v1370 = vunpack.c.h.b16 %v727
  %v1371 = vunpack.c.l.b16 %v728
  %v1372 = vunpack.c.h.b16 %v728
  %v1373 = vunpack.c.l.b16 %v729
  %v1374 = vunpack.c.h.b16 %v729
  %v1375 = vunpack.c.l.b16 %v730
  %v1376 = vunpack.c.h.b16 %v730
  %v1377 = vunpack.c.l.b16 %v731
  %v1378 = vunpack.c.h.b16 %v731
  %v1379 = vunpack.c.l.b16 %v732
  %v1380 = vunpack.c.h.b16 %v732
  %v1381 = vunpack.c.l.b16 %v733
  %v1382 = vunpack.c.h.b16 %v733
  %v1383 = vunpack.c.l.b16 %v734
  %v1384 = vunpack.c.h.b16 %v734
  %v1385 = vunpack.c.l.b16 %v735
  %v1386 = vunpack.c.h.b16 %v735
  %v1387 = vunpack.c.l.b16 %v736
  %v1388 = vunpack.c.h.b16 %v736
  %v1389 = vunpack.c.l.b16 %v737
  %v1390 = vunpack.c.h.b16 %v737
  %v1391 = vunpack.c.l.b16 %v738
  %v1392 = vunpack.c.h.b16 %v738
  %v1393 = vunpack.c.l.b16 %v739
  %v1394 = vunpack.c.h.b16 %v739
  %v1395 = vunpack.c.l.b16 %v740
  %v1396 = vunpack.c.h.b16 %v740
  %v1397 = vunpack.c.l.b16 %v741
  %v1398 = vunpack.c.h.b16 %v741
  %v1399 = vunpack.c.l.b16 %v742
  %v1400 = vunpack.c.h.b16 %v742
  %v1401 = vunpack.c.l.b16 %v743
  %v1402 = vunpack.c.h.b16 %v743
  %v1403 = vunpack.c.l.b16 %v744
  %v1404 = vunpack.c.h.b16 %v744
  %v1405 = vunpack.c.l.b16 %v745
  %v1406 = vunpack.c.h.b16 %v745
  %v1407 = vunpack.c.l.b16 %v746
  %v1408 = vunpack.c.h.b16 %v746
  %v1409 = vunpack.c.l.b16 %v747
  %v1410 = vunpack.c.h.b16 %v747
  %v1411 = vunpack.c.l.b16 %v748
  %v1412 = vunpack.c.h.b16 %v748
  %v1413 = vunpack.c.l.b16 %v749
  %v1414 = vunpack.c.h.b16 %v749
  %v1415 = vunpack.c.l.b16 %v750
  %v1416 = vunpack.c.h.b16 %v750
  %v1417 = vunpack.c.l.b16 %v751
  %v1418 = vunpack.c.h.b16 %v751
  %v1419 = vunpack.c.l.b16 %v752
  %v1420 = vunpack.c.h.b16 %v752
  %v1421 = vunpack.c.l.b16 %v753
  %v1422 = vunpack.c.h.b16 %v753
  %v1423 = vunpack.c.l.b16 %v754
  %v1424 = vunpack.c.h.b16 %v754
  %v1425 = vunpack.c.l.b16 %v755
  %v1426 = vunpack.c.h.b16 %v755
  %v1427 = vunpack.c.l.b16 %v756
  %v1428 = vunpack.c.h.b16 %v756
  %v1429 = vunpack.c.l.b16 %v757
  %v1430 = vunpack.c.h.b16 %v757
  %v1431 = vunpack.c.l.b16 %v758
  %v1432 = vunpack.c.h.b16 %v758
  %v1433 = vunpack.c.l.b16 %v759
  %v1434 = vunpack.c.h.b16 %v759
  %v1435 = vunpack.c.l.b16 %v760
  %v1436 = vunpack.c.h.b16 %v760
  %v1437 = vunpack.c.l.b16 %v761
  %v1438 = vunpack.c.h.b16 %v761
  %v1439 = vunpack.c.l.b16 %v762
  %v1440 = vunpack.c.h.b16 %v762
  %v1441 = vunpack.c.l.b16 %v763
  %v1442 = vunpack.c.h.b16 %v763
  %v1443 = vunpack.c.l.b16 %v764
  %v1444 = vunpack.c.h.b16 %v764
  %v1445 = vunpack.c.l.b16 %v765
  %v1446 = vunpack.c.h.b16 %v765
  %v1447 = vunpack.c.l.b16 %v766
  %v1448 = vunpack.c.h.b16 %v766
  %v1449 = vunpack.c.l.b16 %v767
  %v1450 = vunpack.c.h.b16 %v767
  %v1451 = vunpack.c.l.b16 %v768
  %v1452 = vunpack.c.h.b16 %v768
  %v1453 = vunpack.c.l.b16 %v769
  %v1454 = vunpack.c.h.b16 %v769
  %v1455 = vunpack.c.l.b16 %v770
  %v1456 = vunpack.c.h.b16 %v770
  %v1457 = vunpack.c.l.b16 %v771
  %v1458 = vunpack.c.h.b16 %v771
  %v1459 = vunpack.c.l.b16 %v772
  %v1460 = vunpack.c.h.b16 %v772
  %v1461 = vunpack.c.l.b16 %v773
  %v1462 = vunpack.c.h.b16 %v773
  %v1463 = vunpack.c.l.b16 %v774
  %v1464 = vunpack.c.h.b16 %v774
  %v1465 = vunpack.c.l.b16 %v775
  %v1466 = vunpack.c.h.b16 %v775
  %v1467 = vunpack.c.l.b16 %v776
  %v1468 = vunpack.c.h.b16 %v776
  %v1469 = vunpack.c.l.b16 %v777
  %v1470 = vunpack.c.h.b16 %v777
  %v1471 = vunpack.c.l.b16 %v778
  %v1472 = vunpack.c.h.b16 %v778
  %v1473 = vunpack.c.l.b16 %v779
  %v1474 = vunpack.c.h.b16 %v779
  %v1475 = vunpack.c.l.b16 %v780
  %v1476 = vunpack.c.h.b16 %v780
  %v1477 = vunpack.c.l.b16 %v781
  %v1478 = vunpack.c.h.b16 %v781
  %v1479 = vunpack.c.l.b16 %v782
  %v1480 = vunpack.c.h.b16 %v782
  %v1481 = vunpack.c.l.b16 %v783
  %v1482 = vunpack.c.h.b16 %v783
  %v1483 = vunpack.c.l.b16 %v784
  %v1484 = vunpack.c.h.b16 %v784
  %v1485 = vunpack.c.l.b16 %v785
  %v1486 = vunpack.c.h.b16 %v785
  %v1487 = vunpack.c.l.b16 %v786
  %v1488 = vunpack.c.h.b16 %v786
  %v1489 = vunpack.c.l.b16 %v787
  %v1490 = vunpack.c.h.b16 %v787
  %v1491 = vunpack.c.l.b16 %v788
  %v1492 = vunpack.c.h.b16 %v788
  %v1493 = vunpack.c.l.b16 %v789
  %v1494 = vunpack.c.h.b16 %v789
  %v1495 = vunpack.c.l.b16 %v790
  %v1496 = vunpack.c.h.b16 %v790
  %v1497 = vunpack.c.l.b16 %v791
  %v1498 = vunpack.c.h.b16 %v791
  %v1499 = vunpack.c.l.b16 %v792
  %v1500 = vunpack.c.h.b16 %v792
  %v1501 = vunpack.c.l.b16 %v793
  %v1502 = vunpack.c.h.b16 %v793
  %v1503 = vunpack.c.l.b16 %v794
  %v1504 = vunpack.c.h.b16 %v794
  %v1505 = vunpack.c.l.b16 %v795
  %v1506 = vunpack.c.h.b16 %v795
  %v1507 = vunpack.c.l.b16 %v796
  %v1508 = vunpack.c.h.b16 %v796
  %v1509 = vunpack.c.l.b16 %v797
  %v1510 = vunpack.c.h.b16 %v797
  %v1511 = vunpack.c.l.b16 %v798
  %v1512 = vunpack.c.h.b16 %v798
  %v1513 = vunpack.c.l.b16 %v799
  %v1514 = vunpack.c.h.b16 %v799
  %v1515 = vunpack.c.l.b16 %v800
  %v1516 = vunpack.c.h.b16 %v800
  %v1517 = vunpack.c.l.b16 %v801
  %v1518 = vunpack.c.h.b16 %v801
  %v1519 = vunpack.c.l.b16 %v802
  %v1520 = vunpack.c.h.b16 %v802
  %v1521 = vunpack.c.l.b16 %v803
  %v1522 = vunpack.c.h.b16 %v803
  %v1523 = vunpack.c.l.b16 %v804
  %v1524 = vunpack.c.h.b16 %v804
  %v1525 = vunpack.c.l.b16 %v805
  %v1526 = vunpack.c.h.b16 %v805
  %v1527 = vunpack.c.l.b16 %v806
  %v1528 = vunpack.c.h.b16 %v806
  %v1529 = vunpack.c.l.b16 %v807
  %v1530 = vunpack.c.h.b16 %v807
  %v1531 = vunpack.c.l.b16 %v808
  %v1532 = vunpack.c.h.b16 %v808
  %v1533 = vunpack.c.l.b16 %v809
  %v1534 = vunpack.c.h.b16 %v809
  %v1535 = vunpack.c.l.b16 %v810
  %v1536 = vunpack.c.h.b16 %v810
  %v1537 = vunpack.c.l.b16 %v811
  %v1538 = vunpack.c.h.b16 %v811
  %v1539 = vunpack.c.l.b16 %v812
  %v1540 = vunpack.c.h.b16 %v812
  %v1541 = vunpack.c.l.b16 %v813
  %v1542 = vunpack.c.h.b16 %v813
  %v1543 = vunpack.c.l.b16 %v814
  %v1544 = vunpack.c.h.b16 %v814
  %v1545 = vunpack.c.l.b16 %v815
  %v1546 = vunpack.c.h.b16 %v815
  %v1547 = vunpack.c.l.b16 %v816
  %v1548 = vunpack.c.h.b16 %v816
  %v1549 = vunpack.c.l.b16 %v817
  %v1550 = vunpack.c.h.b16 %v817
  %v1551 = vunpack.c.l.b16 %v818
  %v1552 = vunpack.c.h.b16 %v818
  %v1553 = vunpack.c.l.b16 %v819
  %v1554 = vunpack.c.h.b16 %v819
  %v1555 = vunpack.c.l.b16 %v820
  %v1556 = vunpack.c.h.b16 %v820
  %v1557 = vunpack.c.l.b16 %v821
  %v1558 = vunpack.c.h.b16 %v821
  %v1559 = vunpack.c.l.b16 %v822
  %v1560 = vunpack.c.h.b16 %v822
  %v1561 = vunpack.c.l.b16 %v823
  %v1562 = vunpack.c.h.b16 %v823
  %v1563 = vunpack.c.l.b16 %v824
  %v1564 = vunpack.c.h.b16 %v824
  %v1565 = vunpack.c.l.b16 %v825
  %v1566 = vunpack.c.h.b16 %v825
  %v1567 = vunpack.c.l.b16 %v826
  %v1568 = vunpack.c.h.b16 %v826
  %v1569 = vunpack.c.l.b16 %v827
  %v1570 = vunpack.c.h.b16 %v827
  %v1571 = vunpack.c.l.b16 %v828
  %v1572 = vunpack.c.h.b16 %v828
  %v1573 = vunpack.c.l.b16 %v829
  %v1574 = vunpack.c.h.b16 %v829
  %v1575 = vunpack.c.l.b16 %v830
  %v1576 = vunpack.c.h.b16 %v830
  %v1577 = vunpack.c.l.b16 %v831
  %v1578 = vunpack.c.h.b16 %v831
  %v1579 = vunpack.c.l.b16 %v832
  %v1580 = vunpack.c.h.b16 %v832
  %v1581 = vunpack.c.l.b16 %v833
  %v1582 = vunpack.c.h.b16 %v833
  %v1583 = vunpack.c.l.b16 %v834
  %v1584 = vunpack.c.h.b16 %v834
  %v1585 = vunpack.c.l.b16 %v835
  %v1586 = vunpack.c.h.b16 %v835
  %v1587 = vunpack.c.l.b16 %v836
  %v1588 = vunpack.c.h.b16 %v836
  %v1589 = vunpack.c.l.b16 %v837
  %v1590 = vunpack.c.h.b16 %v837
  %v1591 = vunpack.c.l.b16 %v838
  %v1592 = vunpack.c.h.b16 %v838
  %v1593 = vunpack.c.l.b16 %v839
  %v1594 = vunpack.c.h.b16 %v839
  %v1595 = vunpack.c.l.b16 %v840
  %v1596 = vunpack.c.h.b16 %v840
  %v1597 = vunpack.c.l.b16 %v841
  %v1598 = vunpack.c.h.b16 %v841
  %v1599 = vunpack.c.l.b16 %v842
  %v1600 = vunpack.c.h.b16 %v842
  %v1601 = vunpack.c.l.b16 %v843
  %v1602 = vunpack.c.h.b16 %v843
  %v1603 = vunpack.c.l.b16 %v844
  %v1604 = vunpack.c.h.b16 %v844
  %v1605 = vunpack.c.l.b16 %v845
  %v1606 = vunpack.c.h.b16 %v845
  %v1607 = vunpack.c.l.b16 %v846
  %v1608 = vunpack.c.h.b16 %v846
  %v1609 = vunpack.c.l.b16 %v847
  %v1610 = vunpack.c.h.b16 %v847
  %v1611 = vunpack.c.l.b16 %v848
  %v1612 = vunpack.c.h.b16 %v848
  %v1613 = vunpack.c.l.b16 %v849
  %v1614 = vunpack.c.h.b16 %v849
  %v1615 = vunpack.c.l.b16 %v850
  %v1616 = vunpack.c.h.b16 %v850
  %v1617 = vunpack.c.l.b16 %v851
  %v1618 = vunpack.c.h.b16 %v851
  %v1619 = vunpack.c.l.b16 %v852
  %v1620 = vunpack.c.h.b16 %v852
  %v1621 = vunpack.c.l.b16 %v853
  %v1622 = vunpack.c.h.b16 %v853
  %v1623 = vunpack.c.l.b16 %v854
  %v1624 = vunpack.c.h.b16 %v854
  %v1625 = vunpack.c.l.b16 %v855
  %v1626 = vunpack.c.h.b16 %v855
  %v1627 = vunpack.c.l.b16 %v856
  %v1628 = vunpack.c.h.b16 %v856
  %v1629 = vunpack.c.l.b16 %v857
  %v1630 = vunpack.c.h.b16 %v857
  %v1631 = vunpack.c.l.b16 %v858
  %v1632 = vunpack.c.h.b16 %v858
  %v1633 = vunpack.c.l.b16 %v859
  %v1634 = vunpack.c.h.b16 %v859
  %v1635 = vunpack.c.l.b16 %v860
  %v1636 = vunpack.c.h.b16 %v860
  %v1637 = vunpack.c.l.b16 %v861
  %v1638 = vunpack.c.h.b16 %v861
  %v1639 = vunpack.c.l.b16 %v862
  %v1640 = vunpack.c.h.b16 %v862
  %v1641 = vpack.c.b16 %v1133, %v1129
  %v1642 = vpack.c.b16 %v1134, %v1130
  %v1643 = vpack.c.b16 %v1135, %v1131
  %v1644 = vpack.c.b16 %v1136, %v1132
  %v1645 = vpack.c.b16 %v1141, %v1137
  %v1646 = vpack.c.b16 %v1142, %v1138
  %v1647 = vpack.c.b16 %v1143, %v1139
  %v1648 = vpack.c.b16 %v1144, %v1140
  %v1649 = vpack.c.b16 %v1149, %v1145
  %v1650 = vpack.c.b16 %v1150, %v1146
  %v1651 = vpack.c.b16 %v1151, %v1147
  %v1652 = vpack.c.b16 %v1152, %v1148
  %v1653 = vpack.c.b16 %v1157, %v1153
  %v1654 = vpack.c.b16 %v1158, %v1154
  %v1655 = vpack.c.b16 %v1159, %v1155
  %v1656 = vpack.c.b16 %v1160, %v1156
  %v1657 = vpack.c.b16 %v1165, %v1161
  %v1658 = vpack.c.b16 %v1166, %v1162
  %v1659 = vpack.c.b16 %v1167, %v1163
  %v1660 = vpack.c.b16 %v1168, %v1164
  %v1661 = vpack.c.b16 %v1173, %v1169
  %v1662 = vpack.c.b16 %v1174, %v1170
  %v1663 = vpack.c.b16 %v1175, %v1171
  %v1664 = vpack.c.b16 %v1176, %v1172
  %v1665 = vpack.c.b16 %v1181, %v1177
  %v1666 = vpack.c.b16 %v1182, %v1178
  %v1667 = vpack.c.b16 %v1183, %v1179
  %v1668 = vpack.c.b16 %v1184, %v1180
  %v1669 = vpack.c.b16 %v1189, %v1185
  %v1670 = vpack.c.b16 %v1190, %v1186
  %v1671 = vpack.c.b16 %v1191, %v1187
  %v1672 = vpack.c.b16 %v1192, %v1188
  %v1673 = vpack.c.b16 %v1197, %v1193
  %v1674 = vpack.c.b16 %v1198, %v1194
  %v1675 = vpack.c.b16 %v1199, %v1195
  %v1676 = vpack.c.b16 %v1200, %v1196
  %v1677 = vpack.c.b16 %v1205, %v1201
  %v1678 = vpack.c.b16 %v1206, %v1202
  %v1679 = vpack.c.b16 %v1207, %v1203
  %v1680 = vpack.c.b16 %v1208, %v1204
  %v1681 = vpack.c.b16 %v1213, %v1209
  %v1682 = vpack.c.b16 %v1214, %v1210
  %v1683 = vpack.c.b16 %v1215, %v1211
  %v1684 = vpack.c.b16 %v1216, %v1212
  %v1685 = vpack.c.b16 %v1221, %v1217
  %v1686 = vpack.c.b16 %v1222, %v1218
  %v1687 = vpack.c.b16 %v1223, %v1219
  %v1688 = vpack.c.b16 %v1224, %v1220
  %v1689 = vpack.c.b16 %v1229, %v1225
  %v1690 = vpack.c.b16 %v1230, %v1226
  %v1691 = vpack.c.b16 %v1231, %v1227
  %v1692 = vpack.c.b16 %v1232, %v1228
  %v1693 = vpack.c.b16 %v1237, %v1233
  %v1694 = vpack.c.b16 %v1238, %v1234
  %v1695 = vpack.c.b16 %v1239, %v1235
  %v1696 = vpack.c.b16 %v1240, %v1236
  %v1697 = vpack.c.b16 %v1245, %v1241
  %v1698 = vpack.c.b16 %v1246, %v1242
  %v1699 = vpack.c.b16 %v1247, %v1243
  %v1700 = vpack.c.b16 %v1248, %v1244
  %v1701 = vpack.c.b16 %v1253, %v1249
  %v1702 = vpack.c.b16 %v1254, %v1250
  %v1703 = vpack.c.b16 %v1255, %v1251
  %v1704 = vpack.c.b16 %v1256, %v1252
  %v1705 = vpack.c.b16 %v1261, %v1257
  %v1706 = vpack.c.b16 %v1262, %v1258
  %v1707 = vpack.c.b16 %v1263, %v1259
  %v1708 = vpack.c.b16 %v1264, %v1260
  %v1709 = vpack.c.b16 %v1269, %v1265
  %v1710 = vpack.c.b16 %v1270, %v1266
  %v1711 = vpack.c.b16 %v1271, %v1267
  %v1712 = vpack.c.b16 %v1272, %v1268
  %v1713 = vpack.c.b16 %v1277, %v1273
  %v1714 = vpack.c.b16 %v1278, %v1274
  %v1715 = vpack.c.b16 %v1279, %v1275
  %v1716 = vpack.c.b16 %v1280, %v1276
  %v1717 = vpack.c.b16 %v1285, %v1281
  %v1718 = vpack.c.b16 %v1286, %v1282
  %v1719 = vpack.c.b16 %v1287, %v1283
  %v1720 = vpack.c.b16 %v1288, %v1284
  %v1721 = vpack.c.b16 %v1293, %v1289
  %v1722 = vpack.c.b16 %v1294, %v1290
  %v1723 = vpack.c.b16 %v1295, %v1291
  %v1724 = vpack.c.b16 %v1296, %v1292
  %v1725 = vpack.c.b16 %v1301, %v1297
  %v1726 = vpack.c.b16 %v1302, %v1298
  %v1727 = vpack.c.b16 %v1303, %v1299
  %v1728 = vpack.c.b16 %v1304, %v1300
  %v1729 = vpack.c.b16 %v1309, %v1305
  %v1730 = vpack.c.b16 %v1310, %v1306
  %v1731 = vpack.c.b16 %v1311, %v1307
  %v1732 = vpack.c.b16 %v1312, %v1308
  %v1733 = vpack.c.b16 %v1317, %v1313
  %v1734 = vpack.c.b16 %v1318, %v1314
  %v1735 = vpack.c.b16 %v1319, %v1315
  %v1736 = vpack.c.b16 %v1320, %v1316
  %v1737 = vpack.c.b16 %v1325, %v1321
  %v1738 = vpack.c.b16 %v1326, %v1322
  %v1739 = vpack.c.b16 %v1327, %v1323
  %v1740 = vpack.c.b16 %v1328, %v1324
  %v1741 = vpack.c.b16 %v1333, %v1329
  %v1742 = vpack.c.b16 %v1334, %v1330
  %v1743 = vpack.c.b16 %v1335, %v1331
  %v1744 = vpack.c.b16 %v1336, %v1332
  %v1745 = vpack.c.b16 %v1341, %v1337
  %v1746 = vpack.c.b16 %v1342, %v1338
  %v1747 = vpack.c.b16 %v1343, %v1339
  %v1748 = vpack.c.b16 %v1344, %v1340
  %v1749 = vpack.c.b16 %v1349, %v1345
  %v1750 = vpack.c.b16 %v1350, %v1346
  %v1751 = vpack.c.b16 %v1351, %v1347
  %v1752 = vpack.c.b16 %v1352, %v1348
  %v1753 = vpack.c.b16 %v1357, %v1353
  %v1754 = vpack.c.b16 %v1358, %v1354
  %v1755 = vpack.c.b16 %v1359, %v1355
  %v1756 = vpack.c.b16 %v1360, %v1356
  %v1757 = vpack.c.b16 %v1365, %v1361
  %v1758 = vpack.c.b16 %v1366, %v1362
  %v1759 = vpack.c.b16 %v1367, %v1363
  %v1760 = vpack.c.b16 %v1368, %v1364
  %v1761 = vpack.c.b16 %v1373, %v1369
  %v1762 = vpack.c.b16 %v1374, %v1370
  %v1763 = vpack.c.b16 %v1375, %v1371
  %v1764 = vpack.c.b16 %v1376, %v1372
  %v1765 = vpack.c.b16 %v1381, %v1377
  %v1766 = vpack.c.b16 %v1382, %v1378
  %v1767 = vpack.c.b16 %v1383, %v1379
  %v1768 = vpack.c.b16 %v1384, %v1380
  %v1769 = vpack.c.b16 %v1389, %v1385
  %v1770 = vpack.c.b16 %v1390, %v1386
  %v1771 = vpack.c.b16 %v1391, %v1387
  %v1772 = vpack.c.b16 %v1392, %v1388
  %v1773 = vpack.c.b16 %v1397, %v1393
  %v1774 = vpack.c.b16 %v1398, %v1394
  %v1775 = vpack.c.b16 %v1399, %v1395
  %v1776 = vpack.c.b16 %v1400, %v1396
  %v1777 = vpack.c.b16 %v1405, %v1401
  %v1778 = vpack.c.b16 %v1406, %v1402
  %v1779 = vpack.c.b16 %v1407, %v1403
  %v1780 = vpack.c.b16 %v1408, %v1404
  %v1781 = vpack.c.b16 %v1413, %v1409
  %v1782 = vpack.c.b16 %v1414, %v1410
  %v1783 = vpack.c.b16 %v1415, %v1411
  %v1784 = vpack.c.b16 %v1416, %v1412
  %v1785 = vpack.c.b16 %v1421, %v1417
  %v1786 = vpack.c.b16 %v1422, %v1418
  %v1787 = vpack.c.b16 %v1423, %v1419
  %v1788 = vpack.c.b16 %v1424, %v1420
  %v1789 = vpack.c.b16 %v1429, %v1425
  %v1790 = vpack.c.b16 %v1430, %v1426
  %v1791 = vpack.c.b16 %v1431, %v1427
  %v1792 = vpack.c.b16 %v1432, %v1428
  %v1793 = vpack.c.b16 %v1437, %v1433
  %v1794 = vpack.c.b16 %v1438, %v1434
  %v1795 = vpack.c.b16 %v1439, %v1435
  %v1796 = vpack.c.b16 %v1440, %v1436
  %v1797 = vpack.c.b16 %v1445, %v1441
  %v1798 = vpack.c.b16 %v1446, %v1442
  %v1799 = vpack.c.b16 %v1447, %v1443
  %v1800 = vpack.c.b16 %v1448, %v1444
  %v1801 = vpack.c.b16 %v1453, %v1449
  %v1802 = vpack.c.b16 %v1454, %v1450
  %v1803 = vpack.c.b16 %v1455, %v1451
  %v1804 = vpack.c.b16 %v1456, %v1452
  %v1805 = vpack.c.b16 %v1461, %v1457
  %v1806 = vpack.c.b16 %v1462, %v1458
  %v1807 = vpack.c.b16 %v1463, %v1459
  %v1808 = vpack.c.b16 %v1464, %v1460
  %v1809 = vpack.c.b16 %v1469, %v1465
  %v1810 = vpack.c.b16 %v1470, %v1466
  %v1811 = vpack.c.b16 %v1471, %v1467
  %v1812 = vpack.c.b16 %v1472, %v1468
  %v1813 = vpack.c.b16 %v1477, %v1473
  %v1814 = vpack.c.b16 %v1478, %v1474
  %v1815 = vpack.c.b16 %v1479, %v1475
  %v1816 = vpack.c.b16 %v1480, %v1476
  %v1817 = vpack.c.b16 %v1485, %v1481
  %v1818 = vpack.c.b16 %v1486, %v1482
  %v1819 = vpack.c.b16 %v1487, %v1483
  %v1820 = vpack.c.b16 %v1488, %v1484
  %v1821 = vpack.c.b16 %v1493, %v1489
  %v1822 = vpack.c.b16 %v1494, %v1490
  %v1823 = vpack.c.b16 %v1495, %v1491
  %v1824 = vpack.c.b16 %v1496, %v1492
  %v1825 = vpack.c.b16 %v1501, %v1497
  %v1826 = vpack.c.b16 %v1502, %v1498
  %v1827 = vpack.c.b16 %v1503, %v1499
  %v1828 = vpack.c.b16 %v1504, %v1500
  %v1829 = vpack.c.b16 %v1509, %v1505
  %v1830 = vpack.c.b16 %v1510, %v1506
  %v1831 = vpack.c.b16 %v1511, %v1507
  %v1832 = vpack.c.b16 %v1512, %v1508
  %v1833 = vpack.c.b16 %v1517, %v1513
  %v1834 = vpack.c.b16 %v1518, %v1514
  %v1835 = vpack.c.b16 %v1519, %v1515
  %v1836 = vpack.c.b16 %v1520, %v1516
  %v1837 = vpack.c.b16 %v1525, %v1521
  %v1838 = vpack.c.b16 %v1526, %v1522
  %v1839 = vpack.c.b16 %v1527, %v1523
  %v1840 = vpack.c.b16 %v1528, %v1524
  %v1841 = vpack.c.b16 %v1533, %v1529
  %v1842 = vpack.c.b16 %v1534, %v1530
  %v1843 = vpack.c.b16 %v1535, %v1531
  %v1844 = vpack.c.b16 %v1536, %v1532
  %v1845 = vpack.c.b16 %v1541, %v1537
  %v1846 = vpack.c.b16 %v1542, %v1538
  %v1847 = vpack.c.b16 %v1543, %v1539
  %v1848 = vpack.c.b16 %v1544, %v1540
  %v1849 = vpack.c.b16 %v1549, %v1545
  %v1850 = vpack.c.b16 %v1550, %v1546
  %v1851 = vpack.c.b16 %v1551, %v1547
  %v1852 = vpack.c.b16 %v1552, %v1548
  %v1853 = vpack.c.b16 %v1557, %v1553
  %v1854 = vpack.c.b16 %v1558, %v1554
  %v1855 = vpack.c.b16 %v1559, %v1555
  %v1856 = vpack.c.b16 %v1560, %v1556
  %v1857 = vpack.c.b16 %v1565, %v1561
  %v1858 = vpack.c.b16 %v1566, %v1562
  %v1859 = vpack.c.b16 %v1567, %v1563
  %v1860 = vpack.c.b16 %v1568, %v1564
  %v1861 = vpack.c.b16 %v1573, %v1569
  %v1862 = vpack.c.b16 %v1574, %v1570
  %v1863 = vpack.c.b16 %v1575, %v1571
  %v1864 = vpack.c.b16 %v1576, %v1572
  %v1865 = vpack.c.b16 %v1581, %v1577
  %v1866 = vpack.c.b16 %v1582, %v1578
  %v1867 = vpack.c.b16 %v1583, %v1579
  %v1868 = vpack.c.b16 %v1584, %v1580
  %v1869 = vpack.c.b16 %v1589, %v1585
  %v1870 = vpack.c.b16 %v1590, %v1586
  %v1871 = vpack.c.b16 %v1591, %v1587
  %v1872 = vpack.c.b16 %v1592, %v1588
  %v1873 = vpack.c.b16 %v1597, %v1593
  %v1874 = vpack.c.b16 %v1598, %v1594
  %v1875 = vpack.c.b16 %v1599, %v1595
  %v1876 = vpack.c.b16 %v1600, %v1596
  %v1877 = vpack.c.b16 %v1605, %v1601
  %v1878 = vpack.c.b16 %v1606, %v1602
  %v1879 = vpack.c.b16 %v1607, %v1603
  %v1880 = vpack.c.b16 %v1608, %v1604
  %v1881 = vpack.c.b16 %v1613, %v1609
  %v1882 = vpack.c.b16 %v1614, %v1610
  %v1883 = vpack.c.b16 %v1615, %v1611
  %v1884 = vpack.c.b16 %v1616, %v1612
  %v1885 = vpack.c.b16 %v1621, %v1617
  %v1886 = vpack.c.b16 %v1622, %v1618
  %v1887 = vpack.c.b16 %v1623, %v1619
  %v1888 = vpack.c.b16 %v1624, %v1620
  %v1889 = vpack.c.b16 %v1629, %v1625
  %v1890 = vpack.c.b16 %v1630, %v1626
  %v1891 = vpack.c.b16 %v1631, %v1627
  %v1892 = vpack.c.b16 %v1632, %v1628
  %v1893 = vpack.c.b16 %v1637, %v1633
  %v1894 = vpack.c.b16 %v1638, %v1634
  %v1895 = vpack.c.b16 %v1639, %v1635
  %v1896 = vpack.c.b16 %v1640, %v1636
  %2153 = vmatpush.bf16.msra.mxu0 %v1669
  %2154 = vmatpush.bf16.msra.mxu0 %v1665
  %2155 = vmatpush.bf16.msra.mxu0 %v1661
  %2156 = vmatpush.bf16.msra.mxu0 %v1657
  %2157 = vmatpush.bf16.msra.mxu0 %v1653
  %2158 = vmatpush.bf16.msra.mxu0 %v1649
  %2159 = vmatpush.bf16.msra.mxu0 %v1645
  %2160 = vmatpush.bf16.msra.mxu0 %v1641
  %2161 = vmatmul.bf16.gmra.mxu0 %v599
  %v2162 = vpop.f32.mrf.mxu0
  %v2163 = vadd.f32 %v865, %v2162
  %v2164 = vpop.f32.mrf.mxu0
  %2165 = vdwg.mxu0
  %2166 = vmatpush.bf16.msra.mxu0 %v1701
  %2167 = vmatpush.bf16.msra.mxu0 %v1697
  %2168 = vmatpush.bf16.msra.mxu0 %v1693
  %2169 = vmatpush.bf16.msra.mxu0 %v1689
  %2170 = vmatpush.bf16.msra.mxu0 %v1685
  %2171 = vmatpush.bf16.msra.mxu0 %v1681
  %2172 = vmatpush.bf16.msra.mxu0 %v1677
  %2173 = vmatpush.bf16.msra.mxu0 %v1673
  %2174 = vmatmul.bf16.gmra.mxu0 %v600
  %v2175 = vpop.f32.mrf.mxu0
  %v2176 = vadd.f32 %v2163, %v2175
  %v2177 = vpop.f32.mrf.mxu0
  %2178 = vdwg.mxu0
  %2179 = vmatpush.bf16.msra.mxu0 %v1733
  %2180 = vmatpush.bf16.msra.mxu0 %v1729
  %2181 = vmatpush.bf16.msra.mxu0 %v1725
  %2182 = vmatpush.bf16.msra.mxu0 %v1721
  %2183 = vmatpush.bf16.msra.mxu0 %v1717
  %2184 = vmatpush.bf16.msra.mxu0 %v1713
  %2185 = vmatpush.bf16.msra.mxu0 %v1709
  %2186 = vmatpush.bf16.msra.mxu0 %v1705
  %2187 = vmatmul.bf16.gmra.mxu0 %v601
  %v2188 = vpop.f32.mrf.mxu0
  %v2189 = vadd.f32 %v2176, %v2188
  %v2190 = vpop.f32.mrf.mxu0
  %2191 = vdwg.mxu0
  %2192 = vmatpush.bf16.msra.mxu0 %v1765
  %2193 = vmatpush.bf16.msra.mxu0 %v1761
  %2194 = vmatpush.bf16.msra.mxu0 %v1757
  %2195 = vmatpush.bf16.msra.mxu0 %v1753
  %2196 = vmatpush.bf16.msra.mxu0 %v1749
  %2197 = vmatpush.bf16.msra.mxu0 %v1745
  %2198 = vmatpush.bf16.msra.mxu0 %v1741
  %2199 = vmatpush.bf16.msra.mxu0 %v1737
  %2200 = vmatmul.bf16.gmra.mxu0 %v602
  %v2201 = vpop.f32.mrf.mxu0
  %v2202 = vadd.f32 %v2189, %v2201
  %v2203 = vpop.f32.mrf.mxu0
  %2204 = vdwg.mxu0
  %2205 = vmatpush.bf16.msra.mxu0 %v1797
  %2206 = vmatpush.bf16.msra.mxu0 %v1793
  %2207 = vmatpush.bf16.msra.mxu0 %v1789
  %2208 = vmatpush.bf16.msra.mxu0 %v1785
  %2209 = vmatpush.bf16.msra.mxu0 %v1781
  %2210 = vmatpush.bf16.msra.mxu0 %v1777
  %2211 = vmatpush.bf16.msra.mxu0 %v1773
  %2212 = vmatpush.bf16.msra.mxu0 %v1769
  %2213 = vmatmul.bf16.gmra.mxu0 %v603
  %v2214 = vpop.f32.mrf.mxu0
  %v2215 = vadd.f32 %v2202, %v2214
  %v2216 = vpop.f32.mrf.mxu0
  %2217 = vdwg.mxu0
  %2218 = vmatpush.bf16.msra.mxu0 %v1829
  %2219 = vmatpush.bf16.msra.mxu0 %v1825
  %2220 = vmatpush.bf16.msra.mxu0 %v1821
  %2221 = vmatpush.bf16.msra.mxu0 %v1817
  %2222 = vmatpush.bf16.msra.mxu0 %v1813
  %2223 = vmatpush.bf16.msra.mxu0 %v1809
  %2224 = vmatpush.bf16.msra.mxu0 %v1805
  %2225 = vmatpush.bf16.msra.mxu0 %v1801
  %2226 = vmatmul.bf16.gmra.mxu0 %v604
  %v2227 = vpop.f32.mrf.mxu0
  %v2228 = vadd.f32 %v2215, %v2227
  %v2229 = vpop.f32.mrf.mxu0
  %2230 = vdwg.mxu0
  %2231 = vmatpush.bf16.msra.mxu0 %v1861
  %2232 = vmatpush.bf16.msra.mxu0 %v1857
  %2233 = vmatpush.bf16.msra.mxu0 %v1853
  %2234 = vmatpush.bf16.msra.mxu0 %v1849
  %2235 = vmatpush.bf16.msra.mxu0 %v1845
  %2236 = vmatpush.bf16.msra.mxu0 %v1841
  %2237 = vmatpush.bf16.msra.mxu0 %v1837
  %2238 = vmatpush.bf16.msra.mxu0 %v1833
  %2239 = vmatmul.bf16.gmra.mxu0 %v605
  %v2240 = vpop.f32.mrf.mxu0
  %v2241 = vadd.f32 %v2228, %v2240
  %v2242 = vpop.f32.mrf.mxu0
  %2243 = vdwg.mxu0
  %2244 = vmatpush.bf16.msra.mxu0 %v1893
  %2245 = vmatpush.bf16.msra.mxu0 %v1889
  %2246 = vmatpush.bf16.msra.mxu0 %v1885
  %2247 = vmatpush.bf16.msra.mxu0 %v1881
  %2248 = vmatpush.bf16.msra.mxu0 %v1877
  %2249 = vmatpush.bf16.msra.mxu0 %v1873
  %2250 = vmatpush.bf16.msra.mxu0 %v1869
  %2251 = vmatpush.bf16.msra.mxu0 %v1865
  %2252 = vmatmul.bf16.gmra.mxu0 %v606
  %v2253 = vpop.f32.mrf.mxu0
  %v2254 = vadd.f32 %v2241, %v2253
  %v2255 = vpop.f32.mrf.mxu0
  %2256 = vdwg.mxu0
  %2257 = vmatpush.bf16.msra.mxu0 %v1670
  %2258 = vmatpush.bf16.msra.mxu0 %v1666
  %2259 = vmatpush.bf16.msra.mxu0 %v1662
  %2260 = vmatpush.bf16.msra.mxu0 %v1658
  %2261 = vmatpush.bf16.msra.mxu0 %v1654
  %2262 = vmatpush.bf16.msra.mxu0 %v1650
  %2263 = vmatpush.bf16.msra.mxu0 %v1646
  %2264 = vmatpush.bf16.msra.mxu0 %v1642
  %2265 = vmatmul.bf16.gmra.mxu0 %v599
  %v2266 = vpop.f32.mrf.mxu0
  %v2267 = vadd.f32 %v866, %v2266
  %v2268 = vpop.f32.mrf.mxu0
  %2269 = vdwg.mxu0
  %2270 = vmatpush.bf16.msra.mxu0 %v1702
  %2271 = vmatpush.bf16.msra.mxu0 %v1698
  %2272 = vmatpush.bf16.msra.mxu0 %v1694
  %2273 = vmatpush.bf16.msra.mxu0 %v1690
  %2274 = vmatpush.bf16.msra.mxu0 %v1686
  %2275 = vmatpush.bf16.msra.mxu0 %v1682
  %2276 = vmatpush.bf16.msra.mxu0 %v1678
  %2277 = vmatpush.bf16.msra.mxu0 %v1674
  %2278 = vmatmul.bf16.gmra.mxu0 %v600
  %v2279 = vpop.f32.mrf.mxu0
  %v2280 = vadd.f32 %v2267, %v2279
  %v2281 = vpop.f32.mrf.mxu0
  %2282 = vdwg.mxu0
  %2283 = vmatpush.bf16.msra.mxu0 %v1734
  %2284 = vmatpush.bf16.msra.mxu0 %v1730
  %2285 = vmatpush.bf16.msra.mxu0 %v1726
  %2286 = vmatpush.bf16.msra.mxu0 %v1722
  %2287 = vmatpush.bf16.msra.mxu0 %v1718
  %2288 = vmatpush.bf16.msra.mxu0 %v1714
  %2289 = vmatpush.bf16.msra.mxu0 %v1710
  %2290 = vmatpush.bf16.msra.mxu0 %v1706
  %2291 = vmatmul.bf16.gmra.mxu0 %v601
  %v2292 = vpop.f32.mrf.mxu0
  %v2293 = vadd.f32 %v2280, %v2292
  %v2294 = vpop.f32.mrf.mxu0
  %2295 = vdwg.mxu0
  %2296 = vmatpush.bf16.msra.mxu0 %v1766
  %2297 = vmatpush.bf16.msra.mxu0 %v1762
  %2298 = vmatpush.bf16.msra.mxu0 %v1758
  %2299 = vmatpush.bf16.msra.mxu0 %v1754
  %2300 = vmatpush.bf16.msra.mxu0 %v1750
  %2301 = vmatpush.bf16.msra.mxu0 %v1746
  %2302 = vmatpush.bf16.msra.mxu0 %v1742
  %2303 = vmatpush.bf16.msra.mxu0 %v1738
  %2304 = vmatmul.bf16.gmra.mxu0 %v602
  %v2305 = vpop.f32.mrf.mxu0
  %v2306 = vadd.f32 %v2293, %v2305
  %v2307 = vpop.f32.mrf.mxu0
  %2308 = vdwg.mxu0
  %2309 = vmatpush.bf16.msra.mxu0 %v1798
  %2310 = vmatpush.bf16.msra.mxu0 %v1794
  %2311 = vmatpush.bf16.msra.mxu0 %v1790
  %2312 = vmatpush.bf16.msra.mxu0 %v1786
  %2313 = vmatpush.bf16.msra.mxu0 %v1782
  %2314 = vmatpush.bf16.msra.mxu0 %v1778
  %2315 = vmatpush.bf16.msra.mxu0 %v1774
  %2316 = vmatpush.bf16.msra.mxu0 %v1770
  %2317 = vmatmul.bf16.gmra.mxu0 %v603
  %v2318 = vpop.f32.mrf.mxu0
  %v2319 = vadd.f32 %v2306, %v2318
  %v2320 = vpop.f32.mrf.mxu0
  %2321 = vdwg.mxu0
  %2322 = vmatpush.bf16.msra.mxu0 %v1830
  %2323 = vmatpush.bf16.msra.mxu0 %v1826
  %2324 = vmatpush.bf16.msra.mxu0 %v1822
  %2325 = vmatpush.bf16.msra.mxu0 %v1818
  %2326 = vmatpush.bf16.msra.mxu0 %v1814
  %2327 = vmatpush.bf16.msra.mxu0 %v1810
  %2328 = vmatpush.bf16.msra.mxu0 %v1806
  %2329 = vmatpush.bf16.msra.mxu0 %v1802
  %2330 = vmatmul.bf16.gmra.mxu0 %v604
  %v2331 = vpop.f32.mrf.mxu0
  %v2332 = vadd.f32 %v2319, %v2331
  %v2333 = vpop.f32.mrf.mxu0
  %2334 = vdwg.mxu0
  %2335 = vmatpush.bf16.msra.mxu0 %v1862
  %2336 = vmatpush.bf16.msra.mxu0 %v1858
  %2337 = vmatpush.bf16.msra.mxu0 %v1854
  %2338 = vmatpush.bf16.msra.mxu0 %v1850
  %2339 = vmatpush.bf16.msra.mxu0 %v1846
  %2340 = vmatpush.bf16.msra.mxu0 %v1842
  %2341 = vmatpush.bf16.msra.mxu0 %v1838
  %2342 = vmatpush.bf16.msra.mxu0 %v1834
  %2343 = vmatmul.bf16.gmra.mxu0 %v605
  %v2344 = vpop.f32.mrf.mxu0
  %v2345 = vadd.f32 %v2332, %v2344
  %v2346 = vpop.f32.mrf.mxu0
  %2347 = vdwg.mxu0
  %2348 = vmatpush.bf16.msra.mxu0 %v1894
  %2349 = vmatpush.bf16.msra.mxu0 %v1890
  %2350 = vmatpush.bf16.msra.mxu0 %v1886
  %2351 = vmatpush.bf16.msra.mxu0 %v1882
  %2352 = vmatpush.bf16.msra.mxu0 %v1878
  %2353 = vmatpush.bf16.msra.mxu0 %v1874
  %2354 = vmatpush.bf16.msra.mxu0 %v1870
  %2355 = vmatpush.bf16.msra.mxu0 %v1866
  %2356 = vmatmul.bf16.gmra.mxu0 %v606
  %v2357 = vpop.f32.mrf.mxu0
  %v2358 = vadd.f32 %v2345, %v2357
  %v2359 = vpop.f32.mrf.mxu0
  %2360 = vdwg.mxu0
  %2361 = vmatpush.bf16.msra.mxu0 %v1671
  %2362 = vmatpush.bf16.msra.mxu0 %v1667
  %2363 = vmatpush.bf16.msra.mxu0 %v1663
  %2364 = vmatpush.bf16.msra.mxu0 %v1659
  %2365 = vmatpush.bf16.msra.mxu0 %v1655
  %2366 = vmatpush.bf16.msra.mxu0 %v1651
  %2367 = vmatpush.bf16.msra.mxu0 %v1647
  %2368 = vmatpush.bf16.msra.mxu0 %v1643
  %2369 = vmatmul.bf16.gmra.mxu0 %v599
  %v2370 = vpop.f32.mrf.mxu0
  %v2371 = vadd.f32 %v867, %v2370
  %v2372 = vpop.f32.mrf.mxu0
  %2373 = vdwg.mxu0
  %2374 = vmatpush.bf16.msra.mxu0 %v1703
  %2375 = vmatpush.bf16.msra.mxu0 %v1699
  %2376 = vmatpush.bf16.msra.mxu0 %v1695
  %2377 = vmatpush.bf16.msra.mxu0 %v1691
  %2378 = vmatpush.bf16.msra.mxu0 %v1687
  %2379 = vmatpush.bf16.msra.mxu0 %v1683
  %2380 = vmatpush.bf16.msra.mxu0 %v1679
  %2381 = vmatpush.bf16.msra.mxu0 %v1675
  %2382 = vmatmul.bf16.gmra.mxu0 %v600
  %v2383 = vpop.f32.mrf.mxu0
  %v2384 = vadd.f32 %v2371, %v2383
  %v2385 = vpop.f32.mrf.mxu0
  %2386 = vdwg.mxu0
  %2387 = vmatpush.bf16.msra.mxu0 %v1735
  %2388 = vmatpush.bf16.msra.mxu0 %v1731
  %2389 = vmatpush.bf16.msra.mxu0 %v1727
  %2390 = vmatpush.bf16.msra.mxu0 %v1723
  %2391 = vmatpush.bf16.msra.mxu0 %v1719
  %2392 = vmatpush.bf16.msra.mxu0 %v1715
  %2393 = vmatpush.bf16.msra.mxu0 %v1711
  %2394 = vmatpush.bf16.msra.mxu0 %v1707
  %2395 = vmatmul.bf16.gmra.mxu0 %v601
  %v2396 = vpop.f32.mrf.mxu0
  %v2397 = vadd.f32 %v2384, %v2396
  %v2398 = vpop.f32.mrf.mxu0
  %2399 = vdwg.mxu0
  %2400 = vmatpush.bf16.msra.mxu0 %v1767
  %2401 = vmatpush.bf16.msra.mxu0 %v1763
  %2402 = vmatpush.bf16.msra.mxu0 %v1759
  %2403 = vmatpush.bf16.msra.mxu0 %v1755
  %2404 = vmatpush.bf16.msra.mxu0 %v1751
  %2405 = vmatpush.bf16.msra.mxu0 %v1747
  %2406 = vmatpush.bf16.msra.mxu0 %v1743
  %2407 = vmatpush.bf16.msra.mxu0 %v1739
  %2408 = vmatmul.bf16.gmra.mxu0 %v602
  %v2409 = vpop.f32.mrf.mxu0
  %v2410 = vadd.f32 %v2397, %v2409
  %v2411 = vpop.f32.mrf.mxu0
  %2412 = vdwg.mxu0
  %2413 = vmatpush.bf16.msra.mxu0 %v1799
  %2414 = vmatpush.bf16.msra.mxu0 %v1795
  %2415 = vmatpush.bf16.msra.mxu0 %v1791
  %2416 = vmatpush.bf16.msra.mxu0 %v1787
  %2417 = vmatpush.bf16.msra.mxu0 %v1783
  %2418 = vmatpush.bf16.msra.mxu0 %v1779
  %2419 = vmatpush.bf16.msra.mxu0 %v1775
  %2420 = vmatpush.bf16.msra.mxu0 %v1771
  %2421 = vmatmul.bf16.gmra.mxu0 %v603
  %v2422 = vpop.f32.mrf.mxu0
  %v2423 = vadd.f32 %v2410, %v2422
  %v2424 = vpop.f32.mrf.mxu0
  %2425 = vdwg.mxu0
  %2426 = vmatpush.bf16.msra.mxu0 %v1831
  %2427 = vmatpush.bf16.msra.mxu0 %v1827
  %2428 = vmatpush.bf16.msra.mxu0 %v1823
  %2429 = vmatpush.bf16.msra.mxu0 %v1819
  %2430 = vmatpush.bf16.msra.mxu0 %v1815
  %2431 = vmatpush.bf16.msra.mxu0 %v1811
  %2432 = vmatpush.bf16.msra.mxu0 %v1807
  %2433 = vmatpush.bf16.msra.mxu0 %v1803
  %2434 = vmatmul.bf16.gmra.mxu0 %v604
  %v2435 = vpop.f32.mrf.mxu0
  %v2436 = vadd.f32 %v2423, %v2435
  %v2437 = vpop.f32.mrf.mxu0
  %2438 = vdwg.mxu0
  %2439 = vmatpush.bf16.msra.mxu0 %v1863
  %2440 = vmatpush.bf16.msra.mxu0 %v1859
  %2441 = vmatpush.bf16.msra.mxu0 %v1855
  %2442 = vmatpush.bf16.msra.mxu0 %v1851
  %2443 = vmatpush.bf16.msra.mxu0 %v1847
  %2444 = vmatpush.bf16.msra.mxu0 %v1843
  %2445 = vmatpush.bf16.msra.mxu0 %v1839
  %2446 = vmatpush.bf16.msra.mxu0 %v1835
  %2447 = vmatmul.bf16.gmra.mxu0 %v605
  %v2448 = vpop.f32.mrf.mxu0
  %v2449 = vadd.f32 %v2436, %v2448
  %v2450 = vpop.f32.mrf.mxu0
  %2451 = vdwg.mxu0
  %2452 = vmatpush.bf16.msra.mxu0 %v1895
  %2453 = vmatpush.bf16.msra.mxu0 %v1891
  %2454 = vmatpush.bf16.msra.mxu0 %v1887
  %2455 = vmatpush.bf16.msra.mxu0 %v1883
  %2456 = vmatpush.bf16.msra.mxu0 %v1879
  %2457 = vmatpush.bf16.msra.mxu0 %v1875
  %2458 = vmatpush.bf16.msra.mxu0 %v1871
  %2459 = vmatpush.bf16.msra.mxu0 %v1867
  %2460 = vmatmul.bf16.gmra.mxu0 %v606
  %v2461 = vpop.f32.mrf.mxu0
  %v2462 = vadd.f32 %v2449, %v2461
  %v2463 = vpop.f32.mrf.mxu0
  %2464 = vdwg.mxu0
  %2465 = vmatpush.bf16.msra.mxu0 %v1672
  %2466 = vmatpush.bf16.msra.mxu0 %v1668
  %2467 = vmatpush.bf16.msra.mxu0 %v1664
  %2468 = vmatpush.bf16.msra.mxu0 %v1660
  %2469 = vmatpush.bf16.msra.mxu0 %v1656
  %2470 = vmatpush.bf16.msra.mxu0 %v1652
  %2471 = vmatpush.bf16.msra.mxu0 %v1648
  %2472 = vmatpush.bf16.msra.mxu0 %v1644
  %2473 = vmatmul.bf16.gmra.mxu0 %v599
  %v2474 = vpop.f32.mrf.mxu0
  %v2475 = vadd.f32 %v868, %v2474
  %v2476 = vpop.f32.mrf.mxu0
  %2477 = vdwg.mxu0
  %2478 = vmatpush.bf16.msra.mxu0 %v1704
  %2479 = vmatpush.bf16.msra.mxu0 %v1700
  %2480 = vmatpush.bf16.msra.mxu0 %v1696
  %2481 = vmatpush.bf16.msra.mxu0 %v1692
  %2482 = vmatpush.bf16.msra.mxu0 %v1688
  %2483 = vmatpush.bf16.msra.mxu0 %v1684
  %2484 = vmatpush.bf16.msra.mxu0 %v1680
  %2485 = vmatpush.bf16.msra.mxu0 %v1676
  %2486 = vmatmul.bf16.gmra.mxu0 %v600
  %v2487 = vpop.f32.mrf.mxu0
  %v2488 = vadd.f32 %v2475, %v2487
  %v2489 = vpop.f32.mrf.mxu0
  %2490 = vdwg.mxu0
  %2491 = vmatpush.bf16.msra.mxu0 %v1736
  %2492 = vmatpush.bf16.msra.mxu0 %v1732
  %2493 = vmatpush.bf16.msra.mxu0 %v1728
  %2494 = vmatpush.bf16.msra.mxu0 %v1724
  %2495 = vmatpush.bf16.msra.mxu0 %v1720
  %2496 = vmatpush.bf16.msra.mxu0 %v1716
  %2497 = vmatpush.bf16.msra.mxu0 %v1712
  %2498 = vmatpush.bf16.msra.mxu0 %v1708
  %2499 = vmatmul.bf16.gmra.mxu0 %v601
  %v2500 = vpop.f32.mrf.mxu0
  %v2501 = vadd.f32 %v2488, %v2500
  %v2502 = vpop.f32.mrf.mxu0
  %2503 = vdwg.mxu0
  %2504 = vmatpush.bf16.msra.mxu0 %v1768
  %2505 = vmatpush.bf16.msra.mxu0 %v1764
  %2506 = vmatpush.bf16.msra.mxu0 %v1760
  %2507 = vmatpush.bf16.msra.mxu0 %v1756
  %2508 = vmatpush.bf16.msra.mxu0 %v1752
  %2509 = vmatpush.bf16.msra.mxu0 %v1748
  %2510 = vmatpush.bf16.msra.mxu0 %v1744
  %2511 = vmatpush.bf16.msra.mxu0 %v1740
  %2512 = vmatmul.bf16.gmra.mxu0 %v602
  %v2513 = vpop.f32.mrf.mxu0
  %v2514 = vadd.f32 %v2501, %v2513
  %v2515 = vpop.f32.mrf.mxu0
  %2516 = vdwg.mxu0
  %2517 = vmatpush.bf16.msra.mxu0 %v1800
  %2518 = vmatpush.bf16.msra.mxu0 %v1796
  %2519 = vmatpush.bf16.msra.mxu0 %v1792
  %2520 = vmatpush.bf16.msra.mxu0 %v1788
  %2521 = vmatpush.bf16.msra.mxu0 %v1784
  %2522 = vmatpush.bf16.msra.mxu0 %v1780
  %2523 = vmatpush.bf16.msra.mxu0 %v1776
  %2524 = vmatpush.bf16.msra.mxu0 %v1772
  %2525 = vmatmul.bf16.gmra.mxu0 %v603
  %v2526 = vpop.f32.mrf.mxu0
  %v2527 = vadd.f32 %v2514, %v2526
  %v2528 = vpop.f32.mrf.mxu0
  %2529 = vdwg.mxu0
  %2530 = vmatpush.bf16.msra.mxu0 %v1832
  %2531 = vmatpush.bf16.msra.mxu0 %v1828
  %2532 = vmatpush.bf16.msra.mxu0 %v1824
  %2533 = vmatpush.bf16.msra.mxu0 %v1820
  %2534 = vmatpush.bf16.msra.mxu0 %v1816
  %2535 = vmatpush.bf16.msra.mxu0 %v1812
  %2536 = vmatpush.bf16.msra.mxu0 %v1808
  %2537 = vmatpush.bf16.msra.mxu0 %v1804
  %2538 = vmatmul.bf16.gmra.mxu0 %v604
  %v2539 = vpop.f32.mrf.mxu0
  %v2540 = vadd.f32 %v2527, %v2539
  %v2541 = vpop.f32.mrf.mxu0
  %2542 = vdwg.mxu0
  %2543 = vmatpush.bf16.msra.mxu0 %v1864
  %2544 = vmatpush.bf16.msra.mxu0 %v1860
  %2545 = vmatpush.bf16.msra.mxu0 %v1856
  %2546 = vmatpush.bf16.msra.mxu0 %v1852
  %2547 = vmatpush.bf16.msra.mxu0 %v1848
  %2548 = vmatpush.bf16.msra.mxu0 %v1844
  %2549 = vmatpush.bf16.msra.mxu0 %v1840
  %2550 = vmatpush.bf16.msra.mxu0 %v1836
  %2551 = vmatmul.bf16.gmra.mxu0 %v605
  %v2552 = vpop.f32.mrf.mxu0
  %v2553 = vadd.f32 %v2540, %v2552
  %v2554 = vpop.f32.mrf.mxu0
  %2555 = vdwg.mxu0
  %2556 = vmatpush.bf16.msra.mxu0 %v1896
  %2557 = vmatpush.bf16.msra.mxu0 %v1892
  %2558 = vmatpush.bf16.msra.mxu0 %v1888
  %2559 = vmatpush.bf16.msra.mxu0 %v1884
  %2560 = vmatpush.bf16.msra.mxu0 %v1880
  %2561 = vmatpush.bf16.msra.mxu0 %v1876
  %2562 = vmatpush.bf16.msra.mxu0 %v1872
  %2563 = vmatpush.bf16.msra.mxu0 %v1868
  %2564 = vmatmul.bf16.gmra.mxu0 %v606
  %v2565 = vpop.f32.mrf.mxu0
  %v2566 = vadd.f32 %v2553, %v2565
  %v2567 = vpop.f32.mrf.mxu0
  %2568 = vdwg.mxu0
  %v2569 = vmax.f32 %v2254, 0.0
  %v2570 = vmax.f32 %v2358, 0.0
  %v2571 = vmax.f32 %v2462, 0.0
  %v2572 = vmax.f32 %v2566, 0.0
  %v2573 = vpack.c.bf16 %v2569, %v2569
  %v2574 = vpack.c.bf16 %v2570, %v2570
  %v2575 = vpack.c.bf16 %v2571, %v2571
  %v2576 = vpack.c.bf16 %v2572, %v2572
  %v2577 = vld [vmem:[%s4] sm:$0xff]
  %v2578 = vld [vmem:[%s4 + $0x8] sm:$0xff]
  %v2579 = vld [vmem:[%s4 + $0x10] sm:$0xff]
  %v2580 = vld [vmem:[%s4 + $0x18] sm:$0xff]
  %v2581 = vld [vmem:[%s4 + $0x20] sm:$0xff]
  %v2582 = vld [vmem:[%s4 + $0x28] sm:$0xff]
  %v2583 = vld [vmem:[%s4 + $0x30] sm:$0xff]
  %v2584 = vld [vmem:[%s4 + $0x38] sm:$0xff]
  %v2585 = vld [vmem:[%s4 + $0x40] sm:$0xff]
  %v2586 = vld [vmem:[%s4 + $0x48] sm:$0xff]
  %v2587 = vld [vmem:[%s4 + $0x50] sm:$0xff]
  %v2588 = vld [vmem:[%s4 + $0x58] sm:$0xff]
  %v2589 = vld [vmem:[%s4 + $0x60] sm:$0xff]
  %v2590 = vld [vmem:[%s4 + $0x68] sm:$0xff]
  %v2591 = vld [vmem:[%s4 + $0x70] sm:$0xff]
  %v2592 = vld [vmem:[%s4 + $0x78] sm:$0xff]
  %v2593 = vld [vmem:[%s4 + $0x80] sm:$0xff]
  %v2594 = vld [vmem:[%s4 + $0x88] sm:$0xff]
  %v2595 = vld [vmem:[%s4 + $0x90] sm:$0xff]
  %v2596 = vld [vmem:[%s4 + $0x98] sm:$0xff]
  %v2597 = vld [vmem:[%s4 + $0xa0] sm:$0xff]
  %v2598 = vld [vmem:[%s4 + $0xa8] sm:$0xff]
  %v2599 = vld [vmem:[%s4 + $0xb0] sm:$0xff]
  %v2600 = vld [vmem:[%s4 + $0xb8] sm:$0xff]
  %v2601 = vld [vmem:[%s4 + $0xc0] sm:$0xff]
  %v2602 = vld [vmem:[%s4 + $0xc8] sm:$0xff]
  %v2603 = vld [vmem:[%s4 + $0xd0] sm:$0xff]
  %v2604 = vld [vmem:[%s4 + $0xd8] sm:$0xff]
  %v2605 = vld [vmem:[%s4 + $0xe0] sm:$0xff]
  %v2606 = vld [vmem:[%s4 + $0xe8] sm:$0xff]
  %v2607 = vld [vmem:[%s4 + $0xf0] sm:$0xff]
  %v2608 = vld [vmem:[%s4 + $0xf8] sm:$0xff]
  %v2609 = vld [vmem:[%s4 + $0x100] sm:$0xff]
  %v2610 = vld [vmem:[%s4 + $0x108] sm:$0xff]
  %v2611 = vld [vmem:[%s4 + $0x110] sm:$0xff]
  %v2612 = vld [vmem:[%s4 + $0x118] sm:$0xff]
  %v2613 = vld [vmem:[%s4 + $0x120] sm:$0xff]
  %v2614 = vld [vmem:[%s4 + $0x128] sm:$0xff]
  %v2615 = vld [vmem:[%s4 + $0x130] sm:$0xff]
  %v2616 = vld [vmem:[%s4 + $0x138] sm:$0xff]
  %v2617 = vld [vmem:[%s4 + $0x140] sm:$0xff]
  %v2618 = vld [vmem:[%s4 + $0x148] sm:$0xff]
  %v2619 = vld [vmem:[%s4 + $0x150] sm:$0xff]
  %v2620 = vld [vmem:[%s4 + $0x158] sm:$0xff]
  %v2621 = vld [vmem:[%s4 + $0x160] sm:$0xff]
  %v2622 = vld [vmem:[%s4 + $0x168] sm:$0xff]
  %v2623 = vld [vmem:[%s4 + $0x170] sm:$0xff]
  %v2624 = vld [vmem:[%s4 + $0x178] sm:$0xff]
  %v2625 = vld [vmem:[%s4 + $0x180] sm:$0xff]
  %v2626 = vld [vmem:[%s4 + $0x188] sm:$0xff]
  %v2627 = vld [vmem:[%s4 + $0x190] sm:$0xff]
  %v2628 = vld [vmem:[%s4 + $0x198] sm:$0xff]
  %v2629 = vld [vmem:[%s4 + $0x1a0] sm:$0xff]
  %v2630 = vld [vmem:[%s4 + $0x1a8] sm:$0xff]
  %v2631 = vld [vmem:[%s4 + $0x1b0] sm:$0xff]
  %v2632 = vld [vmem:[%s4 + $0x1b8] sm:$0xff]
  %v2633 = vld [vmem:[%s4 + $0x1c0] sm:$0xff]
  %v2634 = vld [vmem:[%s4 + $0x1c8] sm:$0xff]
  %v2635 = vld [vmem:[%s4 + $0x1d0] sm:$0xff]
  %v2636 = vld [vmem:[%s4 + $0x1d8] sm:$0xff]
  %v2637 = vld [vmem:[%s4 + $0x1e0] sm:$0xff]
  %v2638 = vld [vmem:[%s4 + $0x1e8] sm:$0xff]
  %v2639 = vld [vmem:[%s4 + $0x1f0] sm:$0xff]
  %v2640 = vld [vmem:[%s4 + $0x1f8] sm:$0xff]
  %v2641 = vld [vmem:[%s5] sm:$0x3]
  %v2643 = vperm.slane %v2641, 0
  %v2644 = vperm.slane %v2641, 1
  %v2711 = vunpack.c.l.b16 %v2577
  %v2712 = vunpack.c.h.b16 %v2577
  %v2713 = vunpack.c.l.b16 %v2578
  %v2714 = vunpack.c.h.b16 %v2578
  %v2715 = vunpack.c.l.b16 %v2579
  %v2716 = vunpack.c.h.b16 %v2579
  %v2717 = vunpack.c.l.b16 %v2580
  %v2718 = vunpack.c.h.b16 %v2580
  %v2719 = vunpack.c.l.b16 %v2581
  %v2720 = vunpack.c.h.b16 %v2581
  %v2721 = vunpack.c.l.b16 %v2582
  %v2722 = vunpack.c.h.b16 %v2582
  %v2723 = vunpack.c.l.b16 %v2583
  %v2724 = vunpack.c.h.b16 %v2583
  %v2725 = vunpack.c.l.b16 %v2584
  %v2726 = vunpack.c.h.b16 %v2584
  %v2727 = vunpack.c.l.b16 %v2585
  %v2728 = vunpack.c.h.b16 %v2585
  %v2729 = vunpack.c.l.b16 %v2586
  %v2730 = vunpack.c.h.b16 %v2586
  %v2731 = vunpack.c.l.b16 %v2587
  %v2732 = vunpack.c.h.b16 %v2587
  %v2733 = vunpack.c.l.b16 %v2588
  %v2734 = vunpack.c.h.b16 %v2588
  %v2735 = vunpack.c.l.b16 %v2589
  %v2736 = vunpack.c.h.b16 %v2589
  %v2737 = vunpack.c.l.b16 %v2590
  %v2738 = vunpack.c.h.b16 %v2590
  %v2739 = vunpack.c.l.b16 %v2591
  %v2740 = vunpack.c.h.b16 %v2591
  %v2741 = vunpack.c.l.b16 %v2592
  %v2742 = vunpack.c.h.b16 %v2592
  %v2743 = vunpack.c.l.b16 %v2593
  %v2744 = vunpack.c.h.b16 %v2593
  %v2745 = vunpack.c.l.b16 %v2594
  %v2746 = vunpack.c.h.b16 %v2594
  %v2747 = vunpack.c.l.b16 %v2595
  %v2748 = vunpack.c.h.b16 %v2595
  %v2749 = vunpack.c.l.b16 %v2596
  %v2750 = vunpack.c.h.b16 %v2596
  %v2751 = vunpack.c.l.b16 %v2597
  %v2752 = vunpack.c.h.b16 %v2597
  %v2753 = vunpack.c.l.b16 %v2598
  %v2754 = vunpack.c.h.b16 %v2598
  %v2755 = vunpack.c.l.b16 %v2599
  %v2756 = vunpack.c.h.b16 %v2599
  %v2757 = vunpack.c.l.b16 %v2600
  %v2758 = vunpack.c.h.b16 %v2600
  %v2759 = vunpack.c.l.b16 %v2601
  %v2760 = vunpack.c.h.b16 %v2601
  %v2761 = vunpack.c.l.b16 %v2602
  %v2762 = vunpack.c.h.b16 %v2602
  %v2763 = vunpack.c.l.b16 %v2603
  %v2764 = vunpack.c.h.b16 %v2603
  %v2765 = vunpack.c.l.b16 %v2604
  %v2766 = vunpack.c.h.b16 %v2604
  %v2767 = vunpack.c.l.b16 %v2605
  %v2768 = vunpack.c.h.b16 %v2605
  %v2769 = vunpack.c.l.b16 %v2606
  %v2770 = vunpack.c.h.b16 %v2606
  %v2771 = vunpack.c.l.b16 %v2607
  %v2772 = vunpack.c.h.b16 %v2607
  %v2773 = vunpack.c.l.b16 %v2608
  %v2774 = vunpack.c.h.b16 %v2608
  %v2775 = vunpack.c.l.b16 %v2609
  %v2776 = vunpack.c.h.b16 %v2609
  %v2777 = vunpack.c.l.b16 %v2610
  %v2778 = vunpack.c.h.b16 %v2610
  %v2779 = vunpack.c.l.b16 %v2611
  %v2780 = vunpack.c.h.b16 %v2611
  %v2781 = vunpack.c.l.b16 %v2612
  %v2782 = vunpack.c.h.b16 %v2612
  %v2783 = vunpack.c.l.b16 %v2613
  %v2784 = vunpack.c.h.b16 %v2613
  %v2785 = vunpack.c.l.b16 %v2614
  %v2786 = vunpack.c.h.b16 %v2614
  %v2787 = vunpack.c.l.b16 %v2615
  %v2788 = vunpack.c.h.b16 %v2615
  %v2789 = vunpack.c.l.b16 %v2616
  %v2790 = vunpack.c.h.b16 %v2616
  %v2791 = vunpack.c.l.b16 %v2617
  %v2792 = vunpack.c.h.b16 %v2617
  %v2793 = vunpack.c.l.b16 %v2618
  %v2794 = vunpack.c.h.b16 %v2618
  %v2795 = vunpack.c.l.b16 %v2619
  %v2796 = vunpack.c.h.b16 %v2619
  %v2797 = vunpack.c.l.b16 %v2620
  %v2798 = vunpack.c.h.b16 %v2620
  %v2799 = vunpack.c.l.b16 %v2621
  %v2800 = vunpack.c.h.b16 %v2621
  %v2801 = vunpack.c.l.b16 %v2622
  %v2802 = vunpack.c.h.b16 %v2622
  %v2803 = vunpack.c.l.b16 %v2623
  %v2804 = vunpack.c.h.b16 %v2623
  %v2805 = vunpack.c.l.b16 %v2624
  %v2806 = vunpack.c.h.b16 %v2624
  %v2807 = vunpack.c.l.b16 %v2625
  %v2808 = vunpack.c.h.b16 %v2625
  %v2809 = vunpack.c.l.b16 %v2626
  %v2810 = vunpack.c.h.b16 %v2626
  %v2811 = vunpack.c.l.b16 %v2627
  %v2812 = vunpack.c.h.b16 %v2627
  %v2813 = vunpack.c.l.b16 %v2628
  %v2814 = vunpack.c.h.b16 %v2628
  %v2815 = vunpack.c.l.b16 %v2629
  %v2816 = vunpack.c.h.b16 %v2629
  %v2817 = vunpack.c.l.b16 %v2630
  %v2818 = vunpack.c.h.b16 %v2630
  %v2819 = vunpack.c.l.b16 %v2631
  %v2820 = vunpack.c.h.b16 %v2631
  %v2821 = vunpack.c.l.b16 %v2632
  %v2822 = vunpack.c.h.b16 %v2632
  %v2823 = vunpack.c.l.b16 %v2633
  %v2824 = vunpack.c.h.b16 %v2633
  %v2825 = vunpack.c.l.b16 %v2634
  %v2826 = vunpack.c.h.b16 %v2634
  %v2827 = vunpack.c.l.b16 %v2635
  %v2828 = vunpack.c.h.b16 %v2635
  %v2829 = vunpack.c.l.b16 %v2636
  %v2830 = vunpack.c.h.b16 %v2636
  %v2831 = vunpack.c.l.b16 %v2637
  %v2832 = vunpack.c.h.b16 %v2637
  %v2833 = vunpack.c.l.b16 %v2638
  %v2834 = vunpack.c.h.b16 %v2638
  %v2835 = vunpack.c.l.b16 %v2639
  %v2836 = vunpack.c.h.b16 %v2639
  %v2837 = vunpack.c.l.b16 %v2640
  %v2838 = vunpack.c.h.b16 %v2640
  %v2839 = vpack.c.b16 %v2713, %v2711
  %v2840 = vpack.c.b16 %v2714, %v2712
  %v2841 = vpack.c.b16 %v2717, %v2715
  %v2842 = vpack.c.b16 %v2718, %v2716
  %v2843 = vpack.c.b16 %v2721, %v2719
  %v2844 = vpack.c.b16 %v2722, %v2720
  %v2845 = vpack.c.b16 %v2725, %v2723
  %v2846 = vpack.c.b16 %v2726, %v2724
  %v2847 = vpack.c.b16 %v2729, %v2727
  %v2848 = vpack.c.b16 %v2730, %v2728
  %v2849 = vpack.c.b16 %v2733, %v2731
  %v2850 = vpack.c.b16 %v2734, %v2732
  %v2851 = vpack.c.b16 %v2737, %v2735
  %v2852 = vpack.c.b16 %v2738, %v2736
  %v2853 = vpack.c.b16 %v2741, %v2739
  %v2854 = vpack.c.b16 %v2742, %v2740
  %v2855 = vpack.c.b16 %v2745, %v2743
  %v2856 = vpack.c.b16 %v2746, %v2744
  %v2857 = vpack.c.b16 %v2749, %v2747
  %v2858 = vpack.c.b16 %v2750, %v2748
  %v2859 = vpack.c.b16 %v2753, %v2751
  %v2860 = vpack.c.b16 %v2754, %v2752
  %v2861 = vpack.c.b16 %v2757, %v2755
  %v2862 = vpack.c.b16 %v2758, %v2756
  %v2863 = vpack.c.b16 %v2761, %v2759
  %v2864 = vpack.c.b16 %v2762, %v2760
  %v2865 = vpack.c.b16 %v2765, %v2763
  %v2866 = vpack.c.b16 %v2766, %v2764
  %v2867 = vpack.c.b16 %v2769, %v2767
  %v2868 = vpack.c.b16 %v2770, %v2768
  %v2869 = vpack.c.b16 %v2773, %v2771
  %v2870 = vpack.c.b16 %v2774, %v2772
  %v2871 = vpack.c.b16 %v2777, %v2775
  %v2872 = vpack.c.b16 %v2778, %v2776
  %v2873 = vpack.c.b16 %v2781, %v2779
  %v2874 = vpack.c.b16 %v2782, %v2780
  %v2875 = vpack.c.b16 %v2785, %v2783
  %v2876 = vpack.c.b16 %v2786, %v2784
  %v2877 = vpack.c.b16 %v2789, %v2787
  %v2878 = vpack.c.b16 %v2790, %v2788
  %v2879 = vpack.c.b16 %v2793, %v2791
  %v2880 = vpack.c.b16 %v2794, %v2792
  %v2881 = vpack.c.b16 %v2797, %v2795
  %v2882 = vpack.c.b16 %v2798, %v2796
  %v2883 = vpack.c.b16 %v2801, %v2799
  %v2884 = vpack.c.b16 %v2802, %v2800
  %v2885 = vpack.c.b16 %v2805, %v2803
  %v2886 = vpack.c.b16 %v2806, %v2804
  %v2887 = vpack.c.b16 %v2809, %v2807
  %v2888 = vpack.c.b16 %v2810, %v2808
  %v2889 = vpack.c.b16 %v2813, %v2811
  %v2890 = vpack.c.b16 %v2814, %v2812
  %v2891 = vpack.c.b16 %v2817, %v2815
  %v2892 = vpack.c.b16 %v2818, %v2816
  %v2893 = vpack.c.b16 %v2821, %v2819
  %v2894 = vpack.c.b16 %v2822, %v2820
  %v2895 = vpack.c.b16 %v2825, %v2823
  %v2896 = vpack.c.b16 %v2826, %v2824
  %v2897 = vpack.c.b16 %v2829, %v2827
  %v2898 = vpack.c.b16 %v2830, %v2828
  %v2899 = vpack.c.b16 %v2833, %v2831
  %v2900 = vpack.c.b16 %v2834, %v2832
  %v2901 = vpack.c.b16 %v2837, %v2835
  %v2902 = vpack.c.b16 %v2838, %v2836
  %2967 = vmatpush.bf16.msra.mxu0 %v2853
  %2968 = vmatpush.bf16.msra.mxu0 %v2851
  %2969 = vmatpush.bf16.msra.mxu0 %v2849
  %2970 = vmatpush.bf16.msra.mxu0 %v2847
  %2971 = vmatpush.bf16.msra.mxu0 %v2845
  %2972 = vmatpush.bf16.msra.mxu0 %v2843
  %2973 = vmatpush.bf16.msra.mxu0 %v2841
  %2974 = vmatpush.bf16.msra.mxu0 %v2839
  %2975 = vmatmul.bf16.gmra.mxu0 %v2573
  %v2976 = vpop.f32.mrf.mxu0
  %v2977 = vadd.f32 %v2643, %v2976
  %v2978 = vpop.f32.mrf.mxu0
  %2979 = vdwg.mxu0
  %2980 = vmatpush.bf16.msra.mxu0 %v2869
  %2981 = vmatpush.bf16.msra.mxu0 %v2867
  %2982 = vmatpush.bf16.msra.mxu0 %v2865
  %2983 = vmatpush.bf16.msra.mxu0 %v2863
  %2984 = vmatpush.bf16.msra.mxu0 %v2861
  %2985 = vmatpush.bf16.msra.mxu0 %v2859
  %2986 = vmatpush.bf16.msra.mxu0 %v2857
  %2987 = vmatpush.bf16.msra.mxu0 %v2855
  %2988 = vmatmul.bf16.gmra.mxu0 %v2574
  %v2989 = vpop.f32.mrf.mxu0
  %v2990 = vadd.f32 %v2977, %v2989
  %v2991 = vpop.f32.mrf.mxu0
  %2992 = vdwg.mxu0
  %2993 = vmatpush.bf16.msra.mxu0 %v2885
  %2994 = vmatpush.bf16.msra.mxu0 %v2883
  %2995 = vmatpush.bf16.msra.mxu0 %v2881
  %2996 = vmatpush.bf16.msra.mxu0 %v2879
  %2997 = vmatpush.bf16.msra.mxu0 %v2877
  %2998 = vmatpush.bf16.msra.mxu0 %v2875
  %2999 = vmatpush.bf16.msra.mxu0 %v2873
  %3000 = vmatpush.bf16.msra.mxu0 %v2871
  %3001 = vmatmul.bf16.gmra.mxu0 %v2575
  %v3002 = vpop.f32.mrf.mxu0
  %v3003 = vadd.f32 %v2990, %v3002
  %v3004 = vpop.f32.mrf.mxu0
  %3005 = vdwg.mxu0
  %3006 = vmatpush.bf16.msra.mxu0 %v2901
  %3007 = vmatpush.bf16.msra.mxu0 %v2899
  %3008 = vmatpush.bf16.msra.mxu0 %v2897
  %3009 = vmatpush.bf16.msra.mxu0 %v2895
  %3010 = vmatpush.bf16.msra.mxu0 %v2893
  %3011 = vmatpush.bf16.msra.mxu0 %v2891
  %3012 = vmatpush.bf16.msra.mxu0 %v2889
  %3013 = vmatpush.bf16.msra.mxu0 %v2887
  %3014 = vmatmul.bf16.gmra.mxu0 %v2576
  %v3015 = vpop.f32.mrf.mxu0
  %v3016 = vadd.f32 %v3003, %v3015
  %v3017 = vpop.f32.mrf.mxu0
  %3018 = vdwg.mxu0
  %3019 = vmatpush.bf16.msra.mxu0 %v2854
  %3020 = vmatpush.bf16.msra.mxu0 %v2852
  %3021 = vmatpush.bf16.msra.mxu0 %v2850
  %3022 = vmatpush.bf16.msra.mxu0 %v2848
  %3023 = vmatpush.bf16.msra.mxu0 %v2846
  %3024 = vmatpush.bf16.msra.mxu0 %v2844
  %3025 = vmatpush.bf16.msra.mxu0 %v2842
  %3026 = vmatpush.bf16.msra.mxu0 %v2840
  %3027 = vmatmul.bf16.gmra.mxu0 %v2573
  %v3028 = vpop.f32.mrf.mxu0
  %v3029 = vadd.f32 %v2644, %v3028
  %v3030 = vpop.f32.mrf.mxu0
  %3031 = vdwg.mxu0
  %3032 = vmatpush.bf16.msra.mxu0 %v2870
  %3033 = vmatpush.bf16.msra.mxu0 %v2868
  %3034 = vmatpush.bf16.msra.mxu0 %v2866
  %3035 = vmatpush.bf16.msra.mxu0 %v2864
  %3036 = vmatpush.bf16.msra.mxu0 %v2862
  %3037 = vmatpush.bf16.msra.mxu0 %v2860
  %3038 = vmatpush.bf16.msra.mxu0 %v2858
  %3039 = vmatpush.bf16.msra.mxu0 %v2856
  %3040 = vmatmul.bf16.gmra.mxu0 %v2574
  %v3041 = vpop.f32.mrf.mxu0
  %v3042 = vadd.f32 %v3029, %v3041
  %v3043 = vpop.f32.mrf.mxu0
  %3044 = vdwg.mxu0
  %3045 = vmatpush.bf16.msra.mxu0 %v2886
  %3046 = vmatpush.bf16.msra.mxu0 %v2884
  %3047 = vmatpush.bf16.msra.mxu0 %v2882
  %3048 = vmatpush.bf16.msra.mxu0 %v2880
  %3049 = vmatpush.bf16.msra.mxu0 %v2878
  %3050 = vmatpush.bf16.msra.mxu0 %v2876
  %3051 = vmatpush.bf16.msra.mxu0 %v2874
  %3052 = vmatpush.bf16.msra.mxu0 %v2872
  %3053 = vmatmul.bf16.gmra.mxu0 %v2575
  %v3054 = vpop.f32.mrf.mxu0
  %v3055 = vadd.f32 %v3042, %v3054
  %v3056 = vpop.f32.mrf.mxu0
  %3057 = vdwg.mxu0
  %3058 = vmatpush.bf16.msra.mxu0 %v2902
  %3059 = vmatpush.bf16.msra.mxu0 %v2900
  %3060 = vmatpush.bf16.msra.mxu0 %v2898
  %3061 = vmatpush.bf16.msra.mxu0 %v2896
  %3062 = vmatpush.bf16.msra.mxu0 %v2894
  %3063 = vmatpush.bf16.msra.mxu0 %v2892
  %3064 = vmatpush.bf16.msra.mxu0 %v2890
  %3065 = vmatpush.bf16.msra.mxu0 %v2888
  %3066 = vmatmul.bf16.gmra.mxu0 %v2576
  %v3067 = vpop.f32.mrf.mxu0
  %v3068 = vadd.f32 %v3055, %v3067
  %v3069 = vpop.f32.mrf.mxu0
  %3070 = vdwg.mxu0
  %v3071 = vmax.f32 %v3016, 0.0
  %v3072 = vmax.f32 %v3068, 0.0
  %v3073 = vpack.c.bf16 %v3071, %v3071
  %v3074 = vpack.c.bf16 %v3072, %v3072
  %v3075 = vld [vmem:[%s6] sm:$0xf]
  %v3076 = vld [vmem:[%s6 + $0x4] sm:$0xf]
  %v3077 = vld [vmem:[%s6 + $0x8] sm:$0xf]
  %v3078 = vld [vmem:[%s6 + $0xc] sm:$0xf]
  %v3079 = vld [vmem:[%s6 + $0x10] sm:$0xf]
  %v3080 = vld [vmem:[%s6 + $0x14] sm:$0xf]
  %v3081 = vld [vmem:[%s6 + $0x18] sm:$0xf]
  %v3082 = vld [vmem:[%s6 + $0x1c] sm:$0xf]
  %v3083 = vld [vmem:[%s6 + $0x20] sm:$0xf]
  %v3084 = vld [vmem:[%s6 + $0x24] sm:$0xf]
  %v3085 = vld [vmem:[%s6 + $0x28] sm:$0xf]
  %v3086 = vld [vmem:[%s6 + $0x2c] sm:$0xf]
  %v3087 = vld [vmem:[%s6 + $0x30] sm:$0xf]
  %v3088 = vld [vmem:[%s6 + $0x34] sm:$0xf]
  %v3089 = vld [vmem:[%s6 + $0x38] sm:$0xf]
  %v3090 = vld [vmem:[%s6 + $0x3c] sm:$0xf]
  %v3091 = vld [vmem:[%s6 + $0x40] sm:$0xf]
  %v3092 = vld [vmem:[%s6 + $0x44] sm:$0xf]
  %v3093 = vld [vmem:[%s6 + $0x48] sm:$0xf]
  %v3094 = vld [vmem:[%s6 + $0x4c] sm:$0xf]
  %v3095 = vld [vmem:[%s6 + $0x50] sm:$0xf]
  %v3096 = vld [vmem:[%s6 + $0x54] sm:$0xf]
  %v3097 = vld [vmem:[%s6 + $0x58] sm:$0xf]
  %v3098 = vld [vmem:[%s6 + $0x5c] sm:$0xf]
  %v3099 = vld [vmem:[%s6 + $0x60] sm:$0xf]
  %v3100 = vld [vmem:[%s6 + $0x64] sm:$0xf]
  %v3101 = vld [vmem:[%s6 + $0x68] sm:$0xf]
  %v3102 = vld [vmem:[%s6 + $0x6c] sm:$0xf]
  %v3103 = vld [vmem:[%s6 + $0x70] sm:$0xf]
  %v3104 = vld [vmem:[%s6 + $0x74] sm:$0xf]
  %v3105 = vld [vmem:[%s6 + $0x78] sm:$0xf]
  %v3106 = vld [vmem:[%s6 + $0x7c] sm:$0xf]
  %v3107 = vld [vmem:[%s7] sm:$0x1]
  %v3109 = vperm.slane %v3107, 0
  %v3143 = vunpack.c.l.b16 %v3075
  %v3144 = vunpack.c.l.b16 %v3076
  %v3145 = vunpack.c.l.b16 %v3077
  %v3146 = vunpack.c.l.b16 %v3078
  %v3147 = vunpack.c.l.b16 %v3079
  %v3148 = vunpack.c.l.b16 %v3080
  %v3149 = vunpack.c.l.b16 %v3081
  %v3150 = vunpack.c.l.b16 %v3082
  %v3151 = vunpack.c.l.b16 %v3083
  %v3152 = vunpack.c.l.b16 %v3084
  %v3153 = vunpack.c.l.b16 %v3085
  %v3154 = vunpack.c.l.b16 %v3086
  %v3155 = vunpack.c.l.b16 %v3087
  %v3156 = vunpack.c.l.b16 %v3088
  %v3157 = vunpack.c.l.b16 %v3089
  %v3158 = vunpack.c.l.b16 %v3090
  %v3159 = vunpack.c.l.b16 %v3091
  %v3160 = vunpack.c.l.b16 %v3092
  %v3161 = vunpack.c.l.b16 %v3093
  %v3162 = vunpack.c.l.b16 %v3094
  %v3163 = vunpack.c.l.b16 %v3095
  %v3164 = vunpack.c.l.b16 %v3096
  %v3165 = vunpack.c.l.b16 %v3097
  %v3166 = vunpack.c.l.b16 %v3098
  %v3167 = vunpack.c.l.b16 %v3099
  %v3168 = vunpack.c.l.b16 %v3100
  %v3169 = vunpack.c.l.b16 %v3101
  %v3170 = vunpack.c.l.b16 %v3102
  %v3171 = vunpack.c.l.b16 %v3103
  %v3172 = vunpack.c.l.b16 %v3104
  %v3173 = vunpack.c.l.b16 %v3105
  %v3174 = vunpack.c.l.b16 %v3106
  %v3175 = vpack.c.b16 %v3144, %v3143
  %v3176 = vpack.c.b16 %v3146, %v3145
  %v3177 = vpack.c.b16 %v3148, %v3147
  %v3178 = vpack.c.b16 %v3150, %v3149
  %v3179 = vpack.c.b16 %v3152, %v3151
  %v3180 = vpack.c.b16 %v3154, %v3153
  %v3181 = vpack.c.b16 %v3156, %v3155
  %v3182 = vpack.c.b16 %v3158, %v3157
  %v3183 = vpack.c.b16 %v3160, %v3159
  %v3184 = vpack.c.b16 %v3162, %v3161
  %v3185 = vpack.c.b16 %v3164, %v3163
  %v3186 = vpack.c.b16 %v3166, %v3165
  %v3187 = vpack.c.b16 %v3168, %v3167
  %v3188 = vpack.c.b16 %v3170, %v3169
  %v3189 = vpack.c.b16 %v3172, %v3171
  %v3190 = vpack.c.b16 %v3174, %v3173
  %3207 = vmatpush.bf16.msra.mxu0 %v3182
  %3208 = vmatpush.bf16.msra.mxu0 %v3181
  %3209 = vmatpush.bf16.msra.mxu0 %v3180
  %3210 = vmatpush.bf16.msra.mxu0 %v3179
  %3211 = vmatpush.bf16.msra.mxu0 %v3178
  %3212 = vmatpush.bf16.msra.mxu0 %v3177
  %3213 = vmatpush.bf16.msra.mxu0 %v3176
  %3214 = vmatpush.bf16.msra.mxu0 %v3175
  %3215 = vmatmul.bf16.gmra.mxu0 %v3073
  %v3216 = vpop.f32.mrf.mxu0
  %v3217 = vadd.f32 %v3109, %v3216
  %v3218 = vpop.f32.mrf.mxu0
  %3219 = vdwg.mxu0
  %3220 = vmatpush.bf16.msra.mxu0 %v3190
  %3221 = vmatpush.bf16.msra.mxu0 %v3189
  %3222 = vmatpush.bf16.msra.mxu0 %v3188
  %3223 = vmatpush.bf16.msra.mxu0 %v3187
  %3224 = vmatpush.bf16.msra.mxu0 %v3186
  %3225 = vmatpush.bf16.msra.mxu0 %v3185
  %3226 = vmatpush.bf16.msra.mxu0 %v3184
  %3227 = vmatpush.bf16.msra.mxu0 %v3183
  %3228 = vmatmul.bf16.gmra.mxu0 %v3074
  %v3229 = vpop.f32.mrf.mxu0
  %v3230 = vadd.f32 %v3217, %v3229
  %v3231 = vpop.f32.mrf.mxu0
  %3232 = vdwg.mxu0
  %vm3233 = vcmask 254976
  %3234 = vst.msk [vmem:[%s15] sm:$0x3] %vm3233, %v3230
  %v3235 = vmul.f32 %v3230, 0.5
  %v3236 = vmul.f32 %v3235, 1.442695
  %v3237 = vpow.pop %v3236
  %v3238 = vld [vmem:[%s1] sm:$0x3]
  %3240 = vrot.lane.b32.xlu0 %v3238, 16
  %v3241 = vpop.permute.xlu0 %3240
  %v3243 = vmul.f32 %v3237, %v3241
  %3245 = vrot.lane.b32.xlu0 %v3243, 112
  %v3246 = vpop.permute.xlu0 %3245
  %v3248 = vadd.f32 %v3230, %v3246
  %v3249 = vpack.c.bf16 %v3248, %v3248
  %v3250 = vld [vmem:[%s8] sm:$0xff]
  %v3251 = vld [vmem:[%s8 + $0x8] sm:$0xff]
  %v3252 = vld [vmem:[%s9] sm:$0x3]
  %v3254 = vperm.slane %v3252, 0
  %v3255 = vperm.slane %v3252, 1
  %v3260 = vunpack.c.l.b16 %v3250
  %v3261 = vunpack.c.h.b16 %v3250
  %v3262 = vunpack.c.l.b16 %v3251
  %v3263 = vunpack.c.h.b16 %v3251
  %v3264 = vpack.c.b16 %v3262, %v3260
  %v3265 = vpack.c.b16 %v3263, %v3261
  %vm3268 = vcmask 130048
  %v3270 = vsel %vm3268, %v3249, 0
  %3272 = vmatpush.bf16.msra.mxu0 0
  %3273 = vmatpush.bf16.msra.mxu0 0
  %3274 = vmatpush.bf16.msra.mxu0 0
  %3275 = vmatpush.bf16.msra.mxu0 0
  %3276 = vmatpush.bf16.msra.mxu0 0
  %3277 = vmatpush.bf16.msra.mxu0 0
  %3278 = vmatpush.bf16.msra.mxu0 0
  %3279 = vmatpush.bf16.msra.mxu0 %v3264
  %3280 = vmatmul.bf16.gmra.mxu0 %v3270
  %v3281 = vpop.f32.mrf.mxu0
  %v3282 = vadd.f32 %v3254, %v3281
  %v3283 = vpop.f32.mrf.mxu0
  %3284 = vdwg.mxu0
  %3285 = vmatpush.bf16.msra.mxu0 0
  %3286 = vmatpush.bf16.msra.mxu0 0
  %3287 = vmatpush.bf16.msra.mxu0 0
  %3288 = vmatpush.bf16.msra.mxu0 0
  %3289 = vmatpush.bf16.msra.mxu0 0
  %3290 = vmatpush.bf16.msra.mxu0 0
  %3291 = vmatpush.bf16.msra.mxu0 0
  %3292 = vmatpush.bf16.msra.mxu0 %v3265
  %3293 = vmatmul.bf16.gmra.mxu0 %v3270
  %v3294 = vpop.f32.mrf.mxu0
  %v3295 = vadd.f32 %v3255, %v3294
  %v3296 = vpop.f32.mrf.mxu0
  %3297 = vdwg.mxu0
  %v3298 = vmax.f32 %v3282, 0.0
  %v3299 = vmax.f32 %v3295, 0.0
  %v3300 = vpack.c.bf16 %v3298, %v3298
  %v3301 = vpack.c.bf16 %v3299, %v3299
  %v3302 = vld [vmem:[%s10] sm:$0xff]
  %v3303 = vld [vmem:[%s10 + $0x8] sm:$0xff]
  %v3304 = vld [vmem:[%s10 + $0x10] sm:$0xff]
  %v3305 = vld [vmem:[%s10 + $0x18] sm:$0xff]
  %v3306 = vld [vmem:[%s10 + $0x20] sm:$0xff]
  %v3307 = vld [vmem:[%s10 + $0x28] sm:$0xff]
  %v3308 = vld [vmem:[%s10 + $0x30] sm:$0xff]
  %v3309 = vld [vmem:[%s10 + $0x38] sm:$0xff]
  %v3310 = vld [vmem:[%s10 + $0x40] sm:$0xff]
  %v3311 = vld [vmem:[%s10 + $0x48] sm:$0xff]
  %v3312 = vld [vmem:[%s10 + $0x50] sm:$0xff]
  %v3313 = vld [vmem:[%s10 + $0x58] sm:$0xff]
  %v3314 = vld [vmem:[%s10 + $0x60] sm:$0xff]
  %v3315 = vld [vmem:[%s10 + $0x68] sm:$0xff]
  %v3316 = vld [vmem:[%s10 + $0x70] sm:$0xff]
  %v3317 = vld [vmem:[%s10 + $0x78] sm:$0xff]
  %v3318 = vld [vmem:[%s10 + $0x80] sm:$0xff]
  %v3319 = vld [vmem:[%s10 + $0x88] sm:$0xff]
  %v3320 = vld [vmem:[%s10 + $0x90] sm:$0xff]
  %v3321 = vld [vmem:[%s10 + $0x98] sm:$0xff]
  %v3322 = vld [vmem:[%s10 + $0xa0] sm:$0xff]
  %v3323 = vld [vmem:[%s10 + $0xa8] sm:$0xff]
  %v3324 = vld [vmem:[%s10 + $0xb0] sm:$0xff]
  %v3325 = vld [vmem:[%s10 + $0xb8] sm:$0xff]
  %v3326 = vld [vmem:[%s10 + $0xc0] sm:$0xff]
  %v3327 = vld [vmem:[%s10 + $0xc8] sm:$0xff]
  %v3328 = vld [vmem:[%s10 + $0xd0] sm:$0xff]
  %v3329 = vld [vmem:[%s10 + $0xd8] sm:$0xff]
  %v3330 = vld [vmem:[%s10 + $0xe0] sm:$0xff]
  %v3331 = vld [vmem:[%s10 + $0xe8] sm:$0xff]
  %v3332 = vld [vmem:[%s10 + $0xf0] sm:$0xff]
  %v3333 = vld [vmem:[%s10 + $0xf8] sm:$0xff]
  %v3334 = vld [vmem:[%s10 + $0x100] sm:$0xff]
  %v3335 = vld [vmem:[%s10 + $0x108] sm:$0xff]
  %v3336 = vld [vmem:[%s10 + $0x110] sm:$0xff]
  %v3337 = vld [vmem:[%s10 + $0x118] sm:$0xff]
  %v3338 = vld [vmem:[%s10 + $0x120] sm:$0xff]
  %v3339 = vld [vmem:[%s10 + $0x128] sm:$0xff]
  %v3340 = vld [vmem:[%s10 + $0x130] sm:$0xff]
  %v3341 = vld [vmem:[%s10 + $0x138] sm:$0xff]
  %v3342 = vld [vmem:[%s10 + $0x140] sm:$0xff]
  %v3343 = vld [vmem:[%s10 + $0x148] sm:$0xff]
  %v3344 = vld [vmem:[%s10 + $0x150] sm:$0xff]
  %v3345 = vld [vmem:[%s10 + $0x158] sm:$0xff]
  %v3346 = vld [vmem:[%s10 + $0x160] sm:$0xff]
  %v3347 = vld [vmem:[%s10 + $0x168] sm:$0xff]
  %v3348 = vld [vmem:[%s10 + $0x170] sm:$0xff]
  %v3349 = vld [vmem:[%s10 + $0x178] sm:$0xff]
  %v3350 = vld [vmem:[%s10 + $0x180] sm:$0xff]
  %v3351 = vld [vmem:[%s10 + $0x188] sm:$0xff]
  %v3352 = vld [vmem:[%s10 + $0x190] sm:$0xff]
  %v3353 = vld [vmem:[%s10 + $0x198] sm:$0xff]
  %v3354 = vld [vmem:[%s10 + $0x1a0] sm:$0xff]
  %v3355 = vld [vmem:[%s10 + $0x1a8] sm:$0xff]
  %v3356 = vld [vmem:[%s10 + $0x1b0] sm:$0xff]
  %v3357 = vld [vmem:[%s10 + $0x1b8] sm:$0xff]
  %v3358 = vld [vmem:[%s10 + $0x1c0] sm:$0xff]
  %v3359 = vld [vmem:[%s10 + $0x1c8] sm:$0xff]
  %v3360 = vld [vmem:[%s10 + $0x1d0] sm:$0xff]
  %v3361 = vld [vmem:[%s10 + $0x1d8] sm:$0xff]
  %v3362 = vld [vmem:[%s10 + $0x1e0] sm:$0xff]
  %v3363 = vld [vmem:[%s10 + $0x1e8] sm:$0xff]
  %v3364 = vld [vmem:[%s10 + $0x1f0] sm:$0xff]
  %v3365 = vld [vmem:[%s10 + $0x1f8] sm:$0xff]
  %v3366 = vld [vmem:[%s11] sm:$0xf]
  %v3368 = vperm.slane %v3366, 0
  %v3369 = vperm.slane %v3366, 1
  %v3370 = vperm.slane %v3366, 2
  %v3371 = vperm.slane %v3366, 3
  %v3440 = vunpack.c.l.b16 %v3302
  %v3441 = vunpack.c.h.b16 %v3302
  %v3442 = vunpack.c.l.b16 %v3303
  %v3443 = vunpack.c.h.b16 %v3303
  %v3444 = vunpack.c.l.b16 %v3304
  %v3445 = vunpack.c.h.b16 %v3304
  %v3446 = vunpack.c.l.b16 %v3305
  %v3447 = vunpack.c.h.b16 %v3305
  %v3448 = vunpack.c.l.b16 %v3306
  %v3449 = vunpack.c.h.b16 %v3306
  %v3450 = vunpack.c.l.b16 %v3307
  %v3451 = vunpack.c.h.b16 %v3307
  %v3452 = vunpack.c.l.b16 %v3308
  %v3453 = vunpack.c.h.b16 %v3308
  %v3454 = vunpack.c.l.b16 %v3309
  %v3455 = vunpack.c.h.b16 %v3309
  %v3456 = vunpack.c.l.b16 %v3310
  %v3457 = vunpack.c.h.b16 %v3310
  %v3458 = vunpack.c.l.b16 %v3311
  %v3459 = vunpack.c.h.b16 %v3311
  %v3460 = vunpack.c.l.b16 %v3312
  %v3461 = vunpack.c.h.b16 %v3312
  %v3462 = vunpack.c.l.b16 %v3313
  %v3463 = vunpack.c.h.b16 %v3313
  %v3464 = vunpack.c.l.b16 %v3314
  %v3465 = vunpack.c.h.b16 %v3314
  %v3466 = vunpack.c.l.b16 %v3315
  %v3467 = vunpack.c.h.b16 %v3315
  %v3468 = vunpack.c.l.b16 %v3316
  %v3469 = vunpack.c.h.b16 %v3316
  %v3470 = vunpack.c.l.b16 %v3317
  %v3471 = vunpack.c.h.b16 %v3317
  %v3472 = vunpack.c.l.b16 %v3318
  %v3473 = vunpack.c.h.b16 %v3318
  %v3474 = vunpack.c.l.b16 %v3319
  %v3475 = vunpack.c.h.b16 %v3319
  %v3476 = vunpack.c.l.b16 %v3320
  %v3477 = vunpack.c.h.b16 %v3320
  %v3478 = vunpack.c.l.b16 %v3321
  %v3479 = vunpack.c.h.b16 %v3321
  %v3480 = vunpack.c.l.b16 %v3322
  %v3481 = vunpack.c.h.b16 %v3322
  %v3482 = vunpack.c.l.b16 %v3323
  %v3483 = vunpack.c.h.b16 %v3323
  %v3484 = vunpack.c.l.b16 %v3324
  %v3485 = vunpack.c.h.b16 %v3324
  %v3486 = vunpack.c.l.b16 %v3325
  %v3487 = vunpack.c.h.b16 %v3325
  %v3488 = vunpack.c.l.b16 %v3326
  %v3489 = vunpack.c.h.b16 %v3326
  %v3490 = vunpack.c.l.b16 %v3327
  %v3491 = vunpack.c.h.b16 %v3327
  %v3492 = vunpack.c.l.b16 %v3328
  %v3493 = vunpack.c.h.b16 %v3328
  %v3494 = vunpack.c.l.b16 %v3329
  %v3495 = vunpack.c.h.b16 %v3329
  %v3496 = vunpack.c.l.b16 %v3330
  %v3497 = vunpack.c.h.b16 %v3330
  %v3498 = vunpack.c.l.b16 %v3331
  %v3499 = vunpack.c.h.b16 %v3331
  %v3500 = vunpack.c.l.b16 %v3332
  %v3501 = vunpack.c.h.b16 %v3332
  %v3502 = vunpack.c.l.b16 %v3333
  %v3503 = vunpack.c.h.b16 %v3333
  %v3504 = vunpack.c.l.b16 %v3334
  %v3505 = vunpack.c.h.b16 %v3334
  %v3506 = vunpack.c.l.b16 %v3335
  %v3507 = vunpack.c.h.b16 %v3335
  %v3508 = vunpack.c.l.b16 %v3336
  %v3509 = vunpack.c.h.b16 %v3336
  %v3510 = vunpack.c.l.b16 %v3337
  %v3511 = vunpack.c.h.b16 %v3337
  %v3512 = vunpack.c.l.b16 %v3338
  %v3513 = vunpack.c.h.b16 %v3338
  %v3514 = vunpack.c.l.b16 %v3339
  %v3515 = vunpack.c.h.b16 %v3339
  %v3516 = vunpack.c.l.b16 %v3340
  %v3517 = vunpack.c.h.b16 %v3340
  %v3518 = vunpack.c.l.b16 %v3341
  %v3519 = vunpack.c.h.b16 %v3341
  %v3520 = vunpack.c.l.b16 %v3342
  %v3521 = vunpack.c.h.b16 %v3342
  %v3522 = vunpack.c.l.b16 %v3343
  %v3523 = vunpack.c.h.b16 %v3343
  %v3524 = vunpack.c.l.b16 %v3344
  %v3525 = vunpack.c.h.b16 %v3344
  %v3526 = vunpack.c.l.b16 %v3345
  %v3527 = vunpack.c.h.b16 %v3345
  %v3528 = vunpack.c.l.b16 %v3346
  %v3529 = vunpack.c.h.b16 %v3346
  %v3530 = vunpack.c.l.b16 %v3347
  %v3531 = vunpack.c.h.b16 %v3347
  %v3532 = vunpack.c.l.b16 %v3348
  %v3533 = vunpack.c.h.b16 %v3348
  %v3534 = vunpack.c.l.b16 %v3349
  %v3535 = vunpack.c.h.b16 %v3349
  %v3536 = vunpack.c.l.b16 %v3350
  %v3537 = vunpack.c.h.b16 %v3350
  %v3538 = vunpack.c.l.b16 %v3351
  %v3539 = vunpack.c.h.b16 %v3351
  %v3540 = vunpack.c.l.b16 %v3352
  %v3541 = vunpack.c.h.b16 %v3352
  %v3542 = vunpack.c.l.b16 %v3353
  %v3543 = vunpack.c.h.b16 %v3353
  %v3544 = vunpack.c.l.b16 %v3354
  %v3545 = vunpack.c.h.b16 %v3354
  %v3546 = vunpack.c.l.b16 %v3355
  %v3547 = vunpack.c.h.b16 %v3355
  %v3548 = vunpack.c.l.b16 %v3356
  %v3549 = vunpack.c.h.b16 %v3356
  %v3550 = vunpack.c.l.b16 %v3357
  %v3551 = vunpack.c.h.b16 %v3357
  %v3552 = vunpack.c.l.b16 %v3358
  %v3553 = vunpack.c.h.b16 %v3358
  %v3554 = vunpack.c.l.b16 %v3359
  %v3555 = vunpack.c.h.b16 %v3359
  %v3556 = vunpack.c.l.b16 %v3360
  %v3557 = vunpack.c.h.b16 %v3360
  %v3558 = vunpack.c.l.b16 %v3361
  %v3559 = vunpack.c.h.b16 %v3361
  %v3560 = vunpack.c.l.b16 %v3362
  %v3561 = vunpack.c.h.b16 %v3362
  %v3562 = vunpack.c.l.b16 %v3363
  %v3563 = vunpack.c.h.b16 %v3363
  %v3564 = vunpack.c.l.b16 %v3364
  %v3565 = vunpack.c.h.b16 %v3364
  %v3566 = vunpack.c.l.b16 %v3365
  %v3567 = vunpack.c.h.b16 %v3365
  %v3568 = vpack.c.b16 %v3444, %v3440
  %v3569 = vpack.c.b16 %v3445, %v3441
  %v3570 = vpack.c.b16 %v3446, %v3442
  %v3571 = vpack.c.b16 %v3447, %v3443
  %v3572 = vpack.c.b16 %v3452, %v3448
  %v3573 = vpack.c.b16 %v3453, %v3449
  %v3574 = vpack.c.b16 %v3454, %v3450
  %v3575 = vpack.c.b16 %v3455, %v3451
  %v3576 = vpack.c.b16 %v3460, %v3456
  %v3577 = vpack.c.b16 %v3461, %v3457
  %v3578 = vpack.c.b16 %v3462, %v3458
  %v3579 = vpack.c.b16 %v3463, %v3459
  %v3580 = vpack.c.b16 %v3468, %v3464
  %v3581 = vpack.c.b16 %v3469, %v3465
  %v3582 = vpack.c.b16 %v3470, %v3466
  %v3583 = vpack.c.b16 %v3471, %v3467
  %v3584 = vpack.c.b16 %v3476, %v3472
  %v3585 = vpack.c.b16 %v3477, %v3473
  %v3586 = vpack.c.b16 %v3478, %v3474
  %v3587 = vpack.c.b16 %v3479, %v3475
  %v3588 = vpack.c.b16 %v3484, %v3480
  %v3589 = vpack.c.b16 %v3485, %v3481
  %v3590 = vpack.c.b16 %v3486, %v3482
  %v3591 = vpack.c.b16 %v3487, %v3483
  %v3592 = vpack.c.b16 %v3492, %v3488
  %v3593 = vpack.c.b16 %v3493, %v3489
  %v3594 = vpack.c.b16 %v3494, %v3490
  %v3595 = vpack.c.b16 %v3495, %v3491
  %v3596 = vpack.c.b16 %v3500, %v3496
  %v3597 = vpack.c.b16 %v3501, %v3497
  %v3598 = vpack.c.b16 %v3502, %v3498
  %v3599 = vpack.c.b16 %v3503, %v3499
  %v3600 = vpack.c.b16 %v3508, %v3504
  %v3601 = vpack.c.b16 %v3509, %v3505
  %v3602 = vpack.c.b16 %v3510, %v3506
  %v3603 = vpack.c.b16 %v3511, %v3507
  %v3604 = vpack.c.b16 %v3516, %v3512
  %v3605 = vpack.c.b16 %v3517, %v3513
  %v3606 = vpack.c.b16 %v3518, %v3514
  %v3607 = vpack.c.b16 %v3519, %v3515
  %v3608 = vpack.c.b16 %v3524, %v3520
  %v3609 = vpack.c.b16 %v3525, %v3521
  %v3610 = vpack.c.b16 %v3526, %v3522
  %v3611 = vpack.c.b16 %v3527, %v3523
  %v3612 = vpack.c.b16 %v3532, %v3528
  %v3613 = vpack.c.b16 %v3533, %v3529
  %v3614 = vpack.c.b16 %v3534, %v3530
  %v3615 = vpack.c.b16 %v3535, %v3531
  %v3616 = vpack.c.b16 %v3540, %v3536
  %v3617 = vpack.c.b16 %v3541, %v3537
  %v3618 = vpack.c.b16 %v3542, %v3538
  %v3619 = vpack.c.b16 %v3543, %v3539
  %v3620 = vpack.c.b16 %v3548, %v3544
  %v3621 = vpack.c.b16 %v3549, %v3545
  %v3622 = vpack.c.b16 %v3550, %v3546
  %v3623 = vpack.c.b16 %v3551, %v3547
  %v3624 = vpack.c.b16 %v3556, %v3552
  %v3625 = vpack.c.b16 %v3557, %v3553
  %v3626 = vpack.c.b16 %v3558, %v3554
  %v3627 = vpack.c.b16 %v3559, %v3555
  %v3628 = vpack.c.b16 %v3564, %v3560
  %v3629 = vpack.c.b16 %v3565, %v3561
  %v3630 = vpack.c.b16 %v3566, %v3562
  %v3631 = vpack.c.b16 %v3567, %v3563
  %3696 = vmatpush.bf16.msra.mxu0 %v3596
  %3697 = vmatpush.bf16.msra.mxu0 %v3592
  %3698 = vmatpush.bf16.msra.mxu0 %v3588
  %3699 = vmatpush.bf16.msra.mxu0 %v3584
  %3700 = vmatpush.bf16.msra.mxu0 %v3580
  %3701 = vmatpush.bf16.msra.mxu0 %v3576
  %3702 = vmatpush.bf16.msra.mxu0 %v3572
  %3703 = vmatpush.bf16.msra.mxu0 %v3568
  %3704 = vmatmul.bf16.gmra.mxu0 %v3300
  %v3705 = vpop.f32.mrf.mxu0
  %v3706 = vadd.f32 %v3368, %v3705
  %v3707 = vpop.f32.mrf.mxu0
  %3708 = vdwg.mxu0
  %3709 = vmatpush.bf16.msra.mxu0 %v3628
  %3710 = vmatpush.bf16.msra.mxu0 %v3624
  %3711 = vmatpush.bf16.msra.mxu0 %v3620
  %3712 = vmatpush.bf16.msra.mxu0 %v3616
  %3713 = vmatpush.bf16.msra.mxu0 %v3612
  %3714 = vmatpush.bf16.msra.mxu0 %v3608
  %3715 = vmatpush.bf16.msra.mxu0 %v3604
  %3716 = vmatpush.bf16.msra.mxu0 %v3600
  %3717 = vmatmul.bf16.gmra.mxu0 %v3301
  %v3718 = vpop.f32.mrf.mxu0
  %v3719 = vadd.f32 %v3706, %v3718
  %v3720 = vpop.f32.mrf.mxu0
  %3721 = vdwg.mxu0
  %3722 = vmatpush.bf16.msra.mxu0 %v3597
  %3723 = vmatpush.bf16.msra.mxu0 %v3593
  %3724 = vmatpush.bf16.msra.mxu0 %v3589
  %3725 = vmatpush.bf16.msra.mxu0 %v3585
  %3726 = vmatpush.bf16.msra.mxu0 %v3581
  %3727 = vmatpush.bf16.msra.mxu0 %v3577
  %3728 = vmatpush.bf16.msra.mxu0 %v3573
  %3729 = vmatpush.bf16.msra.mxu0 %v3569
  %3730 = vmatmul.bf16.gmra.mxu0 %v3300
  %v3731 = vpop.f32.mrf.mxu0
  %v3732 = vadd.f32 %v3369, %v3731
  %v3733 = vpop.f32.mrf.mxu0
  %3734 = vdwg.mxu0
  %3735 = vmatpush.bf16.msra.mxu0 %v3629
  %3736 = vmatpush.bf16.msra.mxu0 %v3625
  %3737 = vmatpush.bf16.msra.mxu0 %v3621
  %3738 = vmatpush.bf16.msra.mxu0 %v3617
  %3739 = vmatpush.bf16.msra.mxu0 %v3613
  %3740 = vmatpush.bf16.msra.mxu0 %v3609
  %3741 = vmatpush.bf16.msra.mxu0 %v3605
  %3742 = vmatpush.bf16.msra.mxu0 %v3601
  %3743 = vmatmul.bf16.gmra.mxu0 %v3301
  %v3744 = vpop.f32.mrf.mxu0
  %v3745 = vadd.f32 %v3732, %v3744
  %v3746 = vpop.f32.mrf.mxu0
  %3747 = vdwg.mxu0
  %3748 = vmatpush.bf16.msra.mxu0 %v3598
  %3749 = vmatpush.bf16.msra.mxu0 %v3594
  %3750 = vmatpush.bf16.msra.mxu0 %v3590
  %3751 = vmatpush.bf16.msra.mxu0 %v3586
  %3752 = vmatpush.bf16.msra.mxu0 %v3582
  %3753 = vmatpush.bf16.msra.mxu0 %v3578
  %3754 = vmatpush.bf16.msra.mxu0 %v3574
  %3755 = vmatpush.bf16.msra.mxu0 %v3570
  %3756 = vmatmul.bf16.gmra.mxu0 %v3300
  %v3757 = vpop.f32.mrf.mxu0
  %v3758 = vadd.f32 %v3370, %v3757
  %v3759 = vpop.f32.mrf.mxu0
  %3760 = vdwg.mxu0
  %3761 = vmatpush.bf16.msra.mxu0 %v3630
  %3762 = vmatpush.bf16.msra.mxu0 %v3626
  %3763 = vmatpush.bf16.msra.mxu0 %v3622
  %3764 = vmatpush.bf16.msra.mxu0 %v3618
  %3765 = vmatpush.bf16.msra.mxu0 %v3614
  %3766 = vmatpush.bf16.msra.mxu0 %v3610
  %3767 = vmatpush.bf16.msra.mxu0 %v3606
  %3768 = vmatpush.bf16.msra.mxu0 %v3602
  %3769 = vmatmul.bf16.gmra.mxu0 %v3301
  %v3770 = vpop.f32.mrf.mxu0
  %v3771 = vadd.f32 %v3758, %v3770
  %v3772 = vpop.f32.mrf.mxu0
  %3773 = vdwg.mxu0
  %3774 = vmatpush.bf16.msra.mxu0 %v3599
  %3775 = vmatpush.bf16.msra.mxu0 %v3595
  %3776 = vmatpush.bf16.msra.mxu0 %v3591
  %3777 = vmatpush.bf16.msra.mxu0 %v3587
  %3778 = vmatpush.bf16.msra.mxu0 %v3583
  %3779 = vmatpush.bf16.msra.mxu0 %v3579
  %3780 = vmatpush.bf16.msra.mxu0 %v3575
  %3781 = vmatpush.bf16.msra.mxu0 %v3571
  %3782 = vmatmul.bf16.gmra.mxu0 %v3300
  %v3783 = vpop.f32.mrf.mxu0
  %v3784 = vadd.f32 %v3371, %v3783
  %v3785 = vpop.f32.mrf.mxu0
  %3786 = vdwg.mxu0
  %3787 = vmatpush.bf16.msra.mxu0 %v3631
  %3788 = vmatpush.bf16.msra.mxu0 %v3627
  %3789 = vmatpush.bf16.msra.mxu0 %v3623
  %3790 = vmatpush.bf16.msra.mxu0 %v3619
  %3791 = vmatpush.bf16.msra.mxu0 %v3615
  %3792 = vmatpush.bf16.msra.mxu0 %v3611
  %3793 = vmatpush.bf16.msra.mxu0 %v3607
  %3794 = vmatpush.bf16.msra.mxu0 %v3603
  %3795 = vmatmul.bf16.gmra.mxu0 %v3301
  %v3796 = vpop.f32.mrf.mxu0
  %v3797 = vadd.f32 %v3784, %v3796
  %v3798 = vpop.f32.mrf.mxu0
  %3799 = vdwg.mxu0
  %v3800 = vmax.f32 %v3719, 0.0
  %v3801 = vmax.f32 %v3745, 0.0
  %v3802 = vmax.f32 %v3771, 0.0
  %v3803 = vmax.f32 %v3797, 0.0
  %s3804 = smul.u32 4, 64
  %s3805 = smul.u32 %s3804, 8
  %s3806 = sshll.u32 %s3805, 4
  %3807 = dma.done [#allocation3], %s3806
  %v3808 = vpack.c.bf16 %v3800, %v3800
  %v3809 = vpack.c.bf16 %v3801, %v3801
  %v3810 = vpack.c.bf16 %v3802, %v3802
  %v3811 = vpack.c.bf16 %v3803, %v3803
  %v3812 = vld [vmem:[#allocation2] sm:$0xff]
  %v3813 = vld [vmem:[#allocation2 + $0x8] sm:$0xff]
  %v3814 = vld [vmem:[#allocation2 + $0x10] sm:$0xff]
  %v3815 = vld [vmem:[#allocation2 + $0x18] sm:$0xff]
  %v3816 = vld [vmem:[#allocation2 + $0x20] sm:$0xff]
  %v3817 = vld [vmem:[#allocation2 + $0x28] sm:$0xff]
  %v3818 = vld [vmem:[#allocation2 + $0x30] sm:$0xff]
  %v3819 = vld [vmem:[#allocation2 + $0x38] sm:$0xff]
  %v3820 = vld [vmem:[#allocation2 + $0x40] sm:$0xff]
  %v3821 = vld [vmem:[#allocation2 + $0x48] sm:$0xff]
  %v3822 = vld [vmem:[#allocation2 + $0x50] sm:$0xff]
  %v3823 = vld [vmem:[#allocation2 + $0x58] sm:$0xff]
  %v3824 = vld [vmem:[#allocation2 + $0x60] sm:$0xff]
  %v3825 = vld [vmem:[#allocation2 + $0x68] sm:$0xff]
  %v3826 = vld [vmem:[#allocation2 + $0x70] sm:$0xff]
  %v3827 = vld [vmem:[#allocation2 + $0x78] sm:$0xff]
  %v3828 = vld [vmem:[#allocation2 + $0x80] sm:$0xff]
  %v3829 = vld [vmem:[#allocation2 + $0x88] sm:$0xff]
  %v3830 = vld [vmem:[#allocation2 + $0x90] sm:$0xff]
  %v3831 = vld [vmem:[#allocation2 + $0x98] sm:$0xff]
  %v3832 = vld [vmem:[#allocation2 + $0xa0] sm:$0xff]
  %v3833 = vld [vmem:[#allocation2 + $0xa8] sm:$0xff]
  %v3834 = vld [vmem:[#allocation2 + $0xb0] sm:$0xff]
  %v3835 = vld [vmem:[#allocation2 + $0xb8] sm:$0xff]
  %v3836 = vld [vmem:[#allocation2 + $0xc0] sm:$0xff]
  %v3837 = vld [vmem:[#allocation2 + $0xc8] sm:$0xff]
  %v3838 = vld [vmem:[#allocation2 + $0xd0] sm:$0xff]
  %v3839 = vld [vmem:[#allocation2 + $0xd8] sm:$0xff]
  %v3840 = vld [vmem:[#allocation2 + $0xe0] sm:$0xff]
  %v3841 = vld [vmem:[#allocation2 + $0xe8] sm:$0xff]
  %v3842 = vld [vmem:[#allocation2 + $0xf0] sm:$0xff]
  %v3843 = vld [vmem:[#allocation2 + $0xf8] sm:$0xff]
  %v3844 = vld [vmem:[#allocation2 + $0x100] sm:$0xff]
  %v3845 = vld [vmem:[#allocation2 + $0x108] sm:$0xff]
  %v3846 = vld [vmem:[#allocation2 + $0x110] sm:$0xff]
  %v3847 = vld [vmem:[#allocation2 + $0x118] sm:$0xff]
  %v3848 = vld [vmem:[#allocation2 + $0x120] sm:$0xff]
  %v3849 = vld [vmem:[#allocation2 + $0x128] sm:$0xff]
  %v3850 = vld [vmem:[#allocation2 + $0x130] sm:$0xff]
  %v3851 = vld [vmem:[#allocation2 + $0x138] sm:$0xff]
  %v3852 = vld [vmem:[#allocation2 + $0x140] sm:$0xff]
  %v3853 = vld [vmem:[#allocation2 + $0x148] sm:$0xff]
  %v3854 = vld [vmem:[#allocation2 + $0x150] sm:$0xff]
  %v3855 = vld [vmem:[#allocation2 + $0x158] sm:$0xff]
  %v3856 = vld [vmem:[#allocation2 + $0x160] sm:$0xff]
  %v3857 = vld [vmem:[#allocation2 + $0x168] sm:$0xff]
  %v3858 = vld [vmem:[#allocation2 + $0x170] sm:$0xff]
  %v3859 = vld [vmem:[#allocation2 + $0x178] sm:$0xff]
  %v3860 = vld [vmem:[#allocation2 + $0x180] sm:$0xff]
  %v3861 = vld [vmem:[#allocation2 + $0x188] sm:$0xff]
  %v3862 = vld [vmem:[#allocation2 + $0x190] sm:$0xff]
  %v3863 = vld [vmem:[#allocation2 + $0x198] sm:$0xff]
  %v3864 = vld [vmem:[#allocation2 + $0x1a0] sm:$0xff]
  %v3865 = vld [vmem:[#allocation2 + $0x1a8] sm:$0xff]
  %v3866 = vld [vmem:[#allocation2 + $0x1b0] sm:$0xff]
  %v3867 = vld [vmem:[#allocation2 + $0x1b8] sm:$0xff]
  %v3868 = vld [vmem:[#allocation2 + $0x1c0] sm:$0xff]
  %v3869 = vld [vmem:[#allocation2 + $0x1c8] sm:$0xff]
  %v3870 = vld [vmem:[#allocation2 + $0x1d0] sm:$0xff]
  %v3871 = vld [vmem:[#allocation2 + $0x1d8] sm:$0xff]
  %v3872 = vld [vmem:[#allocation2 + $0x1e0] sm:$0xff]
  %v3873 = vld [vmem:[#allocation2 + $0x1e8] sm:$0xff]
  %v3874 = vld [vmem:[#allocation2 + $0x1f0] sm:$0xff]
  %v3875 = vld [vmem:[#allocation2 + $0x1f8] sm:$0xff]
  %v3876 = vld [vmem:[#allocation2 + $0x200] sm:$0xff]
  %v3877 = vld [vmem:[#allocation2 + $0x208] sm:$0xff]
  %v3878 = vld [vmem:[#allocation2 + $0x210] sm:$0xff]
  %v3879 = vld [vmem:[#allocation2 + $0x218] sm:$0xff]
  %v3880 = vld [vmem:[#allocation2 + $0x220] sm:$0xff]
  %v3881 = vld [vmem:[#allocation2 + $0x228] sm:$0xff]
  %v3882 = vld [vmem:[#allocation2 + $0x230] sm:$0xff]
  %v3883 = vld [vmem:[#allocation2 + $0x238] sm:$0xff]
  %v3884 = vld [vmem:[#allocation2 + $0x240] sm:$0xff]
  %v3885 = vld [vmem:[#allocation2 + $0x248] sm:$0xff]
  %v3886 = vld [vmem:[#allocation2 + $0x250] sm:$0xff]
  %v3887 = vld [vmem:[#allocation2 + $0x258] sm:$0xff]
  %v3888 = vld [vmem:[#allocation2 + $0x260] sm:$0xff]
  %v3889 = vld [vmem:[#allocation2 + $0x268] sm:$0xff]
  %v3890 = vld [vmem:[#allocation2 + $0x270] sm:$0xff]
  %v3891 = vld [vmem:[#allocation2 + $0x278] sm:$0xff]
  %v3892 = vld [vmem:[#allocation2 + $0x280] sm:$0xff]
  %v3893 = vld [vmem:[#allocation2 + $0x288] sm:$0xff]
  %v3894 = vld [vmem:[#allocation2 + $0x290] sm:$0xff]
  %v3895 = vld [vmem:[#allocation2 + $0x298] sm:$0xff]
  %v3896 = vld [vmem:[#allocation2 + $0x2a0] sm:$0xff]
  %v3897 = vld [vmem:[#allocation2 + $0x2a8] sm:$0xff]
  %v3898 = vld [vmem:[#allocation2 + $0x2b0] sm:$0xff]
  %v3899 = vld [vmem:[#allocation2 + $0x2b8] sm:$0xff]
  %v3900 = vld [vmem:[#allocation2 + $0x2c0] sm:$0xff]
  %v3901 = vld [vmem:[#allocation2 + $0x2c8] sm:$0xff]
  %v3902 = vld [vmem:[#allocation2 + $0x2d0] sm:$0xff]
  %v3903 = vld [vmem:[#allocation2 + $0x2d8] sm:$0xff]
  %v3904 = vld [vmem:[#allocation2 + $0x2e0] sm:$0xff]
  %v3905 = vld [vmem:[#allocation2 + $0x2e8] sm:$0xff]
  %v3906 = vld [vmem:[#allocation2 + $0x2f0] sm:$0xff]
  %v3907 = vld [vmem:[#allocation2 + $0x2f8] sm:$0xff]
  %v3908 = vld [vmem:[#allocation2 + $0x300] sm:$0xff]
  %v3909 = vld [vmem:[#allocation2 + $0x308] sm:$0xff]
  %v3910 = vld [vmem:[#allocation2 + $0x310] sm:$0xff]
  %v3911 = vld [vmem:[#allocation2 + $0x318] sm:$0xff]
  %v3912 = vld [vmem:[#allocation2 + $0x320] sm:$0xff]
  %v3913 = vld [vmem:[#allocation2 + $0x328] sm:$0xff]
  %v3914 = vld [vmem:[#allocation2 + $0x330] sm:$0xff]
  %v3915 = vld [vmem:[#allocation2 + $0x338] sm:$0xff]
  %v3916 = vld [vmem:[#allocation2 + $0x340] sm:$0xff]
  %v3917 = vld [vmem:[#allocation2 + $0x348] sm:$0xff]
  %v3918 = vld [vmem:[#allocation2 + $0x350] sm:$0xff]
  %v3919 = vld [vmem:[#allocation2 + $0x358] sm:$0xff]
  %v3920 = vld [vmem:[#allocation2 + $0x360] sm:$0xff]
  %v3921 = vld [vmem:[#allocation2 + $0x368] sm:$0xff]
  %v3922 = vld [vmem:[#allocation2 + $0x370] sm:$0xff]
  %v3923 = vld [vmem:[#allocation2 + $0x378] sm:$0xff]
  %v3924 = vld [vmem:[#allocation2 + $0x380] sm:$0xff]
  %v3925 = vld [vmem:[#allocation2 + $0x388] sm:$0xff]
  %v3926 = vld [vmem:[#allocation2 + $0x390] sm:$0xff]
  %v3927 = vld [vmem:[#allocation2 + $0x398] sm:$0xff]
  %v3928 = vld [vmem:[#allocation2 + $0x3a0] sm:$0xff]
  %v3929 = vld [vmem:[#allocation2 + $0x3a8] sm:$0xff]
  %v3930 = vld [vmem:[#allocation2 + $0x3b0] sm:$0xff]
  %v3931 = vld [vmem:[#allocation2 + $0x3b8] sm:$0xff]
  %v3932 = vld [vmem:[#allocation2 + $0x3c0] sm:$0xff]
  %v3933 = vld [vmem:[#allocation2 + $0x3c8] sm:$0xff]
  %v3934 = vld [vmem:[#allocation2 + $0x3d0] sm:$0xff]
  %v3935 = vld [vmem:[#allocation2 + $0x3d8] sm:$0xff]
  %v3936 = vld [vmem:[#allocation2 + $0x3e0] sm:$0xff]
  %v3937 = vld [vmem:[#allocation2 + $0x3e8] sm:$0xff]
  %v3938 = vld [vmem:[#allocation2 + $0x3f0] sm:$0xff]
  %v3939 = vld [vmem:[#allocation2 + $0x3f8] sm:$0xff]
  %v3940 = vld [vmem:[#allocation2 + $0x400] sm:$0xff]
  %v3941 = vld [vmem:[#allocation2 + $0x408] sm:$0xff]
  %v3942 = vld [vmem:[#allocation2 + $0x410] sm:$0xff]
  %v3943 = vld [vmem:[#allocation2 + $0x418] sm:$0xff]
  %v3944 = vld [vmem:[#allocation2 + $0x420] sm:$0xff]
  %v3945 = vld [vmem:[#allocation2 + $0x428] sm:$0xff]
  %v3946 = vld [vmem:[#allocation2 + $0x430] sm:$0xff]
  %v3947 = vld [vmem:[#allocation2 + $0x438] sm:$0xff]
  %v3948 = vld [vmem:[#allocation2 + $0x440] sm:$0xff]
  %v3949 = vld [vmem:[#allocation2 + $0x448] sm:$0xff]
  %v3950 = vld [vmem:[#allocation2 + $0x450] sm:$0xff]
  %v3951 = vld [vmem:[#allocation2 + $0x458] sm:$0xff]
  %v3952 = vld [vmem:[#allocation2 + $0x460] sm:$0xff]
  %v3953 = vld [vmem:[#allocation2 + $0x468] sm:$0xff]
  %v3954 = vld [vmem:[#allocation2 + $0x470] sm:$0xff]
  %v3955 = vld [vmem:[#allocation2 + $0x478] sm:$0xff]
  %v3956 = vld [vmem:[#allocation2 + $0x480] sm:$0xff]
  %v3957 = vld [vmem:[#allocation2 + $0x488] sm:$0xff]
  %v3958 = vld [vmem:[#allocation2 + $0x490] sm:$0xff]
  %v3959 = vld [vmem:[#allocation2 + $0x498] sm:$0xff]
  %v3960 = vld [vmem:[#allocation2 + $0x4a0] sm:$0xff]
  %v3961 = vld [vmem:[#allocation2 + $0x4a8] sm:$0xff]
  %v3962 = vld [vmem:[#allocation2 + $0x4b0] sm:$0xff]
  %v3963 = vld [vmem:[#allocation2 + $0x4b8] sm:$0xff]
  %v3964 = vld [vmem:[#allocation2 + $0x4c0] sm:$0xff]
  %v3965 = vld [vmem:[#allocation2 + $0x4c8] sm:$0xff]
  %v3966 = vld [vmem:[#allocation2 + $0x4d0] sm:$0xff]
  %v3967 = vld [vmem:[#allocation2 + $0x4d8] sm:$0xff]
  %v3968 = vld [vmem:[#allocation2 + $0x4e0] sm:$0xff]
  %v3969 = vld [vmem:[#allocation2 + $0x4e8] sm:$0xff]
  %v3970 = vld [vmem:[#allocation2 + $0x4f0] sm:$0xff]
  %v3971 = vld [vmem:[#allocation2 + $0x4f8] sm:$0xff]
  %v3972 = vld [vmem:[#allocation2 + $0x500] sm:$0xff]
  %v3973 = vld [vmem:[#allocation2 + $0x508] sm:$0xff]
  %v3974 = vld [vmem:[#allocation2 + $0x510] sm:$0xff]
  %v3975 = vld [vmem:[#allocation2 + $0x518] sm:$0xff]
  %v3976 = vld [vmem:[#allocation2 + $0x520] sm:$0xff]
  %v3977 = vld [vmem:[#allocation2 + $0x528] sm:$0xff]
  %v3978 = vld [vmem:[#allocation2 + $0x530] sm:$0xff]
  %v3979 = vld [vmem:[#allocation2 + $0x538] sm:$0xff]
  %v3980 = vld [vmem:[#allocation2 + $0x540] sm:$0xff]
  %v3981 = vld [vmem:[#allocation2 + $0x548] sm:$0xff]
  %v3982 = vld [vmem:[#allocation2 + $0x550] sm:$0xff]
  %v3983 = vld [vmem:[#allocation2 + $0x558] sm:$0xff]
  %v3984 = vld [vmem:[#allocation2 + $0x560] sm:$0xff]
  %v3985 = vld [vmem:[#allocation2 + $0x568] sm:$0xff]
  %v3986 = vld [vmem:[#allocation2 + $0x570] sm:$0xff]
  %v3987 = vld [vmem:[#allocation2 + $0x578] sm:$0xff]
  %v3988 = vld [vmem:[#allocation2 + $0x580] sm:$0xff]
  %v3989 = vld [vmem:[#allocation2 + $0x588] sm:$0xff]
  %v3990 = vld [vmem:[#allocation2 + $0x590] sm:$0xff]
  %v3991 = vld [vmem:[#allocation2 + $0x598] sm:$0xff]
  %v3992 = vld [vmem:[#allocation2 + $0x5a0] sm:$0xff]
  %v3993 = vld [vmem:[#allocation2 + $0x5a8] sm:$0xff]
  %v3994 = vld [vmem:[#allocation2 + $0x5b0] sm:$0xff]
  %v3995 = vld [vmem:[#allocation2 + $0x5b8] sm:$0xff]
  %v3996 = vld [vmem:[#allocation2 + $0x5c0] sm:$0xff]
  %v3997 = vld [vmem:[#allocation2 + $0x5c8] sm:$0xff]
  %v3998 = vld [vmem:[#allocation2 + $0x5d0] sm:$0xff]
  %v3999 = vld [vmem:[#allocation2 + $0x5d8] sm:$0xff]
  %v4000 = vld [vmem:[#allocation2 + $0x5e0] sm:$0xff]
  %v4001 = vld [vmem:[#allocation2 + $0x5e8] sm:$0xff]
  %v4002 = vld [vmem:[#allocation2 + $0x5f0] sm:$0xff]
  %v4003 = vld [vmem:[#allocation2 + $0x5f8] sm:$0xff]
  %v4004 = vld [vmem:[#allocation2 + $0x600] sm:$0xff]
  %v4005 = vld [vmem:[#allocation2 + $0x608] sm:$0xff]
  %v4006 = vld [vmem:[#allocation2 + $0x610] sm:$0xff]
  %v4007 = vld [vmem:[#allocation2 + $0x618] sm:$0xff]
  %v4008 = vld [vmem:[#allocation2 + $0x620] sm:$0xff]
  %v4009 = vld [vmem:[#allocation2 + $0x628] sm:$0xff]
  %v4010 = vld [vmem:[#allocation2 + $0x630] sm:$0xff]
  %v4011 = vld [vmem:[#allocation2 + $0x638] sm:$0xff]
  %v4012 = vld [vmem:[#allocation2 + $0x640] sm:$0xff]
  %v4013 = vld [vmem:[#allocation2 + $0x648] sm:$0xff]
  %v4014 = vld [vmem:[#allocation2 + $0x650] sm:$0xff]
  %v4015 = vld [vmem:[#allocation2 + $0x658] sm:$0xff]
  %v4016 = vld [vmem:[#allocation2 + $0x660] sm:$0xff]
  %v4017 = vld [vmem:[#allocation2 + $0x668] sm:$0xff]
  %v4018 = vld [vmem:[#allocation2 + $0x670] sm:$0xff]
  %v4019 = vld [vmem:[#allocation2 + $0x678] sm:$0xff]
  %v4020 = vld [vmem:[#allocation2 + $0x680] sm:$0xff]
  %v4021 = vld [vmem:[#allocation2 + $0x688] sm:$0xff]
  %v4022 = vld [vmem:[#allocation2 + $0x690] sm:$0xff]
  %v4023 = vld [vmem:[#allocation2 + $0x698] sm:$0xff]
  %v4024 = vld [vmem:[#allocation2 + $0x6a0] sm:$0xff]
  %v4025 = vld [vmem:[#allocation2 + $0x6a8] sm:$0xff]
  %v4026 = vld [vmem:[#allocation2 + $0x6b0] sm:$0xff]
  %v4027 = vld [vmem:[#allocation2 + $0x6b8] sm:$0xff]
  %v4028 = vld [vmem:[#allocation2 + $0x6c0] sm:$0xff]
  %v4029 = vld [vmem:[#allocation2 + $0x6c8] sm:$0xff]
  %v4030 = vld [vmem:[#allocation2 + $0x6d0] sm:$0xff]
  %v4031 = vld [vmem:[#allocation2 + $0x6d8] sm:$0xff]
  %v4032 = vld [vmem:[#allocation2 + $0x6e0] sm:$0xff]
  %v4033 = vld [vmem:[#allocation2 + $0x6e8] sm:$0xff]
  %v4034 = vld [vmem:[#allocation2 + $0x6f0] sm:$0xff]
  %v4035 = vld [vmem:[#allocation2 + $0x6f8] sm:$0xff]
  %v4036 = vld [vmem:[#allocation2 + $0x700] sm:$0xff]
  %v4037 = vld [vmem:[#allocation2 + $0x708] sm:$0xff]
  %v4038 = vld [vmem:[#allocation2 + $0x710] sm:$0xff]
  %v4039 = vld [vmem:[#allocation2 + $0x718] sm:$0xff]
  %v4040 = vld [vmem:[#allocation2 + $0x720] sm:$0xff]
  %v4041 = vld [vmem:[#allocation2 + $0x728] sm:$0xff]
  %v4042 = vld [vmem:[#allocation2 + $0x730] sm:$0xff]
  %v4043 = vld [vmem:[#allocation2 + $0x738] sm:$0xff]
  %v4044 = vld [vmem:[#allocation2 + $0x740] sm:$0xff]
  %v4045 = vld [vmem:[#allocation2 + $0x748] sm:$0xff]
  %v4046 = vld [vmem:[#allocation2 + $0x750] sm:$0xff]
  %v4047 = vld [vmem:[#allocation2 + $0x758] sm:$0xff]
  %v4048 = vld [vmem:[#allocation2 + $0x760] sm:$0xff]
  %v4049 = vld [vmem:[#allocation2 + $0x768] sm:$0xff]
  %v4050 = vld [vmem:[#allocation2 + $0x770] sm:$0xff]
  %v4051 = vld [vmem:[#allocation2 + $0x778] sm:$0xff]
  %v4052 = vld [vmem:[#allocation2 + $0x780] sm:$0xff]
  %v4053 = vld [vmem:[#allocation2 + $0x788] sm:$0xff]
  %v4054 = vld [vmem:[#allocation2 + $0x790] sm:$0xff]
  %v4055 = vld [vmem:[#allocation2 + $0x798] sm:$0xff]
  %v4056 = vld [vmem:[#allocation2 + $0x7a0] sm:$0xff]
  %v4057 = vld [vmem:[#allocation2 + $0x7a8] sm:$0xff]
  %v4058 = vld [vmem:[#allocation2 + $0x7b0] sm:$0xff]
  %v4059 = vld [vmem:[#allocation2 + $0x7b8] sm:$0xff]
  %v4060 = vld [vmem:[#allocation2 + $0x7c0] sm:$0xff]
  %v4061 = vld [vmem:[#allocation2 + $0x7c8] sm:$0xff]
  %v4062 = vld [vmem:[#allocation2 + $0x7d0] sm:$0xff]
  %v4063 = vld [vmem:[#allocation2 + $0x7d8] sm:$0xff]
  %v4064 = vld [vmem:[#allocation2 + $0x7e0] sm:$0xff]
  %v4065 = vld [vmem:[#allocation2 + $0x7e8] sm:$0xff]
  %v4066 = vld [vmem:[#allocation2 + $0x7f0] sm:$0xff]
  %v4067 = vld [vmem:[#allocation2 + $0x7f8] sm:$0xff]
  %v4068 = vld [vmem:[%s13] sm:$0xff]
  %v4070 = vperm.slane %v4068, 0
  %v4071 = vperm.slane %v4068, 1
  %v4072 = vperm.slane %v4068, 2
  %v4073 = vperm.slane %v4068, 3
  %v4074 = vperm.slane %v4068, 4
  %v4075 = vperm.slane %v4068, 5
  %v4076 = vperm.slane %v4068, 6
  %v4077 = vperm.slane %v4068, 7
  %v4342 = vunpack.c.l.b16 %v3812
  %v4343 = vunpack.c.h.b16 %v3812
  %v4344 = vunpack.c.l.b16 %v3813
  %v4345 = vunpack.c.h.b16 %v3813
  %v4346 = vunpack.c.l.b16 %v3814
  %v4347 = vunpack.c.h.b16 %v3814
  %v4348 = vunpack.c.l.b16 %v3815
  %v4349 = vunpack.c.h.b16 %v3815
  %v4350 = vunpack.c.l.b16 %v3816
  %v4351 = vunpack.c.h.b16 %v3816
  %v4352 = vunpack.c.l.b16 %v3817
  %v4353 = vunpack.c.h.b16 %v3817
  %v4354 = vunpack.c.l.b16 %v3818
  %v4355 = vunpack.c.h.b16 %v3818
  %v4356 = vunpack.c.l.b16 %v3819
  %v4357 = vunpack.c.h.b16 %v3819
  %v4358 = vunpack.c.l.b16 %v3820
  %v4359 = vunpack.c.h.b16 %v3820
  %v4360 = vunpack.c.l.b16 %v3821
  %v4361 = vunpack.c.h.b16 %v3821
  %v4362 = vunpack.c.l.b16 %v3822
  %v4363 = vunpack.c.h.b16 %v3822
  %v4364 = vunpack.c.l.b16 %v3823
  %v4365 = vunpack.c.h.b16 %v3823
  %v4366 = vunpack.c.l.b16 %v3824
  %v4367 = vunpack.c.h.b16 %v3824
  %v4368 = vunpack.c.l.b16 %v3825
  %v4369 = vunpack.c.h.b16 %v3825
  %v4370 = vunpack.c.l.b16 %v3826
  %v4371 = vunpack.c.h.b16 %v3826
  %v4372 = vunpack.c.l.b16 %v3827
  %v4373 = vunpack.c.h.b16 %v3827
  %v4374 = vunpack.c.l.b16 %v3828
  %v4375 = vunpack.c.h.b16 %v3828
  %v4376 = vunpack.c.l.b16 %v3829
  %v4377 = vunpack.c.h.b16 %v3829
  %v4378 = vunpack.c.l.b16 %v3830
  %v4379 = vunpack.c.h.b16 %v3830
  %v4380 = vunpack.c.l.b16 %v3831
  %v4381 = vunpack.c.h.b16 %v3831
  %v4382 = vunpack.c.l.b16 %v3832
  %v4383 = vunpack.c.h.b16 %v3832
  %v4384 = vunpack.c.l.b16 %v3833
  %v4385 = vunpack.c.h.b16 %v3833
  %v4386 = vunpack.c.l.b16 %v3834
  %v4387 = vunpack.c.h.b16 %v3834
  %v4388 = vunpack.c.l.b16 %v3835
  %v4389 = vunpack.c.h.b16 %v3835
  %v4390 = vunpack.c.l.b16 %v3836
  %v4391 = vunpack.c.h.b16 %v3836
  %v4392 = vunpack.c.l.b16 %v3837
  %v4393 = vunpack.c.h.b16 %v3837
  %v4394 = vunpack.c.l.b16 %v3838
  %v4395 = vunpack.c.h.b16 %v3838
  %v4396 = vunpack.c.l.b16 %v3839
  %v4397 = vunpack.c.h.b16 %v3839
  %v4398 = vunpack.c.l.b16 %v3840
  %v4399 = vunpack.c.h.b16 %v3840
  %v4400 = vunpack.c.l.b16 %v3841
  %v4401 = vunpack.c.h.b16 %v3841
  %v4402 = vunpack.c.l.b16 %v3842
  %v4403 = vunpack.c.h.b16 %v3842
  %v4404 = vunpack.c.l.b16 %v3843
  %v4405 = vunpack.c.h.b16 %v3843
  %v4406 = vunpack.c.l.b16 %v3844
  %v4407 = vunpack.c.h.b16 %v3844
  %v4408 = vunpack.c.l.b16 %v3845
  %v4409 = vunpack.c.h.b16 %v3845
  %v4410 = vunpack.c.l.b16 %v3846
  %v4411 = vunpack.c.h.b16 %v3846
  %v4412 = vunpack.c.l.b16 %v3847
  %v4413 = vunpack.c.h.b16 %v3847
  %v4414 = vunpack.c.l.b16 %v3848
  %v4415 = vunpack.c.h.b16 %v3848
  %v4416 = vunpack.c.l.b16 %v3849
  %v4417 = vunpack.c.h.b16 %v3849
  %v4418 = vunpack.c.l.b16 %v3850
  %v4419 = vunpack.c.h.b16 %v3850
  %v4420 = vunpack.c.l.b16 %v3851
  %v4421 = vunpack.c.h.b16 %v3851
  %v4422 = vunpack.c.l.b16 %v3852
  %v4423 = vunpack.c.h.b16 %v3852
  %v4424 = vunpack.c.l.b16 %v3853
  %v4425 = vunpack.c.h.b16 %v3853
  %v4426 = vunpack.c.l.b16 %v3854
  %v4427 = vunpack.c.h.b16 %v3854
  %v4428 = vunpack.c.l.b16 %v3855
  %v4429 = vunpack.c.h.b16 %v3855
  %v4430 = vunpack.c.l.b16 %v3856
  %v4431 = vunpack.c.h.b16 %v3856
  %v4432 = vunpack.c.l.b16 %v3857
  %v4433 = vunpack.c.h.b16 %v3857
  %v4434 = vunpack.c.l.b16 %v3858
  %v4435 = vunpack.c.h.b16 %v3858
  %v4436 = vunpack.c.l.b16 %v3859
  %v4437 = vunpack.c.h.b16 %v3859
  %v4438 = vunpack.c.l.b16 %v3860
  %v4439 = vunpack.c.h.b16 %v3860
  %v4440 = vunpack.c.l.b16 %v3861
  %v4441 = vunpack.c.h.b16 %v3861
  %v4442 = vunpack.c.l.b16 %v3862
  %v4443 = vunpack.c.h.b16 %v3862
  %v4444 = vunpack.c.l.b16 %v3863
  %v4445 = vunpack.c.h.b16 %v3863
  %v4446 = vunpack.c.l.b16 %v3864
  %v4447 = vunpack.c.h.b16 %v3864
  %v4448 = vunpack.c.l.b16 %v3865
  %v4449 = vunpack.c.h.b16 %v3865
  %v4450 = vunpack.c.l.b16 %v3866
  %v4451 = vunpack.c.h.b16 %v3866
  %v4452 = vunpack.c.l.b16 %v3867
  %v4453 = vunpack.c.h.b16 %v3867
  %v4454 = vunpack.c.l.b16 %v3868
  %v4455 = vunpack.c.h.b16 %v3868
  %v4456 = vunpack.c.l.b16 %v3869
  %v4457 = vunpack.c.h.b16 %v3869
  %v4458 = vunpack.c.l.b16 %v3870
  %v4459 = vunpack.c.h.b16 %v3870
  %v4460 = vunpack.c.l.b16 %v3871
  %v4461 = vunpack.c.h.b16 %v3871
  %v4462 = vunpack.c.l.b16 %v3872
  %v4463 = vunpack.c.h.b16 %v3872
  %v4464 = vunpack.c.l.b16 %v3873
  %v4465 = vunpack.c.h.b16 %v3873
  %v4466 = vunpack.c.l.b16 %v3874
  %v4467 = vunpack.c.h.b16 %v3874
  %v4468 = vunpack.c.l.b16 %v3875
  %v4469 = vunpack.c.h.b16 %v3875
  %v4470 = vunpack.c.l.b16 %v3876
  %v4471 = vunpack.c.h.b16 %v3876
  %v4472 = vunpack.c.l.b16 %v3877
  %v4473 = vunpack.c.h.b16 %v3877
  %v4474 = vunpack.c.l.b16 %v3878
  %v4475 = vunpack.c.h.b16 %v3878
  %v4476 = vunpack.c.l.b16 %v3879
  %v4477 = vunpack.c.h.b16 %v3879
  %v4478 = vunpack.c.l.b16 %v3880
  %v4479 = vunpack.c.h.b16 %v3880
  %v4480 = vunpack.c.l.b16 %v3881
  %v4481 = vunpack.c.h.b16 %v3881
  %v4482 = vunpack.c.l.b16 %v3882
  %v4483 = vunpack.c.h.b16 %v3882
  %v4484 = vunpack.c.l.b16 %v3883
  %v4485 = vunpack.c.h.b16 %v3883
  %v4486 = vunpack.c.l.b16 %v3884
  %v4487 = vunpack.c.h.b16 %v3884
  %v4488 = vunpack.c.l.b16 %v3885
  %v4489 = vunpack.c.h.b16 %v3885
  %v4490 = vunpack.c.l.b16 %v3886
  %v4491 = vunpack.c.h.b16 %v3886
  %v4492 = vunpack.c.l.b16 %v3887
  %v4493 = vunpack.c.h.b16 %v3887
  %v4494 = vunpack.c.l.b16 %v3888
  %v4495 = vunpack.c.h.b16 %v3888
  %v4496 = vunpack.c.l.b16 %v3889
  %v4497 = vunpack.c.h.b16 %v3889
  %v4498 = vunpack.c.l.b16 %v3890
  %v4499 = vunpack.c.h.b16 %v3890
  %v4500 = vunpack.c.l.b16 %v3891
  %v4501 = vunpack.c.h.b16 %v3891
  %v4502 = vunpack.c.l.b16 %v3892
  %v4503 = vunpack.c.h.b16 %v3892
  %v4504 = vunpack.c.l.b16 %v3893
  %v4505 = vunpack.c.h.b16 %v3893
  %v4506 = vunpack.c.l.b16 %v3894
  %v4507 = vunpack.c.h.b16 %v3894
  %v4508 = vunpack.c.l.b16 %v3895
  %v4509 = vunpack.c.h.b16 %v3895
  %v4510 = vunpack.c.l.b16 %v3896
  %v4511 = vunpack.c.h.b16 %v3896
  %v4512 = vunpack.c.l.b16 %v3897
  %v4513 = vunpack.c.h.b16 %v3897
  %v4514 = vunpack.c.l.b16 %v3898
  %v4515 = vunpack.c.h.b16 %v3898
  %v4516 = vunpack.c.l.b16 %v3899
  %v4517 = vunpack.c.h.b16 %v3899
  %v4518 = vunpack.c.l.b16 %v3900
  %v4519 = vunpack.c.h.b16 %v3900
  %v4520 = vunpack.c.l.b16 %v3901
  %v4521 = vunpack.c.h.b16 %v3901
  %v4522 = vunpack.c.l.b16 %v3902
  %v4523 = vunpack.c.h.b16 %v3902
  %v4524 = vunpack.c.l.b16 %v3903
  %v4525 = vunpack.c.h.b16 %v3903
  %v4526 = vunpack.c.l.b16 %v3904
  %v4527 = vunpack.c.h.b16 %v3904
  %v4528 = vunpack.c.l.b16 %v3905
  %v4529 = vunpack.c.h.b16 %v3905
  %v4530 = vunpack.c.l.b16 %v3906
  %v4531 = vunpack.c.h.b16 %v3906
  %v4532 = vunpack.c.l.b16 %v3907
  %v4533 = vunpack.c.h.b16 %v3907
  %v4534 = vunpack.c.l.b16 %v3908
  %v4535 = vunpack.c.h.b16 %v3908
  %v4536 = vunpack.c.l.b16 %v3909
  %v4537 = vunpack.c.h.b16 %v3909
  %v4538 = vunpack.c.l.b16 %v3910
  %v4539 = vunpack.c.h.b16 %v3910
  %v4540 = vunpack.c.l.b16 %v3911
  %v4541 = vunpack.c.h.b16 %v3911
  %v4542 = vunpack.c.l.b16 %v3912
  %v4543 = vunpack.c.h.b16 %v3912
  %v4544 = vunpack.c.l.b16 %v3913
  %v4545 = vunpack.c.h.b16 %v3913
  %v4546 = vunpack.c.l.b16 %v3914
  %v4547 = vunpack.c.h.b16 %v3914
  %v4548 = vunpack.c.l.b16 %v3915
  %v4549 = vunpack.c.h.b16 %v3915
  %v4550 = vunpack.c.l.b16 %v3916
  %v4551 = vunpack.c.h.b16 %v3916
  %v4552 = vunpack.c.l.b16 %v3917
  %v4553 = vunpack.c.h.b16 %v3917
  %v4554 = vunpack.c.l.b16 %v3918
  %v4555 = vunpack.c.h.b16 %v3918
  %v4556 = vunpack.c.l.b16 %v3919
  %v4557 = vunpack.c.h.b16 %v3919
  %v4558 = vunpack.c.l.b16 %v3920
  %v4559 = vunpack.c.h.b16 %v3920
  %v4560 = vunpack.c.l.b16 %v3921
  %v4561 = vunpack.c.h.b16 %v3921
  %v4562 = vunpack.c.l.b16 %v3922
  %v4563 = vunpack.c.h.b16 %v3922
  %v4564 = vunpack.c.l.b16 %v3923
  %v4565 = vunpack.c.h.b16 %v3923
  %v4566 = vunpack.c.l.b16 %v3924
  %v4567 = vunpack.c.h.b16 %v3924
  %v4568 = vunpack.c.l.b16 %v3925
  %v4569 = vunpack.c.h.b16 %v3925
  %v4570 = vunpack.c.l.b16 %v3926
  %v4571 = vunpack.c.h.b16 %v3926
  %v4572 = vunpack.c.l.b16 %v3927
  %v4573 = vunpack.c.h.b16 %v3927
  %v4574 = vunpack.c.l.b16 %v3928
  %v4575 = vunpack.c.h.b16 %v3928
  %v4576 = vunpack.c.l.b16 %v3929
  %v4577 = vunpack.c.h.b16 %v3929
  %v4578 = vunpack.c.l.b16 %v3930
  %v4579 = vunpack.c.h.b16 %v3930
  %v4580 = vunpack.c.l.b16 %v3931
  %v4581 = vunpack.c.h.b16 %v3931
  %v4582 = vunpack.c.l.b16 %v3932
  %v4583 = vunpack.c.h.b16 %v3932
  %v4584 = vunpack.c.l.b16 %v3933
  %v4585 = vunpack.c.h.b16 %v3933
  %v4586 = vunpack.c.l.b16 %v3934
  %v4587 = vunpack.c.h.b16 %v3934
  %v4588 = vunpack.c.l.b16 %v3935
  %v4589 = vunpack.c.h.b16 %v3935
  %v4590 = vunpack.c.l.b16 %v3936
  %v4591 = vunpack.c.h.b16 %v3936
  %v4592 = vunpack.c.l.b16 %v3937
  %v4593 = vunpack.c.h.b16 %v3937
  %v4594 = vunpack.c.l.b16 %v3938
  %v4595 = vunpack.c.h.b16 %v3938
  %v4596 = vunpack.c.l.b16 %v3939
  %v4597 = vunpack.c.h.b16 %v3939
  %v4598 = vunpack.c.l.b16 %v3940
  %v4599 = vunpack.c.h.b16 %v3940
  %v4600 = vunpack.c.l.b16 %v3941
  %v4601 = vunpack.c.h.b16 %v3941
  %v4602 = vunpack.c.l.b16 %v3942
  %v4603 = vunpack.c.h.b16 %v3942
  %v4604 = vunpack.c.l.b16 %v3943
  %v4605 = vunpack.c.h.b16 %v3943
  %v4606 = vunpack.c.l.b16 %v3944
  %v4607 = vunpack.c.h.b16 %v3944
  %v4608 = vunpack.c.l.b16 %v3945
  %v4609 = vunpack.c.h.b16 %v3945
  %v4610 = vunpack.c.l.b16 %v3946
  %v4611 = vunpack.c.h.b16 %v3946
  %v4612 = vunpack.c.l.b16 %v3947
  %v4613 = vunpack.c.h.b16 %v3947
  %v4614 = vunpack.c.l.b16 %v3948
  %v4615 = vunpack.c.h.b16 %v3948
  %v4616 = vunpack.c.l.b16 %v3949
  %v4617 = vunpack.c.h.b16 %v3949
  %v4618 = vunpack.c.l.b16 %v3950
  %v4619 = vunpack.c.h.b16 %v3950
  %v4620 = vunpack.c.l.b16 %v3951
  %v4621 = vunpack.c.h.b16 %v3951
  %v4622 = vunpack.c.l.b16 %v3952
  %v4623 = vunpack.c.h.b16 %v3952
  %v4624 = vunpack.c.l.b16 %v3953
  %v4625 = vunpack.c.h.b16 %v3953
  %v4626 = vunpack.c.l.b16 %v3954
  %v4627 = vunpack.c.h.b16 %v3954
  %v4628 = vunpack.c.l.b16 %v3955
  %v4629 = vunpack.c.h.b16 %v3955
  %v4630 = vunpack.c.l.b16 %v3956
  %v4631 = vunpack.c.h.b16 %v3956
  %v4632 = vunpack.c.l.b16 %v3957
  %v4633 = vunpack.c.h.b16 %v3957
  %v4634 = vunpack.c.l.b16 %v3958
  %v4635 = vunpack.c.h.b16 %v3958
  %v4636 = vunpack.c.l.b16 %v3959
  %v4637 = vunpack.c.h.b16 %v3959
  %v4638 = vunpack.c.l.b16 %v3960
  %v4639 = vunpack.c.h.b16 %v3960
  %v4640 = vunpack.c.l.b16 %v3961
  %v4641 = vunpack.c.h.b16 %v3961
  %v4642 = vunpack.c.l.b16 %v3962
  %v4643 = vunpack.c.h.b16 %v3962
  %v4644 = vunpack.c.l.b16 %v3963
  %v4645 = vunpack.c.h.b16 %v3963
  %v4646 = vunpack.c.l.b16 %v3964
  %v4647 = vunpack.c.h.b16 %v3964
  %v4648 = vunpack.c.l.b16 %v3965
  %v4649 = vunpack.c.h.b16 %v3965
  %v4650 = vunpack.c.l.b16 %v3966
  %v4651 = vunpack.c.h.b16 %v3966
  %v4652 = vunpack.c.l.b16 %v3967
  %v4653 = vunpack.c.h.b16 %v3967
  %v4654 = vunpack.c.l.b16 %v3968
  %v4655 = vunpack.c.h.b16 %v3968
  %v4656 = vunpack.c.l.b16 %v3969
  %v4657 = vunpack.c.h.b16 %v3969
  %v4658 = vunpack.c.l.b16 %v3970
  %v4659 = vunpack.c.h.b16 %v3970
  %v4660 = vunpack.c.l.b16 %v3971
  %v4661 = vunpack.c.h.b16 %v3971
  %v4662 = vunpack.c.l.b16 %v3972
  %v4663 = vunpack.c.h.b16 %v3972
  %v4664 = vunpack.c.l.b16 %v3973
  %v4665 = vunpack.c.h.b16 %v3973
  %v4666 = vunpack.c.l.b16 %v3974
  %v4667 = vunpack.c.h.b16 %v3974
  %v4668 = vunpack.c.l.b16 %v3975
  %v4669 = vunpack.c.h.b16 %v3975
  %v4670 = vunpack.c.l.b16 %v3976
  %v4671 = vunpack.c.h.b16 %v3976
  %v4672 = vunpack.c.l.b16 %v3977
  %v4673 = vunpack.c.h.b16 %v3977
  %v4674 = vunpack.c.l.b16 %v3978
  %v4675 = vunpack.c.h.b16 %v3978
  %v4676 = vunpack.c.l.b16 %v3979
  %v4677 = vunpack.c.h.b16 %v3979
  %v4678 = vunpack.c.l.b16 %v3980
  %v4679 = vunpack.c.h.b16 %v3980
  %v4680 = vunpack.c.l.b16 %v3981
  %v4681 = vunpack.c.h.b16 %v3981
  %v4682 = vunpack.c.l.b16 %v3982
  %v4683 = vunpack.c.h.b16 %v3982
  %v4684 = vunpack.c.l.b16 %v3983
  %v4685 = vunpack.c.h.b16 %v3983
  %v4686 = vunpack.c.l.b16 %v3984
  %v4687 = vunpack.c.h.b16 %v3984
  %v4688 = vunpack.c.l.b16 %v3985
  %v4689 = vunpack.c.h.b16 %v3985
  %v4690 = vunpack.c.l.b16 %v3986
  %v4691 = vunpack.c.h.b16 %v3986
  %v4692 = vunpack.c.l.b16 %v3987
  %v4693 = vunpack.c.h.b16 %v3987
  %v4694 = vunpack.c.l.b16 %v3988
  %v4695 = vunpack.c.h.b16 %v3988
  %v4696 = vunpack.c.l.b16 %v3989
  %v4697 = vunpack.c.h.b16 %v3989
  %v4698 = vunpack.c.l.b16 %v3990
  %v4699 = vunpack.c.h.b16 %v3990
  %v4700 = vunpack.c.l.b16 %v3991
  %v4701 = vunpack.c.h.b16 %v3991
  %v4702 = vunpack.c.l.b16 %v3992
  %v4703 = vunpack.c.h.b16 %v3992
  %v4704 = vunpack.c.l.b16 %v3993
  %v4705 = vunpack.c.h.b16 %v3993
  %v4706 = vunpack.c.l.b16 %v3994
  %v4707 = vunpack.c.h.b16 %v3994
  %v4708 = vunpack.c.l.b16 %v3995
  %v4709 = vunpack.c.h.b16 %v3995
  %v4710 = vunpack.c.l.b16 %v3996
  %v4711 = vunpack.c.h.b16 %v3996
  %v4712 = vunpack.c.l.b16 %v3997
  %v4713 = vunpack.c.h.b16 %v3997
  %v4714 = vunpack.c.l.b16 %v3998
  %v4715 = vunpack.c.h.b16 %v3998
  %v4716 = vunpack.c.l.b16 %v3999
  %v4717 = vunpack.c.h.b16 %v3999
  %v4718 = vunpack.c.l.b16 %v4000
  %v4719 = vunpack.c.h.b16 %v4000
  %v4720 = vunpack.c.l.b16 %v4001
  %v4721 = vunpack.c.h.b16 %v4001
  %v4722 = vunpack.c.l.b16 %v4002
  %v4723 = vunpack.c.h.b16 %v4002
  %v4724 = vunpack.c.l.b16 %v4003
  %v4725 = vunpack.c.h.b16 %v4003
  %v4726 = vunpack.c.l.b16 %v4004
  %v4727 = vunpack.c.h.b16 %v4004
  %v4728 = vunpack.c.l.b16 %v4005
  %v4729 = vunpack.c.h.b16 %v4005
  %v4730 = vunpack.c.l.b16 %v4006
  %v4731 = vunpack.c.h.b16 %v4006
  %v4732 = vunpack.c.l.b16 %v4007
  %v4733 = vunpack.c.h.b16 %v4007
  %v4734 = vunpack.c.l.b16 %v4008
  %v4735 = vunpack.c.h.b16 %v4008
  %v4736 = vunpack.c.l.b16 %v4009
  %v4737 = vunpack.c.h.b16 %v4009
  %v4738 = vunpack.c.l.b16 %v4010
  %v4739 = vunpack.c.h.b16 %v4010
  %v4740 = vunpack.c.l.b16 %v4011
  %v4741 = vunpack.c.h.b16 %v4011
  %v4742 = vunpack.c.l.b16 %v4012
  %v4743 = vunpack.c.h.b16 %v4012
  %v4744 = vunpack.c.l.b16 %v4013
  %v4745 = vunpack.c.h.b16 %v4013
  %v4746 = vunpack.c.l.b16 %v4014
  %v4747 = vunpack.c.h.b16 %v4014
  %v4748 = vunpack.c.l.b16 %v4015
  %v4749 = vunpack.c.h.b16 %v4015
  %v4750 = vunpack.c.l.b16 %v4016
  %v4751 = vunpack.c.h.b16 %v4016
  %v4752 = vunpack.c.l.b16 %v4017
  %v4753 = vunpack.c.h.b16 %v4017
  %v4754 = vunpack.c.l.b16 %v4018
  %v4755 = vunpack.c.h.b16 %v4018
  %v4756 = vunpack.c.l.b16 %v4019
  %v4757 = vunpack.c.h.b16 %v4019
  %v4758 = vunpack.c.l.b16 %v4020
  %v4759 = vunpack.c.h.b16 %v4020
  %v4760 = vunpack.c.l.b16 %v4021
  %v4761 = vunpack.c.h.b16 %v4021
  %v4762 = vunpack.c.l.b16 %v4022
  %v4763 = vunpack.c.h.b16 %v4022
  %v4764 = vunpack.c.l.b16 %v4023
  %v4765 = vunpack.c.h.b16 %v4023
  %v4766 = vunpack.c.l.b16 %v4024
  %v4767 = vunpack.c.h.b16 %v4024
  %v4768 = vunpack.c.l.b16 %v4025
  %v4769 = vunpack.c.h.b16 %v4025
  %v4770 = vunpack.c.l.b16 %v4026
  %v4771 = vunpack.c.h.b16 %v4026
  %v4772 = vunpack.c.l.b16 %v4027
  %v4773 = vunpack.c.h.b16 %v4027
  %v4774 = vunpack.c.l.b16 %v4028
  %v4775 = vunpack.c.h.b16 %v4028
  %v4776 = vunpack.c.l.b16 %v4029
  %v4777 = vunpack.c.h.b16 %v4029
  %v4778 = vunpack.c.l.b16 %v4030
  %v4779 = vunpack.c.h.b16 %v4030
  %v4780 = vunpack.c.l.b16 %v4031
  %v4781 = vunpack.c.h.b16 %v4031
  %v4782 = vunpack.c.l.b16 %v4032
  %v4783 = vunpack.c.h.b16 %v4032
  %v4784 = vunpack.c.l.b16 %v4033
  %v4785 = vunpack.c.h.b16 %v4033
  %v4786 = vunpack.c.l.b16 %v4034
  %v4787 = vunpack.c.h.b16 %v4034
  %v4788 = vunpack.c.l.b16 %v4035
  %v4789 = vunpack.c.h.b16 %v4035
  %v4790 = vunpack.c.l.b16 %v4036
  %v4791 = vunpack.c.h.b16 %v4036
  %v4792 = vunpack.c.l.b16 %v4037
  %v4793 = vunpack.c.h.b16 %v4037
  %v4794 = vunpack.c.l.b16 %v4038
  %v4795 = vunpack.c.h.b16 %v4038
  %v4796 = vunpack.c.l.b16 %v4039
  %v4797 = vunpack.c.h.b16 %v4039
  %v4798 = vunpack.c.l.b16 %v4040
  %v4799 = vunpack.c.h.b16 %v4040
  %v4800 = vunpack.c.l.b16 %v4041
  %v4801 = vunpack.c.h.b16 %v4041
  %v4802 = vunpack.c.l.b16 %v4042
  %v4803 = vunpack.c.h.b16 %v4042
  %v4804 = vunpack.c.l.b16 %v4043
  %v4805 = vunpack.c.h.b16 %v4043
  %v4806 = vunpack.c.l.b16 %v4044
  %v4807 = vunpack.c.h.b16 %v4044
  %v4808 = vunpack.c.l.b16 %v4045
  %v4809 = vunpack.c.h.b16 %v4045
  %v4810 = vunpack.c.l.b16 %v4046
  %v4811 = vunpack.c.h.b16 %v4046
  %v4812 = vunpack.c.l.b16 %v4047
  %v4813 = vunpack.c.h.b16 %v4047
  %v4814 = vunpack.c.l.b16 %v4048
  %v4815 = vunpack.c.h.b16 %v4048
  %v4816 = vunpack.c.l.b16 %v4049
  %v4817 = vunpack.c.h.b16 %v4049
  %v4818 = vunpack.c.l.b16 %v4050
  %v4819 = vunpack.c.h.b16 %v4050
  %v4820 = vunpack.c.l.b16 %v4051
  %v4821 = vunpack.c.h.b16 %v4051
  %v4822 = vunpack.c.l.b16 %v4052
  %v4823 = vunpack.c.h.b16 %v4052
  %v4824 = vunpack.c.l.b16 %v4053
  %v4825 = vunpack.c.h.b16 %v4053
  %v4826 = vunpack.c.l.b16 %v4054
  %v4827 = vunpack.c.h.b16 %v4054
  %v4828 = vunpack.c.l.b16 %v4055
  %v4829 = vunpack.c.h.b16 %v4055
  %v4830 = vunpack.c.l.b16 %v4056
  %v4831 = vunpack.c.h.b16 %v4056
  %v4832 = vunpack.c.l.b16 %v4057
  %v4833 = vunpack.c.h.b16 %v4057
  %v4834 = vunpack.c.l.b16 %v4058
  %v4835 = vunpack.c.h.b16 %v4058
  %v4836 = vunpack.c.l.b16 %v4059
  %v4837 = vunpack.c.h.b16 %v4059
  %v4838 = vunpack.c.l.b16 %v4060
  %v4839 = vunpack.c.h.b16 %v4060
  %v4840 = vunpack.c.l.b16 %v4061
  %v4841 = vunpack.c.h.b16 %v4061
  %v4842 = vunpack.c.l.b16 %v4062
  %v4843 = vunpack.c.h.b16 %v4062
  %v4844 = vunpack.c.l.b16 %v4063
  %v4845 = vunpack.c.h.b16 %v4063
  %v4846 = vunpack.c.l.b16 %v4064
  %v4847 = vunpack.c.h.b16 %v4064
  %v4848 = vunpack.c.l.b16 %v4065
  %v4849 = vunpack.c.h.b16 %v4065
  %v4850 = vunpack.c.l.b16 %v4066
  %v4851 = vunpack.c.h.b16 %v4066
  %v4852 = vunpack.c.l.b16 %v4067
  %v4853 = vunpack.c.h.b16 %v4067
  %v4854 = vpack.c.b16 %v4350, %v4342
  %v4855 = vpack.c.b16 %v4351, %v4343
  %v4856 = vpack.c.b16 %v4352, %v4344
  %v4857 = vpack.c.b16 %v4353, %v4345
  %v4858 = vpack.c.b16 %v4354, %v4346
  %v4859 = vpack.c.b16 %v4355, %v4347
  %v4860 = vpack.c.b16 %v4356, %v4348
  %v4861 = vpack.c.b16 %v4357, %v4349
  %v4862 = vpack.c.b16 %v4366, %v4358
  %v4863 = vpack.c.b16 %v4367, %v4359
  %v4864 = vpack.c.b16 %v4368, %v4360
  %v4865 = vpack.c.b16 %v4369, %v4361
  %v4866 = vpack.c.b16 %v4370, %v4362
  %v4867 = vpack.c.b16 %v4371, %v4363
  %v4868 = vpack.c.b16 %v4372, %v4364
  %v4869 = vpack.c.b16 %v4373, %v4365
  %v4870 = vpack.c.b16 %v4382, %v4374
  %v4871 = vpack.c.b16 %v4383, %v4375
  %v4872 = vpack.c.b16 %v4384, %v4376
  %v4873 = vpack.c.b16 %v4385, %v4377
  %v4874 = vpack.c.b16 %v4386, %v4378
  %v4875 = vpack.c.b16 %v4387, %v4379
  %v4876 = vpack.c.b16 %v4388, %v4380
  %v4877 = vpack.c.b16 %v4389, %v4381
  %v4878 = vpack.c.b16 %v4398, %v4390
  %v4879 = vpack.c.b16 %v4399, %v4391
  %v4880 = vpack.c.b16 %v4400, %v4392
  %v4881 = vpack.c.b16 %v4401, %v4393
  %v4882 = vpack.c.b16 %v4402, %v4394
  %v4883 = vpack.c.b16 %v4403, %v4395
  %v4884 = vpack.c.b16 %v4404, %v4396
  %v4885 = vpack.c.b16 %v4405, %v4397
  %v4886 = vpack.c.b16 %v4414, %v4406
  %v4887 = vpack.c.b16 %v4415, %v4407
  %v4888 = vpack.c.b16 %v4416, %v4408
  %v4889 = vpack.c.b16 %v4417, %v4409
  %v4890 = vpack.c.b16 %v4418, %v4410
  %v4891 = vpack.c.b16 %v4419, %v4411
  %v4892 = vpack.c.b16 %v4420, %v4412
  %v4893 = vpack.c.b16 %v4421, %v4413
  %v4894 = vpack.c.b16 %v4430, %v4422
  %v4895 = vpack.c.b16 %v4431, %v4423
  %v4896 = vpack.c.b16 %v4432, %v4424
  %v4897 = vpack.c.b16 %v4433, %v4425
  %v4898 = vpack.c.b16 %v4434, %v4426
  %v4899 = vpack.c.b16 %v4435, %v4427
  %v4900 = vpack.c.b16 %v4436, %v4428
  %v4901 = vpack.c.b16 %v4437, %v4429
  %v4902 = vpack.c.b16 %v4446, %v4438
  %v4903 = vpack.c.b16 %v4447, %v4439
  %v4904 = vpack.c.b16 %v4448, %v4440
  %v4905 = vpack.c.b16 %v4449, %v4441
  %v4906 = vpack.c.b16 %v4450, %v4442
  %v4907 = vpack.c.b16 %v4451, %v4443
  %v4908 = vpack.c.b16 %v4452, %v4444
  %v4909 = vpack.c.b16 %v4453, %v4445
  %v4910 = vpack.c.b16 %v4462, %v4454
  %v4911 = vpack.c.b16 %v4463, %v4455
  %v4912 = vpack.c.b16 %v4464, %v4456
  %v4913 = vpack.c.b16 %v4465, %v4457
  %v4914 = vpack.c.b16 %v4466, %v4458
  %v4915 = vpack.c.b16 %v4467, %v4459
  %v4916 = vpack.c.b16 %v4468, %v4460
  %v4917 = vpack.c.b16 %v4469, %v4461
  %v4918 = vpack.c.b16 %v4478, %v4470
  %v4919 = vpack.c.b16 %v4479, %v4471
  %v4920 = vpack.c.b16 %v4480, %v4472
  %v4921 = vpack.c.b16 %v4481, %v4473
  %v4922 = vpack.c.b16 %v4482, %v4474
  %v4923 = vpack.c.b16 %v4483, %v4475
  %v4924 = vpack.c.b16 %v4484, %v4476
  %v4925 = vpack.c.b16 %v4485, %v4477
  %v4926 = vpack.c.b16 %v4494, %v4486
  %v4927 = vpack.c.b16 %v4495, %v4487
  %v4928 = vpack.c.b16 %v4496, %v4488
  %v4929 = vpack.c.b16 %v4497, %v4489
  %v4930 = vpack.c.b16 %v4498, %v4490
  %v4931 = vpack.c.b16 %v4499, %v4491
  %v4932 = vpack.c.b16 %v4500, %v4492
  %v4933 = vpack.c.b16 %v4501, %v4493
  %v4934 = vpack.c.b16 %v4510, %v4502
  %v4935 = vpack.c.b16 %v4511, %v4503
  %v4936 = vpack.c.b16 %v4512, %v4504
  %v4937 = vpack.c.b16 %v4513, %v4505
  %v4938 = vpack.c.b16 %v4514, %v4506
  %v4939 = vpack.c.b16 %v4515, %v4507
  %v4940 = vpack.c.b16 %v4516, %v4508
  %v4941 = vpack.c.b16 %v4517, %v4509
  %v4942 = vpack.c.b16 %v4526, %v4518
  %v4943 = vpack.c.b16 %v4527, %v4519
  %v4944 = vpack.c.b16 %v4528, %v4520
  %v4945 = vpack.c.b16 %v4529, %v4521
  %v4946 = vpack.c.b16 %v4530, %v4522
  %v4947 = vpack.c.b16 %v4531, %v4523
  %v4948 = vpack.c.b16 %v4532, %v4524
  %v4949 = vpack.c.b16 %v4533, %v4525
  %v4950 = vpack.c.b16 %v4542, %v4534
  %v4951 = vpack.c.b16 %v4543, %v4535
  %v4952 = vpack.c.b16 %v4544, %v4536
  %v4953 = vpack.c.b16 %v4545, %v4537
  %v4954 = vpack.c.b16 %v4546, %v4538
  %v4955 = vpack.c.b16 %v4547, %v4539
  %v4956 = vpack.c.b16 %v4548, %v4540
  %v4957 = vpack.c.b16 %v4549, %v4541
  %v4958 = vpack.c.b16 %v4558, %v4550
  %v4959 = vpack.c.b16 %v4559, %v4551
  %v4960 = vpack.c.b16 %v4560, %v4552
  %v4961 = vpack.c.b16 %v4561, %v4553
  %v4962 = vpack.c.b16 %v4562, %v4554
  %v4963 = vpack.c.b16 %v4563, %v4555
  %v4964 = vpack.c.b16 %v4564, %v4556
  %v4965 = vpack.c.b16 %v4565, %v4557
  %v4966 = vpack.c.b16 %v4574, %v4566
  %v4967 = vpack.c.b16 %v4575, %v4567
  %v4968 = vpack.c.b16 %v4576, %v4568
  %v4969 = vpack.c.b16 %v4577, %v4569
  %v4970 = vpack.c.b16 %v4578, %v4570
  %v4971 = vpack.c.b16 %v4579, %v4571
  %v4972 = vpack.c.b16 %v4580, %v4572
  %v4973 = vpack.c.b16 %v4581, %v4573
  %v4974 = vpack.c.b16 %v4590, %v4582
  %v4975 = vpack.c.b16 %v4591, %v4583
  %v4976 = vpack.c.b16 %v4592, %v4584
  %v4977 = vpack.c.b16 %v4593, %v4585
  %v4978 = vpack.c.b16 %v4594, %v4586
  %v4979 = vpack.c.b16 %v4595, %v4587
  %v4980 = vpack.c.b16 %v4596, %v4588
  %v4981 = vpack.c.b16 %v4597, %v4589
  %v4982 = vpack.c.b16 %v4606, %v4598
  %v4983 = vpack.c.b16 %v4607, %v4599
  %v4984 = vpack.c.b16 %v4608, %v4600
  %v4985 = vpack.c.b16 %v4609, %v4601
  %v4986 = vpack.c.b16 %v4610, %v4602
  %v4987 = vpack.c.b16 %v4611, %v4603
  %v4988 = vpack.c.b16 %v4612, %v4604
  %v4989 = vpack.c.b16 %v4613, %v4605
  %v4990 = vpack.c.b16 %v4622, %v4614
  %v4991 = vpack.c.b16 %v4623, %v4615
  %v4992 = vpack.c.b16 %v4624, %v4616
  %v4993 = vpack.c.b16 %v4625, %v4617
  %v4994 = vpack.c.b16 %v4626, %v4618
  %v4995 = vpack.c.b16 %v4627, %v4619
  %v4996 = vpack.c.b16 %v4628, %v4620
  %v4997 = vpack.c.b16 %v4629, %v4621
  %v4998 = vpack.c.b16 %v4638, %v4630
  %v4999 = vpack.c.b16 %v4639, %v4631
  %v5000 = vpack.c.b16 %v4640, %v4632
  %v5001 = vpack.c.b16 %v4641, %v4633
  %v5002 = vpack.c.b16 %v4642, %v4634
  %v5003 = vpack.c.b16 %v4643, %v4635
  %v5004 = vpack.c.b16 %v4644, %v4636
  %v5005 = vpack.c.b16 %v4645, %v4637
  %v5006 = vpack.c.b16 %v4654, %v4646
  %v5007 = vpack.c.b16 %v4655, %v4647
  %v5008 = vpack.c.b16 %v4656, %v4648
  %v5009 = vpack.c.b16 %v4657, %v4649
  %v5010 = vpack.c.b16 %v4658, %v4650
  %v5011 = vpack.c.b16 %v4659, %v4651
  %v5012 = vpack.c.b16 %v4660, %v4652
  %v5013 = vpack.c.b16 %v4661, %v4653
  %v5014 = vpack.c.b16 %v4670, %v4662
  %v5015 = vpack.c.b16 %v4671, %v4663
  %v5016 = vpack.c.b16 %v4672, %v4664
  %v5017 = vpack.c.b16 %v4673, %v4665
  %v5018 = vpack.c.b16 %v4674, %v4666
  %v5019 = vpack.c.b16 %v4675, %v4667
  %v5020 = vpack.c.b16 %v4676, %v4668
  %v5021 = vpack.c.b16 %v4677, %v4669
  %v5022 = vpack.c.b16 %v4686, %v4678
  %v5023 = vpack.c.b16 %v4687, %v4679
  %v5024 = vpack.c.b16 %v4688, %v4680
  %v5025 = vpack.c.b16 %v4689, %v4681
  %v5026 = vpack.c.b16 %v4690, %v4682
  %v5027 = vpack.c.b16 %v4691, %v4683
  %v5028 = vpack.c.b16 %v4692, %v4684
  %v5029 = vpack.c.b16 %v4693, %v4685
  %v5030 = vpack.c.b16 %v4702, %v4694
  %v5031 = vpack.c.b16 %v4703, %v4695
  %v5032 = vpack.c.b16 %v4704, %v4696
  %v5033 = vpack.c.b16 %v4705, %v4697
  %v5034 = vpack.c.b16 %v4706, %v4698
  %v5035 = vpack.c.b16 %v4707, %v4699
  %v5036 = vpack.c.b16 %v4708, %v4700
  %v5037 = vpack.c.b16 %v4709, %v4701
  %v5038 = vpack.c.b16 %v4718, %v4710
  %v5039 = vpack.c.b16 %v4719, %v4711
  %v5040 = vpack.c.b16 %v4720, %v4712
  %v5041 = vpack.c.b16 %v4721, %v4713
  %v5042 = vpack.c.b16 %v4722, %v4714
  %v5043 = vpack.c.b16 %v4723, %v4715
  %v5044 = vpack.c.b16 %v4724, %v4716
  %v5045 = vpack.c.b16 %v4725, %v4717
  %v5046 = vpack.c.b16 %v4734, %v4726
  %v5047 = vpack.c.b16 %v4735, %v4727
  %v5048 = vpack.c.b16 %v4736, %v4728
  %v5049 = vpack.c.b16 %v4737, %v4729
  %v5050 = vpack.c.b16 %v4738, %v4730
  %v5051 = vpack.c.b16 %v4739, %v4731
  %v5052 = vpack.c.b16 %v4740, %v4732
  %v5053 = vpack.c.b16 %v4741, %v4733
  %v5054 = vpack.c.b16 %v4750, %v4742
  %v5055 = vpack.c.b16 %v4751, %v4743
  %v5056 = vpack.c.b16 %v4752, %v4744
  %v5057 = vpack.c.b16 %v4753, %v4745
  %v5058 = vpack.c.b16 %v4754, %v4746
  %v5059 = vpack.c.b16 %v4755, %v4747
  %v5060 = vpack.c.b16 %v4756, %v4748
  %v5061 = vpack.c.b16 %v4757, %v4749
  %v5062 = vpack.c.b16 %v4766, %v4758
  %v5063 = vpack.c.b16 %v4767, %v4759
  %v5064 = vpack.c.b16 %v4768, %v4760
  %v5065 = vpack.c.b16 %v4769, %v4761
  %v5066 = vpack.c.b16 %v4770, %v4762
  %v5067 = vpack.c.b16 %v4771, %v4763
  %v5068 = vpack.c.b16 %v4772, %v4764
  %v5069 = vpack.c.b16 %v4773, %v4765
  %v5070 = vpack.c.b16 %v4782, %v4774
  %v5071 = vpack.c.b16 %v4783, %v4775
  %v5072 = vpack.c.b16 %v4784, %v4776
  %v5073 = vpack.c.b16 %v4785, %v4777
  %v5074 = vpack.c.b16 %v4786, %v4778
  %v5075 = vpack.c.b16 %v4787, %v4779
  %v5076 = vpack.c.b16 %v4788, %v4780
  %v5077 = vpack.c.b16 %v4789, %v4781
  %v5078 = vpack.c.b16 %v4798, %v4790
  %v5079 = vpack.c.b16 %v4799, %v4791
  %v5080 = vpack.c.b16 %v4800, %v4792
  %v5081 = vpack.c.b16 %v4801, %v4793
  %v5082 = vpack.c.b16 %v4802, %v4794
  %v5083 = vpack.c.b16 %v4803, %v4795
  %v5084 = vpack.c.b16 %v4804, %v4796
  %v5085 = vpack.c.b16 %v4805, %v4797
  %v5086 = vpack.c.b16 %v4814, %v4806
  %v5087 = vpack.c.b16 %v4815, %v4807
  %v5088 = vpack.c.b16 %v4816, %v4808
  %v5089 = vpack.c.b16 %v4817, %v4809
  %v5090 = vpack.c.b16 %v4818, %v4810
  %v5091 = vpack.c.b16 %v4819, %v4811
  %v5092 = vpack.c.b16 %v4820, %v4812
  %v5093 = vpack.c.b16 %v4821, %v4813
  %v5094 = vpack.c.b16 %v4830, %v4822
  %v5095 = vpack.c.b16 %v4831, %v4823
  %v5096 = vpack.c.b16 %v4832, %v4824
  %v5097 = vpack.c.b16 %v4833, %v4825
  %v5098 = vpack.c.b16 %v4834, %v4826
  %v5099 = vpack.c.b16 %v4835, %v4827
  %v5100 = vpack.c.b16 %v4836, %v4828
  %v5101 = vpack.c.b16 %v4837, %v4829
  %v5102 = vpack.c.b16 %v4846, %v4838
  %v5103 = vpack.c.b16 %v4847, %v4839
  %v5104 = vpack.c.b16 %v4848, %v4840
  %v5105 = vpack.c.b16 %v4849, %v4841
  %v5106 = vpack.c.b16 %v4850, %v4842
  %v5107 = vpack.c.b16 %v4851, %v4843
  %v5108 = vpack.c.b16 %v4852, %v4844
  %v5109 = vpack.c.b16 %v4853, %v4845
  %5366 = vmatpush.bf16.msra.mxu0 %v4910
  %5367 = vmatpush.bf16.msra.mxu0 %v4902
  %5368 = vmatpush.bf16.msra.mxu0 %v4894
  %5369 = vmatpush.bf16.msra.mxu0 %v4886
  %5370 = vmatpush.bf16.msra.mxu0 %v4878
  %5371 = vmatpush.bf16.msra.mxu0 %v4870
  %5372 = vmatpush.bf16.msra.mxu0 %v4862
  %5373 = vmatpush.bf16.msra.mxu0 %v4854
  %5374 = vmatmul.bf16.gmra.mxu0 %v3808
  %v5375 = vpop.f32.mrf.mxu0
  %v5376 = vadd.f32 %v4070, %v5375
  %v5377 = vpop.f32.mrf.mxu0
  %5378 = vdwg.mxu0
  %5379 = vmatpush.bf16.msra.mxu0 %v4974
  %5380 = vmatpush.bf16.msra.mxu0 %v4966
  %5381 = vmatpush.bf16.msra.mxu0 %v4958
  %5382 = vmatpush.bf16.msra.mxu0 %v4950
  %5383 = vmatpush.bf16.msra.mxu0 %v4942
  %5384 = vmatpush.bf16.msra.mxu0 %v4934
  %5385 = vmatpush.bf16.msra.mxu0 %v4926
  %5386 = vmatpush.bf16.msra.mxu0 %v4918
  %5387 = vmatmul.bf16.gmra.mxu0 %v3809
  %v5388 = vpop.f32.mrf.mxu0
  %v5389 = vadd.f32 %v5376, %v5388
  %v5390 = vpop.f32.mrf.mxu0
  %5391 = vdwg.mxu0
  %5392 = vmatpush.bf16.msra.mxu0 %v5038
  %5393 = vmatpush.bf16.msra.mxu0 %v5030
  %5394 = vmatpush.bf16.msra.mxu0 %v5022
  %5395 = vmatpush.bf16.msra.mxu0 %v5014
  %5396 = vmatpush.bf16.msra.mxu0 %v5006
  %5397 = vmatpush.bf16.msra.mxu0 %v4998
  %5398 = vmatpush.bf16.msra.mxu0 %v4990
  %5399 = vmatpush.bf16.msra.mxu0 %v4982
  %5400 = vmatmul.bf16.gmra.mxu0 %v3810
  %v5401 = vpop.f32.mrf.mxu0
  %v5402 = vadd.f32 %v5389, %v5401
  %v5403 = vpop.f32.mrf.mxu0
  %5404 = vdwg.mxu0
  %5405 = vmatpush.bf16.msra.mxu0 %v5102
  %5406 = vmatpush.bf16.msra.mxu0 %v5094
  %5407 = vmatpush.bf16.msra.mxu0 %v5086
  %5408 = vmatpush.bf16.msra.mxu0 %v5078
  %5409 = vmatpush.bf16.msra.mxu0 %v5070
  %5410 = vmatpush.bf16.msra.mxu0 %v5062
  %5411 = vmatpush.bf16.msra.mxu0 %v5054
  %5412 = vmatpush.bf16.msra.mxu0 %v5046
  %5413 = vmatmul.bf16.gmra.mxu0 %v3811
  %v5414 = vpop.f32.mrf.mxu0
  %v5415 = vadd.f32 %v5402, %v5414
  %v5416 = vpop.f32.mrf.mxu0
  %5417 = vdwg.mxu0
  %5418 = vmatpush.bf16.msra.mxu0 %v4911
  %5419 = vmatpush.bf16.msra.mxu0 %v4903
  %5420 = vmatpush.bf16.msra.mxu0 %v4895
  %5421 = vmatpush.bf16.msra.mxu0 %v4887
  %5422 = vmatpush.bf16.msra.mxu0 %v4879
  %5423 = vmatpush.bf16.msra.mxu0 %v4871
  %5424 = vmatpush.bf16.msra.mxu0 %v4863
  %5425 = vmatpush.bf16.msra.mxu0 %v4855
  %5426 = vmatmul.bf16.gmra.mxu0 %v3808
  %v5427 = vpop.f32.mrf.mxu0
  %v5428 = vadd.f32 %v4071, %v5427
  %v5429 = vpop.f32.mrf.mxu0
  %5430 = vdwg.mxu0
  %5431 = vmatpush.bf16.msra.mxu0 %v4975
  %5432 = vmatpush.bf16.msra.mxu0 %v4967
  %5433 = vmatpush.bf16.msra.mxu0 %v4959
  %5434 = vmatpush.bf16.msra.mxu0 %v4951
  %5435 = vmatpush.bf16.msra.mxu0 %v4943
  %5436 = vmatpush.bf16.msra.mxu0 %v4935
  %5437 = vmatpush.bf16.msra.mxu0 %v4927
  %5438 = vmatpush.bf16.msra.mxu0 %v4919
  %5439 = vmatmul.bf16.gmra.mxu0 %v3809
  %v5440 = vpop.f32.mrf.mxu0
  %v5441 = vadd.f32 %v5428, %v5440
  %v5442 = vpop.f32.mrf.mxu0
  %5443 = vdwg.mxu0
  %5444 = vmatpush.bf16.msra.mxu0 %v5039
  %5445 = vmatpush.bf16.msra.mxu0 %v5031
  %5446 = vmatpush.bf16.msra.mxu0 %v5023
  %5447 = vmatpush.bf16.msra.mxu0 %v5015
  %5448 = vmatpush.bf16.msra.mxu0 %v5007
  %5449 = vmatpush.bf16.msra.mxu0 %v4999
  %5450 = vmatpush.bf16.msra.mxu0 %v4991
  %5451 = vmatpush.bf16.msra.mxu0 %v4983
  %5452 = vmatmul.bf16.gmra.mxu0 %v3810
  %v5453 = vpop.f32.mrf.mxu0
  %v5454 = vadd.f32 %v5441, %v5453
  %v5455 = vpop.f32.mrf.mxu0
  %5456 = vdwg.mxu0
  %5457 = vmatpush.bf16.msra.mxu0 %v5103
  %5458 = vmatpush.bf16.msra.mxu0 %v5095
  %5459 = vmatpush.bf16.msra.mxu0 %v5087
  %5460 = vmatpush.bf16.msra.mxu0 %v5079
  %5461 = vmatpush.bf16.msra.mxu0 %v5071
  %5462 = vmatpush.bf16.msra.mxu0 %v5063
  %5463 = vmatpush.bf16.msra.mxu0 %v5055
  %5464 = vmatpush.bf16.msra.mxu0 %v5047
  %5465 = vmatmul.bf16.gmra.mxu0 %v3811
  %v5466 = vpop.f32.mrf.mxu0
  %v5467 = vadd.f32 %v5454, %v5466
  %v5468 = vpop.f32.mrf.mxu0
  %5469 = vdwg.mxu0
  %5470 = vmatpush.bf16.msra.mxu0 %v4912
  %5471 = vmatpush.bf16.msra.mxu0 %v4904
  %5472 = vmatpush.bf16.msra.mxu0 %v4896
  %5473 = vmatpush.bf16.msra.mxu0 %v4888
  %5474 = vmatpush.bf16.msra.mxu0 %v4880
  %5475 = vmatpush.bf16.msra.mxu0 %v4872
  %5476 = vmatpush.bf16.msra.mxu0 %v4864
  %5477 = vmatpush.bf16.msra.mxu0 %v4856
  %5478 = vmatmul.bf16.gmra.mxu0 %v3808
  %v5479 = vpop.f32.mrf.mxu0
  %v5480 = vadd.f32 %v4072, %v5479
  %v5481 = vpop.f32.mrf.mxu0
  %5482 = vdwg.mxu0
  %5483 = vmatpush.bf16.msra.mxu0 %v4976
  %5484 = vmatpush.bf16.msra.mxu0 %v4968
  %5485 = vmatpush.bf16.msra.mxu0 %v4960
  %5486 = vmatpush.bf16.msra.mxu0 %v4952
  %5487 = vmatpush.bf16.msra.mxu0 %v4944
  %5488 = vmatpush.bf16.msra.mxu0 %v4936
  %5489 = vmatpush.bf16.msra.mxu0 %v4928
  %5490 = vmatpush.bf16.msra.mxu0 %v4920
  %5491 = vmatmul.bf16.gmra.mxu0 %v3809
  %v5492 = vpop.f32.mrf.mxu0
  %v5493 = vadd.f32 %v5480, %v5492
  %v5494 = vpop.f32.mrf.mxu0
  %5495 = vdwg.mxu0
  %5496 = vmatpush.bf16.msra.mxu0 %v5040
  %5497 = vmatpush.bf16.msra.mxu0 %v5032
  %5498 = vmatpush.bf16.msra.mxu0 %v5024
  %5499 = vmatpush.bf16.msra.mxu0 %v5016
  %5500 = vmatpush.bf16.msra.mxu0 %v5008
  %5501 = vmatpush.bf16.msra.mxu0 %v5000
  %5502 = vmatpush.bf16.msra.mxu0 %v4992
  %5503 = vmatpush.bf16.msra.mxu0 %v4984
  %5504 = vmatmul.bf16.gmra.mxu0 %v3810
  %v5505 = vpop.f32.mrf.mxu0
  %v5506 = vadd.f32 %v5493, %v5505
  %v5507 = vpop.f32.mrf.mxu0
  %5508 = vdwg.mxu0
  %5509 = vmatpush.bf16.msra.mxu0 %v5104
  %5510 = vmatpush.bf16.msra.mxu0 %v5096
  %5511 = vmatpush.bf16.msra.mxu0 %v5088
  %5512 = vmatpush.bf16.msra.mxu0 %v5080
  %5513 = vmatpush.bf16.msra.mxu0 %v5072
  %5514 = vmatpush.bf16.msra.mxu0 %v5064
  %5515 = vmatpush.bf16.msra.mxu0 %v5056
  %5516 = vmatpush.bf16.msra.mxu0 %v5048
  %5517 = vmatmul.bf16.gmra.mxu0 %v3811
  %v5518 = vpop.f32.mrf.mxu0
  %v5519 = vadd.f32 %v5506, %v5518
  %v5520 = vpop.f32.mrf.mxu0
  %5521 = vdwg.mxu0
  %5522 = vmatpush.bf16.msra.mxu0 %v4913
  %5523 = vmatpush.bf16.msra.mxu0 %v4905
  %5524 = vmatpush.bf16.msra.mxu0 %v4897
  %5525 = vmatpush.bf16.msra.mxu0 %v4889
  %5526 = vmatpush.bf16.msra.mxu0 %v4881
  %5527 = vmatpush.bf16.msra.mxu0 %v4873
  %5528 = vmatpush.bf16.msra.mxu0 %v4865
  %5529 = vmatpush.bf16.msra.mxu0 %v4857
  %5530 = vmatmul.bf16.gmra.mxu0 %v3808
  %v5531 = vpop.f32.mrf.mxu0
  %v5532 = vadd.f32 %v4073, %v5531
  %v5533 = vpop.f32.mrf.mxu0
  %5534 = vdwg.mxu0
  %5535 = vmatpush.bf16.msra.mxu0 %v4977
  %5536 = vmatpush.bf16.msra.mxu0 %v4969
  %5537 = vmatpush.bf16.msra.mxu0 %v4961
  %5538 = vmatpush.bf16.msra.mxu0 %v4953
  %5539 = vmatpush.bf16.msra.mxu0 %v4945
  %5540 = vmatpush.bf16.msra.mxu0 %v4937
  %5541 = vmatpush.bf16.msra.mxu0 %v4929
  %5542 = vmatpush.bf16.msra.mxu0 %v4921
  %5543 = vmatmul.bf16.gmra.mxu0 %v3809
  %v5544 = vpop.f32.mrf.mxu0
  %v5545 = vadd.f32 %v5532, %v5544
  %v5546 = vpop.f32.mrf.mxu0
  %5547 = vdwg.mxu0
  %5548 = vmatpush.bf16.msra.mxu0 %v5041
  %5549 = vmatpush.bf16.msra.mxu0 %v5033
  %5550 = vmatpush.bf16.msra.mxu0 %v5025
  %5551 = vmatpush.bf16.msra.mxu0 %v5017
  %5552 = vmatpush.bf16.msra.mxu0 %v5009
  %5553 = vmatpush.bf16.msra.mxu0 %v5001
  %5554 = vmatpush.bf16.msra.mxu0 %v4993
  %5555 = vmatpush.bf16.msra.mxu0 %v4985
  %5556 = vmatmul.bf16.gmra.mxu0 %v3810
  %v5557 = vpop.f32.mrf.mxu0
  %v5558 = vadd.f32 %v5545, %v5557
  %v5559 = vpop.f32.mrf.mxu0
  %5560 = vdwg.mxu0
  %5561 = vmatpush.bf16.msra.mxu0 %v5105
  %5562 = vmatpush.bf16.msra.mxu0 %v5097
  %5563 = vmatpush.bf16.msra.mxu0 %v5089
  %5564 = vmatpush.bf16.msra.mxu0 %v5081
  %5565 = vmatpush.bf16.msra.mxu0 %v5073
  %5566 = vmatpush.bf16.msra.mxu0 %v5065
  %5567 = vmatpush.bf16.msra.mxu0 %v5057
  %5568 = vmatpush.bf16.msra.mxu0 %v5049
  %5569 = vmatmul.bf16.gmra.mxu0 %v3811
  %v5570 = vpop.f32.mrf.mxu0
  %v5571 = vadd.f32 %v5558, %v5570
  %v5572 = vpop.f32.mrf.mxu0
  %5573 = vdwg.mxu0
  %5574 = vmatpush.bf16.msra.mxu0 %v4914
  %5575 = vmatpush.bf16.msra.mxu0 %v4906
  %5576 = vmatpush.bf16.msra.mxu0 %v4898
  %5577 = vmatpush.bf16.msra.mxu0 %v4890
  %5578 = vmatpush.bf16.msra.mxu0 %v4882
  %5579 = vmatpush.bf16.msra.mxu0 %v4874
  %5580 = vmatpush.bf16.msra.mxu0 %v4866
  %5581 = vmatpush.bf16.msra.mxu0 %v4858
  %5582 = vmatmul.bf16.gmra.mxu0 %v3808
  %v5583 = vpop.f32.mrf.mxu0
  %v5584 = vadd.f32 %v4074, %v5583
  %v5585 = vpop.f32.mrf.mxu0
  %5586 = vdwg.mxu0
  %5587 = vmatpush.bf16.msra.mxu0 %v4978
  %5588 = vmatpush.bf16.msra.mxu0 %v4970
  %5589 = vmatpush.bf16.msra.mxu0 %v4962
  %5590 = vmatpush.bf16.msra.mxu0 %v4954
  %5591 = vmatpush.bf16.msra.mxu0 %v4946
  %5592 = vmatpush.bf16.msra.mxu0 %v4938
  %5593 = vmatpush.bf16.msra.mxu0 %v4930
  %5594 = vmatpush.bf16.msra.mxu0 %v4922
  %5595 = vmatmul.bf16.gmra.mxu0 %v3809
  %v5596 = vpop.f32.mrf.mxu0
  %v5597 = vadd.f32 %v5584, %v5596
  %v5598 = vpop.f32.mrf.mxu0
  %5599 = vdwg.mxu0
  %5600 = vmatpush.bf16.msra.mxu0 %v5042
  %5601 = vmatpush.bf16.msra.mxu0 %v5034
  %5602 = vmatpush.bf16.msra.mxu0 %v5026
  %5603 = vmatpush.bf16.msra.mxu0 %v5018
  %5604 = vmatpush.bf16.msra.mxu0 %v5010
  %5605 = vmatpush.bf16.msra.mxu0 %v5002
  %5606 = vmatpush.bf16.msra.mxu0 %v4994
  %5607 = vmatpush.bf16.msra.mxu0 %v4986
  %5608 = vmatmul.bf16.gmra.mxu0 %v3810
  %v5609 = vpop.f32.mrf.mxu0
  %v5610 = vadd.f32 %v5597, %v5609
  %v5611 = vpop.f32.mrf.mxu0
  %5612 = vdwg.mxu0
  %5613 = vmatpush.bf16.msra.mxu0 %v5106
  %5614 = vmatpush.bf16.msra.mxu0 %v5098
  %5615 = vmatpush.bf16.msra.mxu0 %v5090
  %5616 = vmatpush.bf16.msra.mxu0 %v5082
  %5617 = vmatpush.bf16.msra.mxu0 %v5074
  %5618 = vmatpush.bf16.msra.mxu0 %v5066
  %5619 = vmatpush.bf16.msra.mxu0 %v5058
  %5620 = vmatpush.bf16.msra.mxu0 %v5050
  %5621 = vmatmul.bf16.gmra.mxu0 %v3811
  %v5622 = vpop.f32.mrf.mxu0
  %v5623 = vadd.f32 %v5610, %v5622
  %v5624 = vpop.f32.mrf.mxu0
  %5625 = vdwg.mxu0
  %5626 = vmatpush.bf16.msra.mxu0 %v4915
  %5627 = vmatpush.bf16.msra.mxu0 %v4907
  %5628 = vmatpush.bf16.msra.mxu0 %v4899
  %5629 = vmatpush.bf16.msra.mxu0 %v4891
  %5630 = vmatpush.bf16.msra.mxu0 %v4883
  %5631 = vmatpush.bf16.msra.mxu0 %v4875
  %5632 = vmatpush.bf16.msra.mxu0 %v4867
  %5633 = vmatpush.bf16.msra.mxu0 %v4859
  %5634 = vmatmul.bf16.gmra.mxu0 %v3808
  %v5635 = vpop.f32.mrf.mxu0
  %v5636 = vadd.f32 %v4075, %v5635
  %v5637 = vpop.f32.mrf.mxu0
  %5638 = vdwg.mxu0
  %5639 = vmatpush.bf16.msra.mxu0 %v4979
  %5640 = vmatpush.bf16.msra.mxu0 %v4971
  %5641 = vmatpush.bf16.msra.mxu0 %v4963
  %5642 = vmatpush.bf16.msra.mxu0 %v4955
  %5643 = vmatpush.bf16.msra.mxu0 %v4947
  %5644 = vmatpush.bf16.msra.mxu0 %v4939
  %5645 = vmatpush.bf16.msra.mxu0 %v4931
  %5646 = vmatpush.bf16.msra.mxu0 %v4923
  %5647 = vmatmul.bf16.gmra.mxu0 %v3809
  %v5648 = vpop.f32.mrf.mxu0
  %v5649 = vadd.f32 %v5636, %v5648
  %v5650 = vpop.f32.mrf.mxu0
  %5651 = vdwg.mxu0
  %5652 = vmatpush.bf16.msra.mxu0 %v5043
  %5653 = vmatpush.bf16.msra.mxu0 %v5035
  %5654 = vmatpush.bf16.msra.mxu0 %v5027
  %5655 = vmatpush.bf16.msra.mxu0 %v5019
  %5656 = vmatpush.bf16.msra.mxu0 %v5011
  %5657 = vmatpush.bf16.msra.mxu0 %v5003
  %5658 = vmatpush.bf16.msra.mxu0 %v4995
  %5659 = vmatpush.bf16.msra.mxu0 %v4987
  %5660 = vmatmul.bf16.gmra.mxu0 %v3810
  %v5661 = vpop.f32.mrf.mxu0
  %v5662 = vadd.f32 %v5649, %v5661
  %v5663 = vpop.f32.mrf.mxu0
  %5664 = vdwg.mxu0
  %5665 = vmatpush.bf16.msra.mxu0 %v5107
  %5666 = vmatpush.bf16.msra.mxu0 %v5099
  %5667 = vmatpush.bf16.msra.mxu0 %v5091
  %5668 = vmatpush.bf16.msra.mxu0 %v5083
  %5669 = vmatpush.bf16.msra.mxu0 %v5075
  %5670 = vmatpush.bf16.msra.mxu0 %v5067
  %5671 = vmatpush.bf16.msra.mxu0 %v5059
  %5672 = vmatpush.bf16.msra.mxu0 %v5051
  %5673 = vmatmul.bf16.gmra.mxu0 %v3811
  %v5674 = vpop.f32.mrf.mxu0
  %v5675 = vadd.f32 %v5662, %v5674
  %v5676 = vpop.f32.mrf.mxu0
  %5677 = vdwg.mxu0
  %5678 = vmatpush.bf16.msra.mxu0 %v4916
  %5679 = vmatpush.bf16.msra.mxu0 %v4908
  %5680 = vmatpush.bf16.msra.mxu0 %v4900
  %5681 = vmatpush.bf16.msra.mxu0 %v4892
  %5682 = vmatpush.bf16.msra.mxu0 %v4884
  %5683 = vmatpush.bf16.msra.mxu0 %v4876
  %5684 = vmatpush.bf16.msra.mxu0 %v4868
  %5685 = vmatpush.bf16.msra.mxu0 %v4860
  %5686 = vmatmul.bf16.gmra.mxu0 %v3808
  %v5687 = vpop.f32.mrf.mxu0
  %v5688 = vadd.f32 %v4076, %v5687
  %v5689 = vpop.f32.mrf.mxu0
  %5690 = vdwg.mxu0
  %5691 = vmatpush.bf16.msra.mxu0 %v4980
  %5692 = vmatpush.bf16.msra.mxu0 %v4972
  %5693 = vmatpush.bf16.msra.mxu0 %v4964
  %5694 = vmatpush.bf16.msra.mxu0 %v4956
  %5695 = vmatpush.bf16.msra.mxu0 %v4948
  %5696 = vmatpush.bf16.msra.mxu0 %v4940
  %5697 = vmatpush.bf16.msra.mxu0 %v4932
  %5698 = vmatpush.bf16.msra.mxu0 %v4924
  %5699 = vmatmul.bf16.gmra.mxu0 %v3809
  %v5700 = vpop.f32.mrf.mxu0
  %v5701 = vadd.f32 %v5688, %v5700
  %v5702 = vpop.f32.mrf.mxu0
  %5703 = vdwg.mxu0
  %5704 = vmatpush.bf16.msra.mxu0 %v5044
  %5705 = vmatpush.bf16.msra.mxu0 %v5036
  %5706 = vmatpush.bf16.msra.mxu0 %v5028
  %5707 = vmatpush.bf16.msra.mxu0 %v5020
  %5708 = vmatpush.bf16.msra.mxu0 %v5012
  %5709 = vmatpush.bf16.msra.mxu0 %v5004
  %5710 = vmatpush.bf16.msra.mxu0 %v4996
  %5711 = vmatpush.bf16.msra.mxu0 %v4988
  %5712 = vmatmul.bf16.gmra.mxu0 %v3810
  %v5713 = vpop.f32.mrf.mxu0
  %v5714 = vadd.f32 %v5701, %v5713
  %v5715 = vpop.f32.mrf.mxu0
  %5716 = vdwg.mxu0
  %5717 = vmatpush.bf16.msra.mxu0 %v5108
  %5718 = vmatpush.bf16.msra.mxu0 %v5100
  %5719 = vmatpush.bf16.msra.mxu0 %v5092
  %5720 = vmatpush.bf16.msra.mxu0 %v5084
  %5721 = vmatpush.bf16.msra.mxu0 %v5076
  %5722 = vmatpush.bf16.msra.mxu0 %v5068
  %5723 = vmatpush.bf16.msra.mxu0 %v5060
  %5724 = vmatpush.bf16.msra.mxu0 %v5052
  %5725 = vmatmul.bf16.gmra.mxu0 %v3811
  %v5726 = vpop.f32.mrf.mxu0
  %v5727 = vadd.f32 %v5714, %v5726
  %v5728 = vpop.f32.mrf.mxu0
  %5729 = vdwg.mxu0
  %5730 = vmatpush.bf16.msra.mxu0 %v4917
  %5731 = vmatpush.bf16.msra.mxu0 %v4909
  %5732 = vmatpush.bf16.msra.mxu0 %v4901
  %5733 = vmatpush.bf16.msra.mxu0 %v4893
  %5734 = vmatpush.bf16.msra.mxu0 %v4885
  %5735 = vmatpush.bf16.msra.mxu0 %v4877
  %5736 = vmatpush.bf16.msra.mxu0 %v4869
  %5737 = vmatpush.bf16.msra.mxu0 %v4861
  %5738 = vmatmul.bf16.gmra.mxu0 %v3808
  %v5739 = vpop.f32.mrf.mxu0
  %v5740 = vadd.f32 %v4077, %v5739
  %v5741 = vpop.f32.mrf.mxu0
  %5742 = vdwg.mxu0
  %5743 = vmatpush.bf16.msra.mxu0 %v4981
  %5744 = vmatpush.bf16.msra.mxu0 %v4973
  %5745 = vmatpush.bf16.msra.mxu0 %v4965
  %5746 = vmatpush.bf16.msra.mxu0 %v4957
  %5747 = vmatpush.bf16.msra.mxu0 %v4949
  %5748 = vmatpush.bf16.msra.mxu0 %v4941
  %5749 = vmatpush.bf16.msra.mxu0 %v4933
  %5750 = vmatpush.bf16.msra.mxu0 %v4925
  %5751 = vmatmul.bf16.gmra.mxu0 %v3809
  %v5752 = vpop.f32.mrf.mxu0
  %v5753 = vadd.f32 %v5740, %v5752
  %v5754 = vpop.f32.mrf.mxu0
  %5755 = vdwg.mxu0
  %5756 = vmatpush.bf16.msra.mxu0 %v5045
  %5757 = vmatpush.bf16.msra.mxu0 %v5037
  %5758 = vmatpush.bf16.msra.mxu0 %v5029
  %5759 = vmatpush.bf16.msra.mxu0 %v5021
  %5760 = vmatpush.bf16.msra.mxu0 %v5013
  %5761 = vmatpush.bf16.msra.mxu0 %v5005
  %5762 = vmatpush.bf16.msra.mxu0 %v4997
  %5763 = vmatpush.bf16.msra.mxu0 %v4989
  %5764 = vmatmul.bf16.gmra.mxu0 %v3810
  %v5765 = vpop.f32.mrf.mxu0
  %v5766 = vadd.f32 %v5753, %v5765
  %v5767 = vpop.f32.mrf.mxu0
  %5768 = vdwg.mxu0
  %5769 = vmatpush.bf16.msra.mxu0 %v5109
  %5770 = vmatpush.bf16.msra.mxu0 %v5101
  %5771 = vmatpush.bf16.msra.mxu0 %v5093
  %5772 = vmatpush.bf16.msra.mxu0 %v5085
  %5773 = vmatpush.bf16.msra.mxu0 %v5077
  %5774 = vmatpush.bf16.msra.mxu0 %v5069
  %5775 = vmatpush.bf16.msra.mxu0 %v5061
  %5776 = vmatpush.bf16.msra.mxu0 %v5053
  %5777 = vmatmul.bf16.gmra.mxu0 %v3811
  %v5778 = vpop.f32.mrf.mxu0
  %v5779 = vadd.f32 %v5766, %v5778
  %v5780 = vpop.f32.mrf.mxu0
  %5781 = vdwg.mxu0
  %v5782 = vsub.f32 0.0, %v5415
  %v5783 = vsub.f32 0.0, %v5467
  %v5784 = vsub.f32 0.0, %v5519
  %v5785 = vsub.f32 0.0, %v5571
  %v5786 = vsub.f32 0.0, %v5623
  %v5787 = vsub.f32 0.0, %v5675
  %v5788 = vsub.f32 0.0, %v5727
  %v5789 = vsub.f32 0.0, %v5779
  %v5790 = vmul.f32 %v5782, 1.442695
  %v5791 = vpow.pop %v5790
  %v5792 = vmul.f32 %v5783, 1.442695
  %v5793 = vpow.pop %v5792
  %v5794 = vmul.f32 %v5784, 1.442695
  %v5795 = vpow.pop %v5794
  %v5796 = vmul.f32 %v5785, 1.442695
  %v5797 = vpow.pop %v5796
  %v5798 = vmul.f32 %v5786, 1.442695
  %v5799 = vpow.pop %v5798
  %v5800 = vmul.f32 %v5787, 1.442695
  %v5801 = vpow.pop %v5800
  %v5802 = vmul.f32 %v5788, 1.442695
  %v5803 = vpow.pop %v5802
  %v5804 = vmul.f32 %v5789, 1.442695
  %v5805 = vpow.pop %v5804
  %v5806 = vadd.f32 %v5791, 1.0
  %v5807 = vadd.f32 %v5793, 1.0
  %v5808 = vadd.f32 %v5795, 1.0
  %v5809 = vadd.f32 %v5797, 1.0
  %v5810 = vadd.f32 %v5799, 1.0
  %v5811 = vadd.f32 %v5801, 1.0
  %v5812 = vadd.f32 %v5803, 1.0
  %v5813 = vadd.f32 %v5805, 1.0
  %v5814 = vrcp.pop %v5806
  %v5815 = vrcp.pop %v5807
  %v5816 = vrcp.pop %v5808
  %v5817 = vrcp.pop %v5809
  %v5818 = vrcp.pop %v5810
  %v5819 = vrcp.pop %v5811
  %v5820 = vrcp.pop %v5812
  %v5821 = vrcp.pop %v5813
  %v5830 = vrot.slane %v5815, 6
  %v5831 = vrot.slane %v5816, 4
  %v5832 = vrot.slane %v5817, 2
  %v5833 = vrot.slane %v5819, 6
  %v5834 = vrot.slane %v5820, 4
  %v5835 = vrot.slane %v5821, 2
  %vm5836 = vcmask 1041408
  %v5837 = vsel %vm5836, %v5814, %v5830
  %vm5838 = vcmask 1045508
  %v5839 = vsel %vm5838, %v5831, %v5832
  %vm5840 = vcmask 1043456
  %v5841 = vsel %vm5840, %v5837, %v5839
  %v5842 = vsel %vm5836, %v5818, %v5833
  %v5843 = vsel %vm5838, %v5834, %v5835
  %v5844 = vsel %vm5840, %v5842, %v5843
  %5847 = vst [vmem:[%s14] sm:$0xff] %v5841
  %5848 = vst [vmem:[%s14 + $0x8] sm:$0xff] %v5844
  // Predicated region
  $region73: #{cvae_forward.1} parent=0 // pred_check
    _
  $region74: #{cvae_forward.1} parent=0 // pred_check_branch
    %5850 = sbr.rel (0) target = $region76
  $region75: #{cvae_forward.1} parent=0 // pred_region
    _
  $region76: #{cvae_forward.1} parent=0 // pred_fallthru
    _
  // Predicated region
  $region77: #{cvae_forward.1} parent=0 // pred_check
    _
  $region78: #{cvae_forward.1} parent=0 // pred_check_branch
    %5852 = sbr.rel (0) target = $region80
  $region79: #{cvae_forward.1} parent=0 // pred_region
    _
  $region80: #{cvae_forward.1} parent=0 // pred_fallthru
    _
  // Predicated region
  $region81: #{cvae_forward.1} parent=0 // pred_check
    _
  $region82: #{cvae_forward.1} parent=0 // pred_check_branch
    %5854 = sbr.rel (0) target = $region84
  $region83: #{cvae_forward.1} parent=0 // pred_region
    _
  $region84: #{cvae_forward.1} parent=0 // pred_fallthru
    _
  // Predicated region
  $region85: #{cvae_forward.1} parent=0 // pred_check
    _
  $region86: #{cvae_forward.1} parent=0 // pred_check_branch
    %5856 = sbr.rel (0) target = $region88
  $region87: #{cvae_forward.1} parent=0 // pred_region
    _
  $region88: #{cvae_forward.1} parent=0 // pred_fallthru
    _
  %5857 = vsyncmov [#allocation3]
  %s5858 = vpop.sfrf %5857
  %p5859 = scmp.eq.s32.totalorder %s5858, 0
  %p5860 = pneg %p5859
  %5862 = shalt.err (%p5860)

</llo_original>
